<compile_context>
chip_gen: v7x
topology: tpu7x:2x2x1
jax: 0.10.0
libtpu: 0.0.40
codegen_flags: <defaults>
</compile_context>

<pallas_src>
import functools

import jax
import jax.numpy as jnp
from jax import lax
from jax.experimental import pallas as pl
from jax.experimental.pallas import tpu as pltpu

_INF = 1e10      # "infinity" sentinel for travel times
_PAD_F = 1e10    # ghost-cell slowness -> ghost travel times stay >> interior
_FH_MAX = 3e18   # clamp f*h so (f*h)^2 stays finite in f32 (ghost frame)


def _round_up(x, m):
    return ((x + m - 1) // m) * m


def _eikonal2d_kernel(f_ref, u_ref, *, h, ix, jx, max_outer, check_every,
                      unroll_inner, hoist_fh2):
    NX, NY = f_ref.shape

    # Loop-invariant quantities.  f*h is always hoisted; (f*h)^2 and 2(f*h)^2
    # are persisted across the while_loop only when the VMEM budget allows
    # two extra full-grid f32 arrays (v5e/v6e, or small grids on v7x);
    # otherwise they are recomputed per sweep (2 VALU ops/elem).
    f = f_ref[...]
    fh = jnp.minimum(f * jnp.float32(h), jnp.float32(_FH_MAX))
    if hoist_fh2:
        fh2_h = fh * fh
        two_fh2_h = fh2_h + fh2_h

    row = lax.broadcasted_iota(jnp.int32, (NX, NY), 0)
    col = lax.broadcasted_iota(jnp.int32, (NX, NY), 1)
    src = (row == ix) & (col == jx)
    # init: +inf everywhere, 0 at the source.  No per-iteration pin needed:
    # unew >= 0 for f >= 0, so the running minimum keeps the source at 0.
    u0 = jnp.where(src, jnp.float32(0.0), jnp.float32(_INF))

    def sweep(u):
        # Neighbor values via XLU rolls (constant vreg layout, no relayout,
        # no per-iteration boundary masks).  Circular wrap-around lands in
        # the ghost frame whose travel times stay huge, reproducing the +inf
        # out-of-domain boundary treatment.
        up = pltpu.roll(u, 1, 0)         # u[i-1, j]
        dn = pltpu.roll(u, NX - 1, 0)    # u[i+1, j]
        lf = pltpu.roll(u, 1, 1)         # u[i, j-1]
        rt = pltpu.roll(u, NY - 1, 1)    # u[i, j+1]

        a = jnp.minimum(up, dn)
        b = jnp.minimum(lf, rt)
        if hoist_fh2:
            fh2, two_fh2 = fh2_h, two_fh2_h
        else:
            fh2 = fh * fh
            two_fh2 = fh2 + fh2
        d = a - b
        d2 = d * d
        one_sided = jnp.minimum(a, b) + fh
        # Godunov local solver:
        #   d2 >= (f h)^2 : u = min(a, b) + f*h
        #   else          : u = (a + b + sqrt(2 (f h)^2 - (a-b)^2)) / 2
        # NOTE: no max(., 0) clamp on the sqrt argument.  two_fh2 - d2 < 0
        # implies d2 > fh2, so the select below picks one_sided and the NaN
        # lane is never chosen (jnp.where is a bitwise select).  Do NOT
        # replace the select with a min over both branches.
        quad = 0.5 * ((a + b) + jnp.sqrt(two_fh2 - d2))
        unew = jnp.where(d2 >= fh2, one_sided, quad)
        return jnp.minimum(u, unew)      # monotone update

    if unroll_inner:
        def run_block(u):                # small grids: full unroll (LLO visibility)
            for _ in range(check_every):
                u = sweep(u)
            return u
    else:
        def run_block(u):                # large grids: visible loop, bounded temps
            return lax.fori_loop(0, check_every, lambda _, uu: sweep(uu), u)

    def cond(state):
        it, _, diff = state
        return jnp.logical_and(it < max_outer, diff > 0.0)

    def body(state):
        it, u, _ = state
        u_prev = u
        u = run_block(u)
        # Monotone decrease => fixed point iff nothing changed over K sweeps.
        # (Terminates: monotone non-increasing min-updates on a finite f32
        # lattice.)  The reduce + scalar while-cond is paid once per K sweeps.
        diff = jnp.max(u_prev - u)
        return it + jnp.int32(1), u, diff

    _, u, _ = lax.while_loop(cond, body, (jnp.int32(0), u0, jnp.float32(1.0)))
    u_ref[...] = u   # unmasked, lane-dense full-block store


def eikonal2d_forward(f, h, ix, jx, max_iter=None, check_every=None):
    """Pallas equivalent of eikonal2d_op.forward(f, h, ix, jx)."""
    f = jnp.asarray(f, jnp.float32)
    nx, ny = f.shape
    ix, jx = int(ix), int(jx)

    # Map the longer problem axis onto the 128-lane (last) dim: padding waste
    # is round8(nx+1)/nx x round128(ny+1)/ny, so tall-skinny grids are far
    # cheaper transposed.  The transpose is a one-time XLA op outside the
    # kernel (the eikonal stencil is isotropic, so transposing f + swapping
    # the source indices and transposing u back is exact).
    if (_round_up(ny + 1, 8) * _round_up(nx + 1, 128) <
            _round_up(nx + 1, 8) * _round_up(ny + 1, 128)):
        f = f.T
        nx, ny = ny, nx
        ix, jx = jx, ix
        transposed = True
    else:
        transposed = False

    # Lane-dense padding: last dim -> multiple of 128 (lanes), second-to-last
    # -> multiple of 8 (sublanes), with >= 1 ghost row/col of huge slowness so
    # the circular pltpu.roll wraps into ghost cells instead of real data.
    # Ghost cells settle near _PAD_F*h + (nearest interior value); this
    # emulates +inf as long as _PAD_F >> f_max*(nx+ny), which holds by a huge
    # margin for any field whose interior travel times stay << _INF = 1e10
    # (required by the sentinel logic anyway).
    NX = _round_up(nx + 1, 8)
    NY = _round_up(ny + 1, 128)
    f_pad = jnp.full((NX, NY), _PAD_F, jnp.float32).at[:nx, :ny].set(f)

    # --- VMEM budget -------------------------------------------------------
    # The whole padded grid is VMEM-resident; ~9-10 full-grid f32 arrays are
    # live (u, u_prev, fh [, fh2, two_fh2], 4 roll temps, in/out buffers).
    # The scoped default (16/32/32 MiB on v5e/v6e/v7x) is far below physical
    # (128/128/64 MiB), so raise it explicitly with headroom:
    #   v5e/v6e: ~102 MiB scoped -> ceiling ~1.6k cells per side
    #   v7x:     ~51  MiB scoped -> ceiling ~1.1k per side (toward ~1.3k with
    #            fh2/two_fh2 shed via hoist_fh2=False below).
    try:
        vmem_cap = int(getattr(pltpu.get_tpu_info(), "vmem_capacity_bytes",
                               64 << 20))
    except Exception:  # conservative fallback = v7x floor
        vmem_cap = 64 << 20
    vmem_limit = int(vmem_cap * 0.80)

    grid_bytes = NX * NY * 4
    # Persist (f*h)^2 / 2(f*h)^2 across the while_loop only if ~12 full-grid
    # buffers still fit the scoped limit; otherwise recompute per sweep.
    hoist_fh2 = 12 * grid_bytes <= vmem_limit
    # Fully unroll the K inner sweeps only for small padded grids; 1k-scale
    # grids use a visible fori_loop (code size, bounded temp live ranges).
    unroll_inner = NX * NY <= (1 << 17)

    if check_every is None:
        # Amortize the full-array max-reduce + un-hidden while-cond stall;
        # bigger K for small padded grids where the reduce dominates a sweep.
        # Over-shoot costs at most K-1 cheap monotone sweeps.
        check_every = 32 if NX * NY <= (1 << 16) else 16
    if max_iter is None:
        max_iter = NX * NY   # hard upper bound only; loop exits at fixed point
    max_outer = int(pl.cdiv(int(max_iter), int(check_every)))

    kernel = functools.partial(
        _eikonal2d_kernel,
        h=float(h), ix=ix, jx=jx,
        max_outer=max_outer, check_every=int(check_every),
        unroll_inner=bool(unroll_inner), hoist_fh2=bool(hoist_fh2),
    )

    # Single VMEM-resident block: no grid, no BlockSpec pipelining (nothing
    # to double-buffer).  MXU/DMA are not in play; the sweep is VALU-bound
    # with XLU rolls and the EUP sqrt riding otherwise-idle slots.
    # TODO(synk): for batched solves on v7x, add a leading batch grid axis
    # with dimension_semantics=("parallel",) to use both TensorCores; a
    # single large solve could be split across cores along sublanes with a
    # ghost-row exchange once per check_every block.
    # TODO(synk): a banded Gauss-Seidel ordering (sequential sublane strips,
    # alternating sweep directions) would cut sweep counts for strongly
    # directional propagation; for roughly isotropic point-source fields the
    # convergence-checked Jacobi here already needs only ~O(nx+ny) sweeps, so
    # it is left out to keep the inner stencil mask-free and roll-only.
    u_pad = pl.pallas_call(
        kernel,
        out_shape=jax.ShapeDtypeStruct((NX, NY), jnp.float32),
        in_specs=[pl.BlockSpec(memory_space=pltpu.MemorySpace.VMEM)],
        out_specs=pl.BlockSpec(memory_space=pltpu.MemorySpace.VMEM),
        compiler_params=pltpu.CompilerParams(vmem_limit_bytes=vmem_limit),
    )(f_pad)
    u = u_pad[:nx, :ny]
    return u.T if transposed else u


class Eikonal2D:
    """JAX/Pallas counterpart of the PyTorch Eikonal2D module (forward only)."""

    def __init__(self, h, ix, jx):
        self.h = h
        self.ix = ix
        self.jx = jx

    def __call__(self, f):
        return eikonal2d_forward(f, self.h, self.ix, self.jx)


def _eikonal2d_reference(f, h, ix, jx, n_iter):
    """Pure-JAX (non-Pallas) Jacobi fast-sweeping reference for validation."""
    f = jnp.asarray(f, jnp.float32)
    nx, ny = f.shape
    fh = f * jnp.float32(h)
    row = lax.broadcasted_iota(jnp.int32, (nx, ny), 0)
    col = lax.broadcasted_iota(jnp.int32, (nx, ny), 1)
    src = (row == ix) & (col == jx)
    u = jnp.where(src, 0.0, _INF).astype(jnp.float32)
    inf_row = jnp.full((1, ny), _INF, jnp.float32)
    inf_col = jnp.full((nx, 1), _INF, jnp.float32)

    def body(_, u):
        up = jnp.concatenate([inf_row, u[:-1, :]], axis=0)
        dn = jnp.concatenate([u[1:, :], inf_row], axis=0)
        lf = jnp.concatenate([inf_col, u[:, :-1]], axis=1)
        rt = jnp.concatenate([u[:, 1:], inf_col], axis=1)
        a = jnp.minimum(up, dn)
        b = jnp.minimum(lf, rt)
        u1 = jnp.minimum(a, b) + fh
        disc = 2.0 * fh * fh - (a - b) * (a - b)
        u2 = 0.5 * (a + b + jnp.sqrt(jnp.maximum(disc, 0.0)))
        unew = jnp.where(jnp.abs(a - b) >= fh, u1, u2)
        u = jnp.minimum(u, unew)
        return jnp.where(src, 0.0, u)

    return lax.fori_loop(0, n_iter, body, u)


if __name__ == "__main__":
    key = jax.random.PRNGKey(0)
    k1, k2 = jax.random.split(key)

    # --- test 1: square grid ------------------------------------------------
    nx, ny = 16, 16
    h = 1.0
    ix, jx = 8, 8
    f = 1.0 + 0.5 * jax.random.uniform(k1, (nx, ny), dtype=jnp.float32)

    model = Eikonal2D(h, ix, jx)
    u = jax.block_until_ready(model(f))

    assert u.shape == (nx, ny)
    assert bool(jnp.isfinite(u).all())
    assert float(u[ix, jx]) == 0.0
    assert float(u.min()) == 0.0 and float(u.max()) > 0.0

    u_ref = jax.block_until_ready(_eikonal2d_reference(f, h, ix, jx, nx * ny))
    assert bool(jnp.allclose(u, u_ref, rtol=1e-4, atol=1e-3)), float(
        jnp.max(jnp.abs(u - u_ref)))

    # --- test 2: tall-skinny grid (exercises the lane-orientation transpose) -
    nx2, ny2 = 24, 10
    ix2, jx2 = 5, 3
    f2 = 1.0 + 0.5 * jax.random.uniform(k2, (nx2, ny2), dtype=jnp.float32)
    u2 = jax.block_until_ready(eikonal2d_forward(f2, h, ix2, jx2))
    u2_ref = jax.block_until_ready(
        _eikonal2d_reference(f2, h, ix2, jx2, nx2 * ny2))
    assert u2.shape == (nx2, ny2)
    assert float(u2[ix2, jx2]) == 0.0
    assert bool(jnp.allclose(u2, u2_ref, rtol=1e-4, atol=1e-3)), float(
        jnp.max(jnp.abs(u2 - u2_ref)))

    print("KERNEL_OK")
</pallas_src>

<mosaic_0001>
module attributes {stable_mosaic.version = 11 : i64} {
  func.func @_eikonal2d_kernel(%arg0: memref<24x128xf32, #tpu.memory_space<vmem>>, %arg1: memref<24x128xf32, #tpu.memory_space<vmem>>) attributes {dimension_semantics = [], scalar_prefetch = 0 : i64, scratch_operands = 0 : i64, tpu.core_type = #tpu.core_type<tc>} {
    %c0 = arith.constant 0 : index
    %c0_0 = arith.constant 0 : index
    %0 = vector.load %arg0[%c0, %c0_0] : memref<24x128xf32, #tpu.memory_space<vmem>>, vector<24x128xf32>
    %cst = arith.constant 1.000000e+00 : f32
    %1 = vector.broadcast %cst : f32 to vector<24x128xf32>
    %2 = arith.mulf %0, %1 : vector<24x128xf32>
    %cst_1 = arith.constant 3.000000e+18 : f32
    %3 = vector.broadcast %cst_1 : f32 to vector<24x128xf32>
    %4 = arith.minimumf %2, %3 : vector<24x128xf32>
    %5 = arith.mulf %4, %4 : vector<24x128xf32>
    %6 = arith.addf %5, %5 : vector<24x128xf32>
    %7 = tpu.iota {dimensions = array<i32: 0>} : vector<24x128xi32>
    %8 = tpu.iota {dimensions = array<i32: 1>} : vector<24x128xi32>
    %c8_i32 = arith.constant 8 : i32
    %9 = vector.broadcast %c8_i32 : i32 to vector<24x128xi32>
    %10 = arith.cmpi eq, %7, %9 : vector<24x128xi32>
    %c8_i32_2 = arith.constant 8 : i32
    %11 = vector.broadcast %c8_i32_2 : i32 to vector<24x128xi32>
    %12 = arith.cmpi eq, %8, %11 : vector<24x128xi32>
    %13 = arith.andi %10, %12 : vector<24x128xi1>
    %cst_3 = arith.constant 0.000000e+00 : f32
    %cst_4 = arith.constant 1.000000e+10 : f32
    %14 = vector.broadcast %cst_3 : f32 to vector<24x128xf32>
    %15 = vector.broadcast %cst_4 : f32 to vector<24x128xf32>
    %16 = arith.select %13, %14, %15 : vector<24x128xi1>, vector<24x128xf32>
    %c0_i32 = arith.constant 0 : i32
    %cst_5 = arith.constant 1.000000e+00 : f32
    %17:3 = scf.while (%arg2 = %c0_i32, %arg3 = %16, %arg4 = %cst_5) : (i32, vector<24x128xf32>, f32) -> (i32, vector<24x128xf32>, f32) {
      %c96_i32 = arith.constant 96 : i32
      %19 = arith.cmpi slt, %arg2, %c96_i32 : i32
      %cst_8 = arith.constant 0.000000e+00 : f32
      %20 = arith.cmpf ogt, %arg4, %cst_8 : f32
      %21 = arith.andi %19, %20 : i1
      scf.condition(%21) %arg2, %arg3, %arg4 : i32, vector<24x128xf32>, f32
    } do {
    ^bb0(%arg2: i32, %arg3: vector<24x128xf32>, %arg4: f32):
      %c1_i32 = arith.constant 1 : i32
      %19 = tpu.dynamic_rotate %arg3 by %c1_i32 dim 0 : vector<24x128xf32>, i32 -> vector<24x128xf32>
      %c23_i32 = arith.constant 23 : i32
      %20 = tpu.dynamic_rotate %arg3 by %c23_i32 dim 0 : vector<24x128xf32>, i32 -> vector<24x128xf32>
      %c1_i32_8 = arith.constant 1 : i32
      %21 = tpu.dynamic_rotate %arg3 by %c1_i32_8 dim 1 : vector<24x128xf32>, i32 -> vector<24x128xf32>
      %c127_i32 = arith.constant 127 : i32
      %22 = tpu.dynamic_rotate %arg3 by %c127_i32 dim 1 : vector<24x128xf32>, i32 -> vector<24x128xf32>
      %23 = arith.minimumf %19, %20 : vector<24x128xf32>
      %24 = arith.minimumf %21, %22 : vector<24x128xf32>
      %25 = arith.subf %23, %24 : vector<24x128xf32>
      %26 = arith.mulf %25, %25 : vector<24x128xf32>
      %27 = arith.minimumf %23, %24 : vector<24x128xf32>
      %28 = arith.addf %27, %4 : vector<24x128xf32>
      %29 = arith.addf %23, %24 : vector<24x128xf32>
      %30 = arith.subf %6, %26 : vector<24x128xf32>
      %31 = math.sqrt %30 : vector<24x128xf32>
      %32 = arith.addf %29, %31 : vector<24x128xf32>
      %cst_9 = arith.constant 5.000000e-01 : f32
      %33 = vector.broadcast %cst_9 : f32 to vector<24x128xf32>
      %34 = arith.mulf %33, %32 : vector<24x128xf32>
      %35 = arith.cmpf oge, %26, %5 : vector<24x128xf32>
      %36 = arith.select %35, %28, %34 : vector<24x128xi1>, vector<24x128xf32>
      %37 = arith.minimumf %arg3, %36 : vector<24x128xf32>
      %c1_i32_10 = arith.constant 1 : i32
      %38 = tpu.dynamic_rotate %37 by %c1_i32_10 dim 0 : vector<24x128xf32>, i32 -> vector<24x128xf32>
      %c23_i32_11 = arith.constant 23 : i32
      %39 = tpu.dynamic_rotate %37 by %c23_i32_11 dim 0 : vector<24x128xf32>, i32 -> vector<24x128xf32>
      %c1_i32_12 = arith.constant 1 : i32
      %40 = tpu.dynamic_rotate %37 by %c1_i32_12 dim 1 : vector<24x128xf32>, i32 -> vector<24x128xf32>
      %c127_i32_13 = arith.constant 127 : i32
      %41 = tpu.dynamic_rotate %37 by %c127_i32_13 dim 1 : vector<24x128xf32>, i32 -> vector<24x128xf32>
      %42 = arith.minimumf %38, %39 : vector<24x128xf32>
      %43 = arith.minimumf %40, %41 : vector<24x128xf32>
      %44 = arith.subf %42, %43 : vector<24x128xf32>
      %45 = arith.mulf %44, %44 : vector<24x128xf32>
      %46 = arith.minimumf %42, %43 : vector<24x128xf32>
      %47 = arith.addf %46, %4 : vector<24x128xf32>
      %48 = arith.addf %42, %43 : vector<24x128xf32>
      %49 = arith.subf %6, %45 : vector<24x128xf32>
      %50 = math.sqrt %49 : vector<24x128xf32>
      %51 = arith.addf %48, %50 : vector<24x128xf32>
      %cst_14 = arith.constant 5.000000e-01 : f32
      %52 = vector.broadcast %cst_14 : f32 to vector<24x128xf32>
      %53 = arith.mulf %52, %51 : vector<24x128xf32>
      %54 = arith.cmpf oge, %45, %5 : vector<24x128xf32>
      %55 = arith.select %54, %47, %53 : vector<24x128xi1>, vector<24x128xf32>
      %56 = arith.minimumf %37, %55 : vector<24x128xf32>
      %c1_i32_15 = arith.constant 1 : i32
      %57 = tpu.dynamic_rotate %56 by %c1_i32_15 dim 0 : vector<24x128xf32>, i32 -> vector<24x128xf32>
      %c23_i32_16 = arith.constant 23 : i32
      %58 = tpu.dynamic_rotate %56 by %c23_i32_16 dim 0 : vector<24x128xf32>, i32 -> vector<24x128xf32>
      %c1_i32_17 = arith.constant 1 : i32
      %59 = tpu.dynamic_rotate %56 by %c1_i32_17 dim 1 : vector<24x128xf32>, i32 -> vector<24x128xf32>
      %c127_i32_18 = arith.constant 127 : i32
      %60 = tpu.dynamic_rotate %56 by %c127_i32_18 dim 1 : vector<24x128xf32>, i32 -> vector<24x128xf32>
      %61 = arith.minimumf %57, %58 : vector<24x128xf32>
      %62 = arith.minimumf %59, %60 : vector<24x128xf32>
      %63 = arith.subf %61, %62 : vector<24x128xf32>
      %64 = arith.mulf %63, %63 : vector<24x128xf32>
      %65 = arith.minimumf %61, %62 : vector<24x128xf32>
      %66 = arith.addf %65, %4 : vector<24x128xf32>
      %67 = arith.addf %61, %62 : vector<24x128xf32>
      %68 = arith.subf %6, %64 : vector<24x128xf32>
      %69 = math.sqrt %68 : vector<24x128xf32>
      %70 = arith.addf %67, %69 : vector<24x128xf32>
      %cst_19 = arith.constant 5.000000e-01 : f32
      %71 = vector.broadcast %cst_19 : f32 to vector<24x128xf32>
      %72 = arith.mulf %71, %70 : vector<24x128xf32>
      %73 = arith.cmpf oge, %64, %5 : vector<24x128xf32>
      %74 = arith.select %73, %66, %72 : vector<24x128xi1>, vector<24x128xf32>
      %75 = arith.minimumf %56, %74 : vector<24x128xf32>
      %c1_i32_20 = arith.constant 1 : i32
      %76 = tpu.dynamic_rotate %75 by %c1_i32_20 dim 0 : vector<24x128xf32>, i32 -> vector<24x128xf32>
      %c23_i32_21 = arith.constant 23 : i32
      %77 = tpu.dynamic_rotate %75 by %c23_i32_21 dim 0 : vector<24x128xf32>, i32 -> vector<24x128xf32>
      %c1_i32_22 = arith.constant 1 : i32
      %78 = tpu.dynamic_rotate %75 by %c1_i32_22 dim 1 : vector<24x128xf32>, i32 -> vector<24x128xf32>
      %c127_i32_23 = arith.constant 127 : i32
      %79 = tpu.dynamic_rotate %75 by %c127_i32_23 dim 1 : vector<24x128xf32>, i32 -> vector<24x128xf32>
      %80 = arith.minimumf %76, %77 : vector<24x128xf32>
      %81 = arith.minimumf %78, %79 : vector<24x128xf32>
      %82 = arith.subf %80, %81 : vector<24x128xf32>
      %83 = arith.mulf %82, %82 : vector<24x128xf32>
      %84 = arith.minimumf %80, %81 : vector<24x128xf32>
      %85 = arith.addf %84, %4 : vector<24x128xf32>
      %86 = arith.addf %80, %81 : vector<24x128xf32>
      %87 = arith.subf %6, %83 : vector<24x128xf32>
      %88 = math.sqrt %87 : vector<24x128xf32>
      %89 = arith.addf %86, %88 : vector<24x128xf32>
      %cst_24 = arith.constant 5.000000e-01 : f32
      %90 = vector.broadcast %cst_24 : f32 to vector<24x128xf32>
      %91 = arith.mulf %90, %89 : vector<24x128xf32>
      %92 = arith.cmpf oge, %83, %5 : vector<24x128xf32>
      %93 = arith.select %92, %85, %91 : vector<24x128xi1>, vector<24x128xf32>
      %94 = arith.minimumf %75, %93 : vector<24x128xf32>
      %c1_i32_25 = arith.constant 1 : i32
      %95 = tpu.dynamic_rotate %94 by %c1_i32_25 dim 0 : vector<24x128xf32>, i32 -> vector<24x128xf32>
      %c23_i32_26 = arith.constant 23 : i32
      %96 = tpu.dynamic_rotate %94 by %c23_i32_26 dim 0 : vector<24x128xf32>, i32 -> vector<24x128xf32>
      %c1_i32_27 = arith.constant 1 : i32
      %97 = tpu.dynamic_rotate %94 by %c1_i32_27 dim 1 : vector<24x128xf32>, i32 -> vector<24x128xf32>
      %c127_i32_28 = arith.constant 127 : i32
      %98 = tpu.dynamic_rotate %94 by %c127_i32_28 dim 1 : vector<24x128xf32>, i32 -> vector<24x128xf32>
      %99 = arith.minimumf %95, %96 : vector<24x128xf32>
      %100 = arith.minimumf %97, %98 : vector<24x128xf32>
      %101 = arith.subf %99, %100 : vector<24x128xf32>
      %102 = arith.mulf %101, %101 : vector<24x128xf32>
      %103 = arith.minimumf %99, %100 : vector<24x128xf32>
      %104 = arith.addf %103, %4 : vector<24x128xf32>
      %105 = arith.addf %99, %100 : vector<24x128xf32>
      %106 = arith.subf %6, %102 : vector<24x128xf32>
      %107 = math.sqrt %106 : vector<24x128xf32>
      %108 = arith.addf %105, %107 : vector<24x128xf32>
      %cst_29 = arith.constant 5.000000e-01 : f32
      %109 = vector.broadcast %cst_29 : f32 to vector<24x128xf32>
      %110 = arith.mulf %109, %108 : vector<24x128xf32>
      %111 = arith.cmpf oge, %102, %5 : vector<24x128xf32>
      %112 = arith.select %111, %104, %110 : vector<24x128xi1>, vector<24x128xf32>
      %113 = arith.minimumf %94, %112 : vector<24x128xf32>
      %c1_i32_30 = arith.constant 1 : i32
      %114 = tpu.dynamic_rotate %113 by %c1_i32_30 dim 0 : vector<24x128xf32>, i32 -> vector<24x128xf32>
      %c23_i32_31 = arith.constant 23 : i32
      %115 = tpu.dynamic_rotate %113 by %c23_i32_31 dim 0 : vector<24x128xf32>, i32 -> vector<24x128xf32>
      %c1_i32_32 = arith.constant 1 : i32
      %116 = tpu.dynamic_rotate %113 by %c1_i32_32 dim 1 : vector<24x128xf32>, i32 -> vector<24x128xf32>
      %c127_i32_33 = arith.constant 127 : i32
      %117 = tpu.dynamic_rotate %113 by %c127_i32_33 dim 1 : vector<24x128xf32>, i32 -> vector<24x128xf32>
      %118 = arith.minimumf %114, %115 : vector<24x128xf32>
      %119 = arith.minimumf %116, %117 : vector<24x128xf32>
      %120 = arith.subf %118, %119 : vector<24x128xf32>
      %121 = arith.mulf %120, %120 : vector<24x128xf32>
      %122 = arith.minimumf %118, %119 : vector<24x128xf32>
      %123 = arith.addf %122, %4 : vector<24x128xf32>
      %124 = arith.addf %118, %119 : vector<24x128xf32>
      %125 = arith.subf %6, %121 : vector<24x128xf32>
      %126 = math.sqrt %125 : vector<24x128xf32>
      %127 = arith.addf %124, %126 : vector<24x128xf32>
      %cst_34 = arith.constant 5.000000e-01 : f32
      %128 = vector.broadcast %cst_34 : f32 to vector<24x128xf32>
      %129 = arith.mulf %128, %127 : vector<24x128xf32>
      %130 = arith.cmpf oge, %121, %5 : vector<24x128xf32>
      %131 = arith.select %130, %123, %129 : vector<24x128xi1>, vector<24x128xf32>
      %132 = arith.minimumf %113, %131 : vector<24x128xf32>
      %c1_i32_35 = arith.constant 1 : i32
      %133 = tpu.dynamic_rotate %132 by %c1_i32_35 dim 0 : vector<24x128xf32>, i32 -> vector<24x128xf32>
      %c23_i32_36 = arith.constant 23 : i32
      %134 = tpu.dynamic_rotate %132 by %c23_i32_36 dim 0 : vector<24x128xf32>, i32 -> vector<24x128xf32>
      %c1_i32_37 = arith.constant 1 : i32
      %135 = tpu.dynamic_rotate %132 by %c1_i32_37 dim 1 : vector<24x128xf32>, i32 -> vector<24x128xf32>
      %c127_i32_38 = arith.constant 127 : i32
      %136 = tpu.dynamic_rotate %132 by %c127_i32_38 dim 1 : vector<24x128xf32>, i32 -> vector<24x128xf32>
      %137 = arith.minimumf %133, %134 : vector<24x128xf32>
      %138 = arith.minimumf %135, %136 : vector<24x128xf32>
      %139 = arith.subf %137, %138 : vector<24x128xf32>
      %140 = arith.mulf %139, %139 : vector<24x128xf32>
      %141 = arith.minimumf %137, %138 : vector<24x128xf32>
      %142 = arith.addf %141, %4 : vector<24x128xf32>
      %143 = arith.addf %137, %138 : vector<24x128xf32>
      %144 = arith.subf %6, %140 : vector<24x128xf32>
      %145 = math.sqrt %144 : vector<24x128xf32>
      %146 = arith.addf %143, %145 : vector<24x128xf32>
      %cst_39 = arith.constant 5.000000e-01 : f32
      %147 = vector.broadcast %cst_39 : f32 to vector<24x128xf32>
      %148 = arith.mulf %147, %146 : vector<24x128xf32>
      %149 = arith.cmpf oge, %140, %5 : vector<24x128xf32>
      %150 = arith.select %149, %142, %148 : vector<24x128xi1>, vector<24x128xf32>
      %151 = arith.minimumf %132, %150 : vector<24x128xf32>
      %c1_i32_40 = arith.constant 1 : i32
      %152 = tpu.dynamic_rotate %151 by %c1_i32_40 dim 0 : vector<24x128xf32>, i32 -> vector<24x128xf32>
      %c23_i32_41 = arith.constant 23 : i32
      %153 = tpu.dynamic_rotate %151 by %c23_i32_41 dim 0 : vector<24x128xf32>, i32 -> vector<24x128xf32>
      %c1_i32_42 = arith.constant 1 : i32
      %154 = tpu.dynamic_rotate %151 by %c1_i32_42 dim 1 : vector<24x128xf32>, i32 -> vector<24x128xf32>
      %c127_i32_43 = arith.constant 127 : i32
      %155 = tpu.dynamic_rotate %151 by %c127_i32_43 dim 1 : vector<24x128xf32>, i32 -> vector<24x128xf32>
      %156 = arith.minimumf %152, %153 : vector<24x128xf32>
      %157 = arith.minimumf %154, %155 : vector<24x128xf32>
      %158 = arith.subf %156, %157 : vector<24x128xf32>
      %159 = arith.mulf %158, %158 : vector<24x128xf32>
      %160 = arith.minimumf %156, %157 : vector<24x128xf32>
      %161 = arith.addf %160, %4 : vector<24x128xf32>
      %162 = arith.addf %156, %157 : vector<24x128xf32>
      %163 = arith.subf %6, %159 : vector<24x128xf32>
      %164 = math.sqrt %163 : vector<24x128xf32>
      %165 = arith.addf %162, %164 : vector<24x128xf32>
      %cst_44 = arith.constant 5.000000e-01 : f32
      %166 = vector.broadcast %cst_44 : f32 to vector<24x128xf32>
      %167 = arith.mulf %166, %165 : vector<24x128xf32>
      %168 = arith.cmpf oge, %159, %5 : vector<24x128xf32>
      %169 = arith.select %168, %161, %167 : vector<24x128xi1>, vector<24x128xf32>
      %170 = arith.minimumf %151, %169 : vector<24x128xf32>
      %c1_i32_45 = arith.constant 1 : i32
      %171 = tpu.dynamic_rotate %170 by %c1_i32_45 dim 0 : vector<24x128xf32>, i32 -> vector<24x128xf32>
      %c23_i32_46 = arith.constant 23 : i32
      %172 = tpu.dynamic_rotate %170 by %c23_i32_46 dim 0 : vector<24x128xf32>, i32 -> vector<24x128xf32>
      %c1_i32_47 = arith.constant 1 : i32
      %173 = tpu.dynamic_rotate %170 by %c1_i32_47 dim 1 : vector<24x128xf32>, i32 -> vector<24x128xf32>
      %c127_i32_48 = arith.constant 127 : i32
      %174 = tpu.dynamic_rotate %170 by %c127_i32_48 dim 1 : vector<24x128xf32>, i32 -> vector<24x128xf32>
      %175 = arith.minimumf %171, %172 : vector<24x128xf32>
      %176 = arith.minimumf %173, %174 : vector<24x128xf32>
      %177 = arith.subf %175, %176 : vector<24x128xf32>
      %178 = arith.mulf %177, %177 : vector<24x128xf32>
      %179 = arith.minimumf %175, %176 : vector<24x128xf32>
      %180 = arith.addf %179, %4 : vector<24x128xf32>
      %181 = arith.addf %175, %176 : vector<24x128xf32>
      %182 = arith.subf %6, %178 : vector<24x128xf32>
      %183 = math.sqrt %182 : vector<24x128xf32>
      %184 = arith.addf %181, %183 : vector<24x128xf32>
      %cst_49 = arith.constant 5.000000e-01 : f32
      %185 = vector.broadcast %cst_49 : f32 to vector<24x128xf32>
      %186 = arith.mulf %185, %184 : vector<24x128xf32>
      %187 = arith.cmpf oge, %178, %5 : vector<24x128xf32>
      %188 = arith.select %187, %180, %186 : vector<24x128xi1>, vector<24x128xf32>
      %189 = arith.minimumf %170, %188 : vector<24x128xf32>
      %c1_i32_50 = arith.constant 1 : i32
      %190 = tpu.dynamic_rotate %189 by %c1_i32_50 dim 0 : vector<24x128xf32>, i32 -> vector<24x128xf32>
      %c23_i32_51 = arith.constant 23 : i32
      %191 = tpu.dynamic_rotate %189 by %c23_i32_51 dim 0 : vector<24x128xf32>, i32 -> vector<24x128xf32>
      %c1_i32_52 = arith.constant 1 : i32
      %192 = tpu.dynamic_rotate %189 by %c1_i32_52 dim 1 : vector<24x128xf32>, i32 -> vector<24x128xf32>
      %c127_i32_53 = arith.constant 127 : i32
      %193 = tpu.dynamic_rotate %189 by %c127_i32_53 dim 1 : vector<24x128xf32>, i32 -> vector<24x128xf32>
      %194 = arith.minimumf %190, %191 : vector<24x128xf32>
      %195 = arith.minimumf %192, %193 : vector<24x128xf32>
      %196 = arith.subf %194, %195 : vector<24x128xf32>
      %197 = arith.mulf %196, %196 : vector<24x128xf32>
      %198 = arith.minimumf %194, %195 : vector<24x128xf32>
      %199 = arith.addf %198, %4 : vector<24x128xf32>
      %200 = arith.addf %194, %195 : vector<24x128xf32>
      %201 = arith.subf %6, %197 : vector<24x128xf32>
      %202 = math.sqrt %201 : vector<24x128xf32>
      %203 = arith.addf %200, %202 : vector<24x128xf32>
      %cst_54 = arith.constant 5.000000e-01 : f32
      %204 = vector.broadcast %cst_54 : f32 to vector<24x128xf32>
      %205 = arith.mulf %204, %203 : vector<24x128xf32>
      %206 = arith.cmpf oge, %197, %5 : vector<24x128xf32>
      %207 = arith.select %206, %199, %205 : vector<24x128xi1>, vector<24x128xf32>
      %208 = arith.minimumf %189, %207 : vector<24x128xf32>
      %c1_i32_55 = arith.constant 1 : i32
      %209 = tpu.dynamic_rotate %208 by %c1_i32_55 dim 0 : vector<24x128xf32>, i32 -> vector<24x128xf32>
      %c23_i32_56 = arith.constant 23 : i32
      %210 = tpu.dynamic_rotate %208 by %c23_i32_56 dim 0 : vector<24x128xf32>, i32 -> vector<24x128xf32>
      %c1_i32_57 = arith.constant 1 : i32
      %211 = tpu.dynamic_rotate %208 by %c1_i32_57 dim 1 : vector<24x128xf32>, i32 -> vector<24x128xf32>
      %c127_i32_58 = arith.constant 127 : i32
      %212 = tpu.dynamic_rotate %208 by %c127_i32_58 dim 1 : vector<24x128xf32>, i32 -> vector<24x128xf32>
      %213 = arith.minimumf %209, %210 : vector<24x128xf32>
      %214 = arith.minimumf %211, %212 : vector<24x128xf32>
      %215 = arith.subf %213, %214 : vector<24x128xf32>
      %216 = arith.mulf %215, %215 : vector<24x128xf32>
      %217 = arith.minimumf %213, %214 : vector<24x128xf32>
      %218 = arith.addf %217, %4 : vector<24x128xf32>
      %219 = arith.addf %213, %214 : vector<24x128xf32>
      %220 = arith.subf %6, %216 : vector<24x128xf32>
      %221 = math.sqrt %220 : vector<24x128xf32>
      %222 = arith.addf %219, %221 : vector<24x128xf32>
      %cst_59 = arith.constant 5.000000e-01 : f32
      %223 = vector.broadcast %cst_59 : f32 to vector<24x128xf32>
      %224 = arith.mulf %223, %222 : vector<24x128xf32>
      %225 = arith.cmpf oge, %216, %5 : vector<24x128xf32>
      %226 = arith.select %225, %218, %224 : vector<24x128xi1>, vector<24x128xf32>
      %227 = arith.minimumf %208, %226 : vector<24x128xf32>
      %c1_i32_60 = arith.constant 1 : i32
      %228 = tpu.dynamic_rotate %227 by %c1_i32_60 dim 0 : vector<24x128xf32>, i32 -> vector<24x128xf32>
      %c23_i32_61 = arith.constant 23 : i32
      %229 = tpu.dynamic_rotate %227 by %c23_i32_61 dim 0 : vector<24x128xf32>, i32 -> vector<24x128xf32>
      %c1_i32_62 = arith.constant 1 : i32
      %230 = tpu.dynamic_rotate %227 by %c1_i32_62 dim 1 : vector<24x128xf32>, i32 -> vector<24x128xf32>
      %c127_i32_63 = arith.constant 127 : i32
      %231 = tpu.dynamic_rotate %227 by %c127_i32_63 dim 1 : vector<24x128xf32>, i32 -> vector<24x128xf32>
      %232 = arith.minimumf %228, %229 : vector<24x128xf32>
      %233 = arith.minimumf %230, %231 : vector<24x128xf32>
      %234 = arith.subf %232, %233 : vector<24x128xf32>
      %235 = arith.mulf %234, %234 : vector<24x128xf32>
      %236 = arith.minimumf %232, %233 : vector<24x128xf32>
      %237 = arith.addf %236, %4 : vector<24x128xf32>
      %238 = arith.addf %232, %233 : vector<24x128xf32>
      %239 = arith.subf %6, %235 : vector<24x128xf32>
      %240 = math.sqrt %239 : vector<24x128xf32>
      %241 = arith.addf %238, %240 : vector<24x128xf32>
      %cst_64 = arith.constant 5.000000e-01 : f32
      %242 = vector.broadcast %cst_64 : f32 to vector<24x128xf32>
      %243 = arith.mulf %242, %241 : vector<24x128xf32>
      %244 = arith.cmpf oge, %235, %5 : vector<24x128xf32>
      %245 = arith.select %244, %237, %243 : vector<24x128xi1>, vector<24x128xf32>
      %246 = arith.minimumf %227, %245 : vector<24x128xf32>
      %c1_i32_65 = arith.constant 1 : i32
      %247 = tpu.dynamic_rotate %246 by %c1_i32_65 dim 0 : vector<24x128xf32>, i32 -> vector<24x128xf32>
      %c23_i32_66 = arith.constant 23 : i32
      %248 = tpu.dynamic_rotate %246 by %c23_i32_66 dim 0 : vector<24x128xf32>, i32 -> vector<24x128xf32>
      %c1_i32_67 = arith.constant 1 : i32
      %249 = tpu.dynamic_rotate %246 by %c1_i32_67 dim 1 : vector<24x128xf32>, i32 -> vector<24x128xf32>
      %c127_i32_68 = arith.constant 127 : i32
      %250 = tpu.dynamic_rotate %246 by %c127_i32_68 dim 1 : vector<24x128xf32>, i32 -> vector<24x128xf32>
      %251 = arith.minimumf %247, %248 : vector<24x128xf32>
      %252 = arith.minimumf %249, %250 : vector<24x128xf32>
      %253 = arith.subf %251, %252 : vector<24x128xf32>
      %254 = arith.mulf %253, %253 : vector<24x128xf32>
      %255 = arith.minimumf %251, %252 : vector<24x128xf32>
      %256 = arith.addf %255, %4 : vector<24x128xf32>
      %257 = arith.addf %251, %252 : vector<24x128xf32>
      %258 = arith.subf %6, %254 : vector<24x128xf32>
      %259 = math.sqrt %258 : vector<24x128xf32>
      %260 = arith.addf %257, %259 : vector<24x128xf32>
      %cst_69 = arith.constant 5.000000e-01 : f32
      %261 = vector.broadcast %cst_69 : f32 to vector<24x128xf32>
      %262 = arith.mulf %261, %260 : vector<24x128xf32>
      %263 = arith.cmpf oge, %254, %5 : vector<24x128xf32>
      %264 = arith.select %263, %256, %262 : vector<24x128xi1>, vector<24x128xf32>
      %265 = arith.minimumf %246, %264 : vector<24x128xf32>
      %c1_i32_70 = arith.constant 1 : i32
      %266 = tpu.dynamic_rotate %265 by %c1_i32_70 dim 0 : vector<24x128xf32>, i32 -> vector<24x128xf32>
      %c23_i32_71 = arith.constant 23 : i32
      %267 = tpu.dynamic_rotate %265 by %c23_i32_71 dim 0 : vector<24x128xf32>, i32 -> vector<24x128xf32>
      %c1_i32_72 = arith.constant 1 : i32
      %268 = tpu.dynamic_rotate %265 by %c1_i32_72 dim 1 : vector<24x128xf32>, i32 -> vector<24x128xf32>
      %c127_i32_73 = arith.constant 127 : i32
      %269 = tpu.dynamic_rotate %265 by %c127_i32_73 dim 1 : vector<24x128xf32>, i32 -> vector<24x128xf32>
      %270 = arith.minimumf %266, %267 : vector<24x128xf32>
      %271 = arith.minimumf %268, %269 : vector<24x128xf32>
      %272 = arith.subf %270, %271 : vector<24x128xf32>
      %273 = arith.mulf %272, %272 : vector<24x128xf32>
      %274 = arith.minimumf %270, %271 : vector<24x128xf32>
      %275 = arith.addf %274, %4 : vector<24x128xf32>
      %276 = arith.addf %270, %271 : vector<24x128xf32>
      %277 = arith.subf %6, %273 : vector<24x128xf32>
      %278 = math.sqrt %277 : vector<24x128xf32>
      %279 = arith.addf %276, %278 : vector<24x128xf32>
      %cst_74 = arith.constant 5.000000e-01 : f32
      %280 = vector.broadcast %cst_74 : f32 to vector<24x128xf32>
      %281 = arith.mulf %280, %279 : vector<24x128xf32>
      %282 = arith.cmpf oge, %273, %5 : vector<24x128xf32>
      %283 = arith.select %282, %275, %281 : vector<24x128xi1>, vector<24x128xf32>
      %284 = arith.minimumf %265, %283 : vector<24x128xf32>
      %c1_i32_75 = arith.constant 1 : i32
      %285 = tpu.dynamic_rotate %284 by %c1_i32_75 dim 0 : vector<24x128xf32>, i32 -> vector<24x128xf32>
      %c23_i32_76 = arith.constant 23 : i32
      %286 = tpu.dynamic_rotate %284 by %c23_i32_76 dim 0 : vector<24x128xf32>, i32 -> vector<24x128xf32>
      %c1_i32_77 = arith.constant 1 : i32
      %287 = tpu.dynamic_rotate %284 by %c1_i32_77 dim 1 : vector<24x128xf32>, i32 -> vector<24x128xf32>
      %c127_i32_78 = arith.constant 127 : i32
      %288 = tpu.dynamic_rotate %284 by %c127_i32_78 dim 1 : vector<24x128xf32>, i32 -> vector<24x128xf32>
      %289 = arith.minimumf %285, %286 : vector<24x128xf32>
      %290 = arith.minimumf %287, %288 : vector<24x128xf32>
      %291 = arith.subf %289, %290 : vector<24x128xf32>
      %292 = arith.mulf %291, %291 : vector<24x128xf32>
      %293 = arith.minimumf %289, %290 : vector<24x128xf32>
      %294 = arith.addf %293, %4 : vector<24x128xf32>
      %295 = arith.addf %289, %290 : vector<24x128xf32>
      %296 = arith.subf %6, %292 : vector<24x128xf32>
      %297 = math.sqrt %296 : vector<24x128xf32>
      %298 = arith.addf %295, %297 : vector<24x128xf32>
      %cst_79 = arith.constant 5.000000e-01 : f32
      %299 = vector.broadcast %cst_79 : f32 to vector<24x128xf32>
      %300 = arith.mulf %299, %298 : vector<24x128xf32>
      %301 = arith.cmpf oge, %292, %5 : vector<24x128xf32>
      %302 = arith.select %301, %294, %300 : vector<24x128xi1>, vector<24x128xf32>
      %303 = arith.minimumf %284, %302 : vector<24x128xf32>
      %c1_i32_80 = arith.constant 1 : i32
      %304 = tpu.dynamic_rotate %303 by %c1_i32_80 dim 0 : vector<24x128xf32>, i32 -> vector<24x128xf32>
      %c23_i32_81 = arith.constant 23 : i32
      %305 = tpu.dynamic_rotate %303 by %c23_i32_81 dim 0 : vector<24x128xf32>, i32 -> vector<24x128xf32>
      %c1_i32_82 = arith.constant 1 : i32
      %306 = tpu.dynamic_rotate %303 by %c1_i32_82 dim 1 : vector<24x128xf32>, i32 -> vector<24x128xf32>
      %c127_i32_83 = arith.constant 127 : i32
      %307 = tpu.dynamic_rotate %303 by %c127_i32_83 dim 1 : vector<24x128xf32>, i32 -> vector<24x128xf32>
      %308 = arith.minimumf %304, %305 : vector<24x128xf32>
      %309 = arith.minimumf %306, %307 : vector<24x128xf32>
      %310 = arith.subf %308, %309 : vector<24x128xf32>
      %311 = arith.mulf %310, %310 : vector<24x128xf32>
      %312 = arith.minimumf %308, %309 : vector<24x128xf32>
      %313 = arith.addf %312, %4 : vector<24x128xf32>
      %314 = arith.addf %308, %309 : vector<24x128xf32>
      %315 = arith.subf %6, %311 : vector<24x128xf32>
      %316 = math.sqrt %315 : vector<24x128xf32>
      %317 = arith.addf %314, %316 : vector<24x128xf32>
      %cst_84 = arith.constant 5.000000e-01 : f32
      %318 = vector.broadcast %cst_84 : f32 to vector<24x128xf32>
      %319 = arith.mulf %318, %317 : vector<24x128xf32>
      %320 = arith.cmpf oge, %311, %5 : vector<24x128xf32>
      %321 = arith.select %320, %313, %319 : vector<24x128xi1>, vector<24x128xf32>
      %322 = arith.minimumf %303, %321 : vector<24x128xf32>
      %c1_i32_85 = arith.constant 1 : i32
      %323 = tpu.dynamic_rotate %322 by %c1_i32_85 dim 0 : vector<24x128xf32>, i32 -> vector<24x128xf32>
      %c23_i32_86 = arith.constant 23 : i32
      %324 = tpu.dynamic_rotate %322 by %c23_i32_86 dim 0 : vector<24x128xf32>, i32 -> vector<24x128xf32>
      %c1_i32_87 = arith.constant 1 : i32
      %325 = tpu.dynamic_rotate %322 by %c1_i32_87 dim 1 : vector<24x128xf32>, i32 -> vector<24x128xf32>
      %c127_i32_88 = arith.constant 127 : i32
      %326 = tpu.dynamic_rotate %322 by %c127_i32_88 dim 1 : vector<24x128xf32>, i32 -> vector<24x128xf32>
      %327 = arith.minimumf %323, %324 : vector<24x128xf32>
      %328 = arith.minimumf %325, %326 : vector<24x128xf32>
      %329 = arith.subf %327, %328 : vector<24x128xf32>
      %330 = arith.mulf %329, %329 : vector<24x128xf32>
      %331 = arith.minimumf %327, %328 : vector<24x128xf32>
      %332 = arith.addf %331, %4 : vector<24x128xf32>
      %333 = arith.addf %327, %328 : vector<24x128xf32>
      %334 = arith.subf %6, %330 : vector<24x128xf32>
      %335 = math.sqrt %334 : vector<24x128xf32>
      %336 = arith.addf %333, %335 : vector<24x128xf32>
      %cst_89 = arith.constant 5.000000e-01 : f32
      %337 = vector.broadcast %cst_89 : f32 to vector<24x128xf32>
      %338 = arith.mulf %337, %336 : vector<24x128xf32>
      %339 = arith.cmpf oge, %330, %5 : vector<24x128xf32>
      %340 = arith.select %339, %332, %338 : vector<24x128xi1>, vector<24x128xf32>
      %341 = arith.minimumf %322, %340 : vector<24x128xf32>
      %c1_i32_90 = arith.constant 1 : i32
      %342 = tpu.dynamic_rotate %341 by %c1_i32_90 dim 0 : vector<24x128xf32>, i32 -> vector<24x128xf32>
      %c23_i32_91 = arith.constant 23 : i32
      %343 = tpu.dynamic_rotate %341 by %c23_i32_91 dim 0 : vector<24x128xf32>, i32 -> vector<24x128xf32>
      %c1_i32_92 = arith.constant 1 : i32
      %344 = tpu.dynamic_rotate %341 by %c1_i32_92 dim 1 : vector<24x128xf32>, i32 -> vector<24x128xf32>
      %c127_i32_93 = arith.constant 127 : i32
      %345 = tpu.dynamic_rotate %341 by %c127_i32_93 dim 1 : vector<24x128xf32>, i32 -> vector<24x128xf32>
      %346 = arith.minimumf %342, %343 : vector<24x128xf32>
      %347 = arith.minimumf %344, %345 : vector<24x128xf32>
      %348 = arith.subf %346, %347 : vector<24x128xf32>
      %349 = arith.mulf %348, %348 : vector<24x128xf32>
      %350 = arith.minimumf %346, %347 : vector<24x128xf32>
      %351 = arith.addf %350, %4 : vector<24x128xf32>
      %352 = arith.addf %346, %347 : vector<24x128xf32>
      %353 = arith.subf %6, %349 : vector<24x128xf32>
      %354 = math.sqrt %353 : vector<24x128xf32>
      %355 = arith.addf %352, %354 : vector<24x128xf32>
      %cst_94 = arith.constant 5.000000e-01 : f32
      %356 = vector.broadcast %cst_94 : f32 to vector<24x128xf32>
      %357 = arith.mulf %356, %355 : vector<24x128xf32>
      %358 = arith.cmpf oge, %349, %5 : vector<24x128xf32>
      %359 = arith.select %358, %351, %357 : vector<24x128xi1>, vector<24x128xf32>
      %360 = arith.minimumf %341, %359 : vector<24x128xf32>
      %c1_i32_95 = arith.constant 1 : i32
      %361 = tpu.dynamic_rotate %360 by %c1_i32_95 dim 0 : vector<24x128xf32>, i32 -> vector<24x128xf32>
      %c23_i32_96 = arith.constant 23 : i32
      %362 = tpu.dynamic_rotate %360 by %c23_i32_96 dim 0 : vector<24x128xf32>, i32 -> vector<24x128xf32>
      %c1_i32_97 = arith.constant 1 : i32
      %363 = tpu.dynamic_rotate %360 by %c1_i32_97 dim 1 : vector<24x128xf32>, i32 -> vector<24x128xf32>
      %c127_i32_98 = arith.constant 127 : i32
      %364 = tpu.dynamic_rotate %360 by %c127_i32_98 dim 1 : vector<24x128xf32>, i32 -> vector<24x128xf32>
      %365 = arith.minimumf %361, %362 : vector<24x128xf32>
      %366 = arith.minimumf %363, %364 : vector<24x128xf32>
      %367 = arith.subf %365, %366 : vector<24x128xf32>
      %368 = arith.mulf %367, %367 : vector<24x128xf32>
      %369 = arith.minimumf %365, %366 : vector<24x128xf32>
      %370 = arith.addf %369, %4 : vector<24x128xf32>
      %371 = arith.addf %365, %366 : vector<24x128xf32>
      %372 = arith.subf %6, %368 : vector<24x128xf32>
      %373 = math.sqrt %372 : vector<24x128xf32>
      %374 = arith.addf %371, %373 : vector<24x128xf32>
      %cst_99 = arith.constant 5.000000e-01 : f32
      %375 = vector.broadcast %cst_99 : f32 to vector<24x128xf32>
      %376 = arith.mulf %375, %374 : vector<24x128xf32>
      %377 = arith.cmpf oge, %368, %5 : vector<24x128xf32>
      %378 = arith.select %377, %370, %376 : vector<24x128xi1>, vector<24x128xf32>
      %379 = arith.minimumf %360, %378 : vector<24x128xf32>
      %c1_i32_100 = arith.constant 1 : i32
      %380 = tpu.dynamic_rotate %379 by %c1_i32_100 dim 0 : vector<24x128xf32>, i32 -> vector<24x128xf32>
      %c23_i32_101 = arith.constant 23 : i32
      %381 = tpu.dynamic_rotate %379 by %c23_i32_101 dim 0 : vector<24x128xf32>, i32 -> vector<24x128xf32>
      %c1_i32_102 = arith.constant 1 : i32
      %382 = tpu.dynamic_rotate %379 by %c1_i32_102 dim 1 : vector<24x128xf32>, i32 -> vector<24x128xf32>
      %c127_i32_103 = arith.constant 127 : i32
      %383 = tpu.dynamic_rotate %379 by %c127_i32_103 dim 1 : vector<24x128xf32>, i32 -> vector<24x128xf32>
      %384 = arith.minimumf %380, %381 : vector<24x128xf32>
      %385 = arith.minimumf %382, %383 : vector<24x128xf32>
      %386 = arith.subf %384, %385 : vector<24x128xf32>
      %387 = arith.mulf %386, %386 : vector<24x128xf32>
      %388 = arith.minimumf %384, %385 : vector<24x128xf32>
      %389 = arith.addf %388, %4 : vector<24x128xf32>
      %390 = arith.addf %384, %385 : vector<24x128xf32>
      %391 = arith.subf %6, %387 : vector<24x128xf32>
      %392 = math.sqrt %391 : vector<24x128xf32>
      %393 = arith.addf %390, %392 : vector<24x128xf32>
      %cst_104 = arith.constant 5.000000e-01 : f32
      %394 = vector.broadcast %cst_104 : f32 to vector<24x128xf32>
      %395 = arith.mulf %394, %393 : vector<24x128xf32>
      %396 = arith.cmpf oge, %387, %5 : vector<24x128xf32>
      %397 = arith.select %396, %389, %395 : vector<24x128xi1>, vector<24x128xf32>
      %398 = arith.minimumf %379, %397 : vector<24x128xf32>
      %c1_i32_105 = arith.constant 1 : i32
      %399 = tpu.dynamic_rotate %398 by %c1_i32_105 dim 0 : vector<24x128xf32>, i32 -> vector<24x128xf32>
      %c23_i32_106 = arith.constant 23 : i32
      %400 = tpu.dynamic_rotate %398 by %c23_i32_106 dim 0 : vector<24x128xf32>, i32 -> vector<24x128xf32>
      %c1_i32_107 = arith.constant 1 : i32
      %401 = tpu.dynamic_rotate %398 by %c1_i32_107 dim 1 : vector<24x128xf32>, i32 -> vector<24x128xf32>
      %c127_i32_108 = arith.constant 127 : i32
      %402 = tpu.dynamic_rotate %398 by %c127_i32_108 dim 1 : vector<24x128xf32>, i32 -> vector<24x128xf32>
      %403 = arith.minimumf %399, %400 : vector<24x128xf32>
      %404 = arith.minimumf %401, %402 : vector<24x128xf32>
      %405 = arith.subf %403, %404 : vector<24x128xf32>
      %406 = arith.mulf %405, %405 : vector<24x128xf32>
      %407 = arith.minimumf %403, %404 : vector<24x128xf32>
      %408 = arith.addf %407, %4 : vector<24x128xf32>
      %409 = arith.addf %403, %404 : vector<24x128xf32>
      %410 = arith.subf %6, %406 : vector<24x128xf32>
      %411 = math.sqrt %410 : vector<24x128xf32>
      %412 = arith.addf %409, %411 : vector<24x128xf32>
      %cst_109 = arith.constant 5.000000e-01 : f32
      %413 = vector.broadcast %cst_109 : f32 to vector<24x128xf32>
      %414 = arith.mulf %413, %412 : vector<24x128xf32>
      %415 = arith.cmpf oge, %406, %5 : vector<24x128xf32>
      %416 = arith.select %415, %408, %414 : vector<24x128xi1>, vector<24x128xf32>
      %417 = arith.minimumf %398, %416 : vector<24x128xf32>
      %c1_i32_110 = arith.constant 1 : i32
      %418 = tpu.dynamic_rotate %417 by %c1_i32_110 dim 0 : vector<24x128xf32>, i32 -> vector<24x128xf32>
      %c23_i32_111 = arith.constant 23 : i32
      %419 = tpu.dynamic_rotate %417 by %c23_i32_111 dim 0 : vector<24x128xf32>, i32 -> vector<24x128xf32>
      %c1_i32_112 = arith.constant 1 : i32
      %420 = tpu.dynamic_rotate %417 by %c1_i32_112 dim 1 : vector<24x128xf32>, i32 -> vector<24x128xf32>
      %c127_i32_113 = arith.constant 127 : i32
      %421 = tpu.dynamic_rotate %417 by %c127_i32_113 dim 1 : vector<24x128xf32>, i32 -> vector<24x128xf32>
      %422 = arith.minimumf %418, %419 : vector<24x128xf32>
      %423 = arith.minimumf %420, %421 : vector<24x128xf32>
      %424 = arith.subf %422, %423 : vector<24x128xf32>
      %425 = arith.mulf %424, %424 : vector<24x128xf32>
      %426 = arith.minimumf %422, %423 : vector<24x128xf32>
      %427 = arith.addf %426, %4 : vector<24x128xf32>
      %428 = arith.addf %422, %423 : vector<24x128xf32>
      %429 = arith.subf %6, %425 : vector<24x128xf32>
      %430 = math.sqrt %429 : vector<24x128xf32>
      %431 = arith.addf %428, %430 : vector<24x128xf32>
      %cst_114 = arith.constant 5.000000e-01 : f32
      %432 = vector.broadcast %cst_114 : f32 to vector<24x128xf32>
      %433 = arith.mulf %432, %431 : vector<24x128xf32>
      %434 = arith.cmpf oge, %425, %5 : vector<24x128xf32>
      %435 = arith.select %434, %427, %433 : vector<24x128xi1>, vector<24x128xf32>
      %436 = arith.minimumf %417, %435 : vector<24x128xf32>
      %c1_i32_115 = arith.constant 1 : i32
      %437 = tpu.dynamic_rotate %436 by %c1_i32_115 dim 0 : vector<24x128xf32>, i32 -> vector<24x128xf32>
      %c23_i32_116 = arith.constant 23 : i32
      %438 = tpu.dynamic_rotate %436 by %c23_i32_116 dim 0 : vector<24x128xf32>, i32 -> vector<24x128xf32>
      %c1_i32_117 = arith.constant 1 : i32
      %439 = tpu.dynamic_rotate %436 by %c1_i32_117 dim 1 : vector<24x128xf32>, i32 -> vector<24x128xf32>
      %c127_i32_118 = arith.constant 127 : i32
      %440 = tpu.dynamic_rotate %436 by %c127_i32_118 dim 1 : vector<24x128xf32>, i32 -> vector<24x128xf32>
      %441 = arith.minimumf %437, %438 : vector<24x128xf32>
      %442 = arith.minimumf %439, %440 : vector<24x128xf32>
      %443 = arith.subf %441, %442 : vector<24x128xf32>
      %444 = arith.mulf %443, %443 : vector<24x128xf32>
      %445 = arith.minimumf %441, %442 : vector<24x128xf32>
      %446 = arith.addf %445, %4 : vector<24x128xf32>
      %447 = arith.addf %441, %442 : vector<24x128xf32>
      %448 = arith.subf %6, %444 : vector<24x128xf32>
      %449 = math.sqrt %448 : vector<24x128xf32>
      %450 = arith.addf %447, %449 : vector<24x128xf32>
      %cst_119 = arith.constant 5.000000e-01 : f32
      %451 = vector.broadcast %cst_119 : f32 to vector<24x128xf32>
      %452 = arith.mulf %451, %450 : vector<24x128xf32>
      %453 = arith.cmpf oge, %444, %5 : vector<24x128xf32>
      %454 = arith.select %453, %446, %452 : vector<24x128xi1>, vector<24x128xf32>
      %455 = arith.minimumf %436, %454 : vector<24x128xf32>
      %c1_i32_120 = arith.constant 1 : i32
      %456 = tpu.dynamic_rotate %455 by %c1_i32_120 dim 0 : vector<24x128xf32>, i32 -> vector<24x128xf32>
      %c23_i32_121 = arith.constant 23 : i32
      %457 = tpu.dynamic_rotate %455 by %c23_i32_121 dim 0 : vector<24x128xf32>, i32 -> vector<24x128xf32>
      %c1_i32_122 = arith.constant 1 : i32
      %458 = tpu.dynamic_rotate %455 by %c1_i32_122 dim 1 : vector<24x128xf32>, i32 -> vector<24x128xf32>
      %c127_i32_123 = arith.constant 127 : i32
      %459 = tpu.dynamic_rotate %455 by %c127_i32_123 dim 1 : vector<24x128xf32>, i32 -> vector<24x128xf32>
      %460 = arith.minimumf %456, %457 : vector<24x128xf32>
      %461 = arith.minimumf %458, %459 : vector<24x128xf32>
      %462 = arith.subf %460, %461 : vector<24x128xf32>
      %463 = arith.mulf %462, %462 : vector<24x128xf32>
      %464 = arith.minimumf %460, %461 : vector<24x128xf32>
      %465 = arith.addf %464, %4 : vector<24x128xf32>
      %466 = arith.addf %460, %461 : vector<24x128xf32>
      %467 = arith.subf %6, %463 : vector<24x128xf32>
      %468 = math.sqrt %467 : vector<24x128xf32>
      %469 = arith.addf %466, %468 : vector<24x128xf32>
      %cst_124 = arith.constant 5.000000e-01 : f32
      %470 = vector.broadcast %cst_124 : f32 to vector<24x128xf32>
      %471 = arith.mulf %470, %469 : vector<24x128xf32>
      %472 = arith.cmpf oge, %463, %5 : vector<24x128xf32>
      %473 = arith.select %472, %465, %471 : vector<24x128xi1>, vector<24x128xf32>
      %474 = arith.minimumf %455, %473 : vector<24x128xf32>
      %c1_i32_125 = arith.constant 1 : i32
      %475 = tpu.dynamic_rotate %474 by %c1_i32_125 dim 0 : vector<24x128xf32>, i32 -> vector<24x128xf32>
      %c23_i32_126 = arith.constant 23 : i32
      %476 = tpu.dynamic_rotate %474 by %c23_i32_126 dim 0 : vector<24x128xf32>, i32 -> vector<24x128xf32>
      %c1_i32_127 = arith.constant 1 : i32
      %477 = tpu.dynamic_rotate %474 by %c1_i32_127 dim 1 : vector<24x128xf32>, i32 -> vector<24x128xf32>
      %c127_i32_128 = arith.constant 127 : i32
      %478 = tpu.dynamic_rotate %474 by %c127_i32_128 dim 1 : vector<24x128xf32>, i32 -> vector<24x128xf32>
      %479 = arith.minimumf %475, %476 : vector<24x128xf32>
      %480 = arith.minimumf %477, %478 : vector<24x128xf32>
      %481 = arith.subf %479, %480 : vector<24x128xf32>
      %482 = arith.mulf %481, %481 : vector<24x128xf32>
      %483 = arith.minimumf %479, %480 : vector<24x128xf32>
      %484 = arith.addf %483, %4 : vector<24x128xf32>
      %485 = arith.addf %479, %480 : vector<24x128xf32>
      %486 = arith.subf %6, %482 : vector<24x128xf32>
      %487 = math.sqrt %486 : vector<24x128xf32>
      %488 = arith.addf %485, %487 : vector<24x128xf32>
      %cst_129 = arith.constant 5.000000e-01 : f32
      %489 = vector.broadcast %cst_129 : f32 to vector<24x128xf32>
      %490 = arith.mulf %489, %488 : vector<24x128xf32>
      %491 = arith.cmpf oge, %482, %5 : vector<24x128xf32>
      %492 = arith.select %491, %484, %490 : vector<24x128xi1>, vector<24x128xf32>
      %493 = arith.minimumf %474, %492 : vector<24x128xf32>
      %c1_i32_130 = arith.constant 1 : i32
      %494 = tpu.dynamic_rotate %493 by %c1_i32_130 dim 0 : vector<24x128xf32>, i32 -> vector<24x128xf32>
      %c23_i32_131 = arith.constant 23 : i32
      %495 = tpu.dynamic_rotate %493 by %c23_i32_131 dim 0 : vector<24x128xf32>, i32 -> vector<24x128xf32>
      %c1_i32_132 = arith.constant 1 : i32
      %496 = tpu.dynamic_rotate %493 by %c1_i32_132 dim 1 : vector<24x128xf32>, i32 -> vector<24x128xf32>
      %c127_i32_133 = arith.constant 127 : i32
      %497 = tpu.dynamic_rotate %493 by %c127_i32_133 dim 1 : vector<24x128xf32>, i32 -> vector<24x128xf32>
      %498 = arith.minimumf %494, %495 : vector<24x128xf32>
      %499 = arith.minimumf %496, %497 : vector<24x128xf32>
      %500 = arith.subf %498, %499 : vector<24x128xf32>
      %501 = arith.mulf %500, %500 : vector<24x128xf32>
      %502 = arith.minimumf %498, %499 : vector<24x128xf32>
      %503 = arith.addf %502, %4 : vector<24x128xf32>
      %504 = arith.addf %498, %499 : vector<24x128xf32>
      %505 = arith.subf %6, %501 : vector<24x128xf32>
      %506 = math.sqrt %505 : vector<24x128xf32>
      %507 = arith.addf %504, %506 : vector<24x128xf32>
      %cst_134 = arith.constant 5.000000e-01 : f32
      %508 = vector.broadcast %cst_134 : f32 to vector<24x128xf32>
      %509 = arith.mulf %508, %507 : vector<24x128xf32>
      %510 = arith.cmpf oge, %501, %5 : vector<24x128xf32>
      %511 = arith.select %510, %503, %509 : vector<24x128xi1>, vector<24x128xf32>
      %512 = arith.minimumf %493, %511 : vector<24x128xf32>
      %c1_i32_135 = arith.constant 1 : i32
      %513 = tpu.dynamic_rotate %512 by %c1_i32_135 dim 0 : vector<24x128xf32>, i32 -> vector<24x128xf32>
      %c23_i32_136 = arith.constant 23 : i32
      %514 = tpu.dynamic_rotate %512 by %c23_i32_136 dim 0 : vector<24x128xf32>, i32 -> vector<24x128xf32>
      %c1_i32_137 = arith.constant 1 : i32
      %515 = tpu.dynamic_rotate %512 by %c1_i32_137 dim 1 : vector<24x128xf32>, i32 -> vector<24x128xf32>
      %c127_i32_138 = arith.constant 127 : i32
      %516 = tpu.dynamic_rotate %512 by %c127_i32_138 dim 1 : vector<24x128xf32>, i32 -> vector<24x128xf32>
      %517 = arith.minimumf %513, %514 : vector<24x128xf32>
      %518 = arith.minimumf %515, %516 : vector<24x128xf32>
      %519 = arith.subf %517, %518 : vector<24x128xf32>
      %520 = arith.mulf %519, %519 : vector<24x128xf32>
      %521 = arith.minimumf %517, %518 : vector<24x128xf32>
      %522 = arith.addf %521, %4 : vector<24x128xf32>
      %523 = arith.addf %517, %518 : vector<24x128xf32>
      %524 = arith.subf %6, %520 : vector<24x128xf32>
      %525 = math.sqrt %524 : vector<24x128xf32>
      %526 = arith.addf %523, %525 : vector<24x128xf32>
      %cst_139 = arith.constant 5.000000e-01 : f32
      %527 = vector.broadcast %cst_139 : f32 to vector<24x128xf32>
      %528 = arith.mulf %527, %526 : vector<24x128xf32>
      %529 = arith.cmpf oge, %520, %5 : vector<24x128xf32>
      %530 = arith.select %529, %522, %528 : vector<24x128xi1>, vector<24x128xf32>
      %531 = arith.minimumf %512, %530 : vector<24x128xf32>
      %c1_i32_140 = arith.constant 1 : i32
      %532 = tpu.dynamic_rotate %531 by %c1_i32_140 dim 0 : vector<24x128xf32>, i32 -> vector<24x128xf32>
      %c23_i32_141 = arith.constant 23 : i32
      %533 = tpu.dynamic_rotate %531 by %c23_i32_141 dim 0 : vector<24x128xf32>, i32 -> vector<24x128xf32>
      %c1_i32_142 = arith.constant 1 : i32
      %534 = tpu.dynamic_rotate %531 by %c1_i32_142 dim 1 : vector<24x128xf32>, i32 -> vector<24x128xf32>
      %c127_i32_143 = arith.constant 127 : i32
      %535 = tpu.dynamic_rotate %531 by %c127_i32_143 dim 1 : vector<24x128xf32>, i32 -> vector<24x128xf32>
      %536 = arith.minimumf %532, %533 : vector<24x128xf32>
      %537 = arith.minimumf %534, %535 : vector<24x128xf32>
      %538 = arith.subf %536, %537 : vector<24x128xf32>
      %539 = arith.mulf %538, %538 : vector<24x128xf32>
      %540 = arith.minimumf %536, %537 : vector<24x128xf32>
      %541 = arith.addf %540, %4 : vector<24x128xf32>
      %542 = arith.addf %536, %537 : vector<24x128xf32>
      %543 = arith.subf %6, %539 : vector<24x128xf32>
      %544 = math.sqrt %543 : vector<24x128xf32>
      %545 = arith.addf %542, %544 : vector<24x128xf32>
      %cst_144 = arith.constant 5.000000e-01 : f32
      %546 = vector.broadcast %cst_144 : f32 to vector<24x128xf32>
      %547 = arith.mulf %546, %545 : vector<24x128xf32>
      %548 = arith.cmpf oge, %539, %5 : vector<24x128xf32>
      %549 = arith.select %548, %541, %547 : vector<24x128xi1>, vector<24x128xf32>
      %550 = arith.minimumf %531, %549 : vector<24x128xf32>
      %c1_i32_145 = arith.constant 1 : i32
      %551 = tpu.dynamic_rotate %550 by %c1_i32_145 dim 0 : vector<24x128xf32>, i32 -> vector<24x128xf32>
      %c23_i32_146 = arith.constant 23 : i32
      %552 = tpu.dynamic_rotate %550 by %c23_i32_146 dim 0 : vector<24x128xf32>, i32 -> vector<24x128xf32>
      %c1_i32_147 = arith.constant 1 : i32
      %553 = tpu.dynamic_rotate %550 by %c1_i32_147 dim 1 : vector<24x128xf32>, i32 -> vector<24x128xf32>
      %c127_i32_148 = arith.constant 127 : i32
      %554 = tpu.dynamic_rotate %550 by %c127_i32_148 dim 1 : vector<24x128xf32>, i32 -> vector<24x128xf32>
      %555 = arith.minimumf %551, %552 : vector<24x128xf32>
      %556 = arith.minimumf %553, %554 : vector<24x128xf32>
      %557 = arith.subf %555, %556 : vector<24x128xf32>
      %558 = arith.mulf %557, %557 : vector<24x128xf32>
      %559 = arith.minimumf %555, %556 : vector<24x128xf32>
      %560 = arith.addf %559, %4 : vector<24x128xf32>
      %561 = arith.addf %555, %556 : vector<24x128xf32>
      %562 = arith.subf %6, %558 : vector<24x128xf32>
      %563 = math.sqrt %562 : vector<24x128xf32>
      %564 = arith.addf %561, %563 : vector<24x128xf32>
      %cst_149 = arith.constant 5.000000e-01 : f32
      %565 = vector.broadcast %cst_149 : f32 to vector<24x128xf32>
      %566 = arith.mulf %565, %564 : vector<24x128xf32>
      %567 = arith.cmpf oge, %558, %5 : vector<24x128xf32>
      %568 = arith.select %567, %560, %566 : vector<24x128xi1>, vector<24x128xf32>
      %569 = arith.minimumf %550, %568 : vector<24x128xf32>
      %c1_i32_150 = arith.constant 1 : i32
      %570 = tpu.dynamic_rotate %569 by %c1_i32_150 dim 0 : vector<24x128xf32>, i32 -> vector<24x128xf32>
      %c23_i32_151 = arith.constant 23 : i32
      %571 = tpu.dynamic_rotate %569 by %c23_i32_151 dim 0 : vector<24x128xf32>, i32 -> vector<24x128xf32>
      %c1_i32_152 = arith.constant 1 : i32
      %572 = tpu.dynamic_rotate %569 by %c1_i32_152 dim 1 : vector<24x128xf32>, i32 -> vector<24x128xf32>
      %c127_i32_153 = arith.constant 127 : i32
      %573 = tpu.dynamic_rotate %569 by %c127_i32_153 dim 1 : vector<24x128xf32>, i32 -> vector<24x128xf32>
      %574 = arith.minimumf %570, %571 : vector<24x128xf32>
      %575 = arith.minimumf %572, %573 : vector<24x128xf32>
      %576 = arith.subf %574, %575 : vector<24x128xf32>
      %577 = arith.mulf %576, %576 : vector<24x128xf32>
      %578 = arith.minimumf %574, %575 : vector<24x128xf32>
      %579 = arith.addf %578, %4 : vector<24x128xf32>
      %580 = arith.addf %574, %575 : vector<24x128xf32>
      %581 = arith.subf %6, %577 : vector<24x128xf32>
      %582 = math.sqrt %581 : vector<24x128xf32>
      %583 = arith.addf %580, %582 : vector<24x128xf32>
      %cst_154 = arith.constant 5.000000e-01 : f32
      %584 = vector.broadcast %cst_154 : f32 to vector<24x128xf32>
      %585 = arith.mulf %584, %583 : vector<24x128xf32>
      %586 = arith.cmpf oge, %577, %5 : vector<24x128xf32>
      %587 = arith.select %586, %579, %585 : vector<24x128xi1>, vector<24x128xf32>
      %588 = arith.minimumf %569, %587 : vector<24x128xf32>
      %c1_i32_155 = arith.constant 1 : i32
      %589 = tpu.dynamic_rotate %588 by %c1_i32_155 dim 0 : vector<24x128xf32>, i32 -> vector<24x128xf32>
      %c23_i32_156 = arith.constant 23 : i32
      %590 = tpu.dynamic_rotate %588 by %c23_i32_156 dim 0 : vector<24x128xf32>, i32 -> vector<24x128xf32>
      %c1_i32_157 = arith.constant 1 : i32
      %591 = tpu.dynamic_rotate %588 by %c1_i32_157 dim 1 : vector<24x128xf32>, i32 -> vector<24x128xf32>
      %c127_i32_158 = arith.constant 127 : i32
      %592 = tpu.dynamic_rotate %588 by %c127_i32_158 dim 1 : vector<24x128xf32>, i32 -> vector<24x128xf32>
      %593 = arith.minimumf %589, %590 : vector<24x128xf32>
      %594 = arith.minimumf %591, %592 : vector<24x128xf32>
      %595 = arith.subf %593, %594 : vector<24x128xf32>
      %596 = arith.mulf %595, %595 : vector<24x128xf32>
      %597 = arith.minimumf %593, %594 : vector<24x128xf32>
      %598 = arith.addf %597, %4 : vector<24x128xf32>
      %599 = arith.addf %593, %594 : vector<24x128xf32>
      %600 = arith.subf %6, %596 : vector<24x128xf32>
      %601 = math.sqrt %600 : vector<24x128xf32>
      %602 = arith.addf %599, %601 : vector<24x128xf32>
      %cst_159 = arith.constant 5.000000e-01 : f32
      %603 = vector.broadcast %cst_159 : f32 to vector<24x128xf32>
      %604 = arith.mulf %603, %602 : vector<24x128xf32>
      %605 = arith.cmpf oge, %596, %5 : vector<24x128xf32>
      %606 = arith.select %605, %598, %604 : vector<24x128xi1>, vector<24x128xf32>
      %607 = arith.minimumf %588, %606 : vector<24x128xf32>
      %c1_i32_160 = arith.constant 1 : i32
      %608 = tpu.dynamic_rotate %607 by %c1_i32_160 dim 0 : vector<24x128xf32>, i32 -> vector<24x128xf32>
      %c23_i32_161 = arith.constant 23 : i32
      %609 = tpu.dynamic_rotate %607 by %c23_i32_161 dim 0 : vector<24x128xf32>, i32 -> vector<24x128xf32>
      %c1_i32_162 = arith.constant 1 : i32
      %610 = tpu.dynamic_rotate %607 by %c1_i32_162 dim 1 : vector<24x128xf32>, i32 -> vector<24x128xf32>
      %c127_i32_163 = arith.constant 127 : i32
      %611 = tpu.dynamic_rotate %607 by %c127_i32_163 dim 1 : vector<24x128xf32>, i32 -> vector<24x128xf32>
      %612 = arith.minimumf %608, %609 : vector<24x128xf32>
      %613 = arith.minimumf %610, %611 : vector<24x128xf32>
      %614 = arith.subf %612, %613 : vector<24x128xf32>
      %615 = arith.mulf %614, %614 : vector<24x128xf32>
      %616 = arith.minimumf %612, %613 : vector<24x128xf32>
      %617 = arith.addf %616, %4 : vector<24x128xf32>
      %618 = arith.addf %612, %613 : vector<24x128xf32>
      %619 = arith.subf %6, %615 : vector<24x128xf32>
      %620 = math.sqrt %619 : vector<24x128xf32>
      %621 = arith.addf %618, %620 : vector<24x128xf32>
      %cst_164 = arith.constant 5.000000e-01 : f32
      %622 = vector.broadcast %cst_164 : f32 to vector<24x128xf32>
      %623 = arith.mulf %622, %621 : vector<24x128xf32>
      %624 = arith.cmpf oge, %615, %5 : vector<24x128xf32>
      %625 = arith.select %624, %617, %623 : vector<24x128xi1>, vector<24x128xf32>
      %626 = arith.minimumf %607, %625 : vector<24x128xf32>
      %627 = arith.subf %arg3, %626 : vector<24x128xf32>
      %628 = vector.shape_cast %627 : vector<24x128xf32> to vector<1x24x128xf32>
      %cst_165 = arith.constant dense<0xFF800000> : vector<1xf32>
      %629 = vector.multi_reduction <maximumf>, %628, %cst_165 [1, 2] : vector<1x24x128xf32> to vector<1xf32>
      %630 = vector.shape_cast %629 : vector<1xf32> to vector<1x1x1xf32>
      %631 = vector.extract %630[0, 0, 0] : f32 from vector<1x1x1xf32>
      %c1_i32_166 = arith.constant 1 : i32
      %632 = arith.addi %arg2, %c1_i32_166 : i32
      scf.yield %632, %626, %631 : i32, vector<24x128xf32>, f32
    }
    %c0_6 = arith.constant 0 : index
    %c0_7 = arith.constant 0 : index
    %18 = vector.load %arg1[%c0_6, %c0_7] : memref<24x128xf32, #tpu.memory_space<vmem>>, vector<24x128xf32>
    tpu.vector_store %arg1[%c0_6, %c0_7], %17#1 {strides = array<i32>} : memref<24x128xf32, #tpu.memory_space<vmem>>, vector<24x128xf32>,
    return
  }
}

</mosaic_0001>

<llo_original>
// kernel: tpu_custom_call.1
$region0: #{tpu_custom_call.1}
  #allocation0 [shape = 'u32[]', space=smem, size = 0x4, offset = 0x4, fixed_abs, tag = 'smem constant byte address 0x4 - core index']
  #allocation1 [shape = 'u32[144,128]{1,0:T(1,128)}', space=vmem, size = 0x12000, scoped, tag = 'internal scratch']
  %s0 = inlined_call_operand.hbm [shape: f32[24,128], index: 0, kind: input, shape index: {}]
  %s1 = inlined_call_operand.hbm [shape: f32[24,128], index: 1, kind: output, shape index: {}]
  %s2 = sld [smem:[#allocation0]]
  $region25: #{tpu_custom_call.1} parent=0
    _
  %s4 = ssub.s32 1, %s2
  %s5 = scalar_select 0, %s4, %s2
  $region1: #{tpu_custom_call.1} parent=0
    #allocation2 [shape = 'u8[12288]{0}', space=vmem, size = 0x3000, scoped, tag = 'input window, operand 0, single buffered']
    #allocation3 [shape = 's32[1]{0}', space=sflag, size = 0x4, scoped, tag = 'scoped memory for tpu_custom_call.1']
    #allocation4 [shape = 's32[1]{0}', space=sflag, size = 0x4, scoped, tag = 'scoped memory for tpu_custom_call.1']
    #allocation5 [shape = 'u8[12288]{0}', space=vmem, size = 0x3000, scoped, tag = 'output window, operand 0, single buffered']
    %6 = vsyncpa [#allocation3], 0
    %7 = vsyncpa [#allocation4], 0
    // Predicated region
    $region2: #{tpu_custom_call.1} parent=1 // pred_check
      _
    $region3: #{tpu_custom_call.1} parent=1 // pred_check_branch
      %9 = sbr.rel (0) target = $region5
    $region4: #{tpu_custom_call.1} parent=1 // pred_region
      %s11 = ssub.s32 384, 384
      %12 = vsyncadd [#allocation3], %s11
      %s13 = sshll.u32 [#allocation2], 4
      %s14 = int_to_ptr.vmem [resolvable:$true] %s13
      %19 = dma.hbm_to_vmem [thread:$0]  %s0, 384, %s14, [#allocation3], 128, 128, 8
    $region5: #{tpu_custom_call.1} parent=1 // pred_fallthru
      _
    // Predicated region
    $region6: #{tpu_custom_call.1} parent=1 // pred_check
      _
    $region7: #{tpu_custom_call.1} parent=1 // pred_check_branch
      %21 = sbr.rel (0) target = $region9
    $region8: #{tpu_custom_call.1} parent=1 // pred_region
      %22 = dma.done [#allocation3], 384
    $region9: #{tpu_custom_call.1} parent=1 // pred_fallthru
      _
    %v23 = vld [vmem:[#allocation2] sm:$0xff]
    %v24 = vld [vmem:[#allocation2 + $0x8] sm:$0xff]
    %v25 = vld [vmem:[#allocation2 + $0x10] sm:$0xff]
    %v26 = vmin.f32 %v23, 3e+18
    %v27 = vmin.f32 %v24, 3e+18
    %v28 = vmin.f32 %v25, 3e+18
    %v29 = vmul.f32 %v26, %v26
    %v30 = vmul.f32 %v27, %v27
    %v31 = vmul.f32 %v28, %v28
    %v32 = vadd.f32 %v29, %v29
    %v33 = vadd.f32 %v30, %v30
    %v34 = vadd.f32 %v31, %v31
    %v35 = vlaneseq
    %v36 = vshrl.u32 %v35, 7
    %v37 = vadd.s32 %v36, 8
    %v38 = vadd.s32 %v36, 16
    %v39 = vlaneseq
    %v40 = vand.u32 %v39, 127
    %vm41 = vcmp.eq.s32.totalorder %v36, 8
    %vm42 = vcmp.eq.s32.totalorder %v37, 8
    %vm43 = vcmp.eq.s32.totalorder %v38, 8
    %vm44 = vcmp.eq.s32.totalorder %v40, 8
    %vm45 = vmand %vm41, %vm44
    %vm46 = vmand %vm42, %vm44
    %vm47 = vmand %vm43, %vm44
    %v48 = vsel %vm45, 0.0, 1e+10
    %v49 = vsel %vm46, 0.0, 1e+10
    %v50 = vsel %vm47, 0.0, 1e+10
    // While loop
    $region10: #{tpu_custom_call.1} parent=1 // loop_pre_header
      _
    $region11: #{tpu_custom_call.1} parent=1 // loop_header
      %s52 = sphi 0, %s2767
      %v53 = vphi %v48, %v2750
      %v54 = vphi %v49, %v2751
      %v55 = vphi %v50, %v2752
      %s56 = sphi 1.0, %s2766
      %p57 = scmp.lt.s32.totalorder %s52, 96
      %p58 = scmp.gt.f32.partialorder %s56, 0.0
      %p59 = pnand %p57, %p58
      %p60 = pneg %p59
    $region12: #{tpu_custom_call.1} parent=1 // loop_header_branch
      %62 = sbr.rel (%p59) target = $region16
    $region13: #{tpu_custom_call.1} parent=1 // loop_body
      %v63 = vrot.slane %v53, 7
      %v64 = vrot.slane %v54, 7
      %v65 = vrot.slane %v55, 7
      %vm66 = vcmp.lt.s32.totalorder %v36, 1
      %v67 = vsel %vm66, %v64, %v65
      %v68 = vsel %vm66, %v63, %v64
      %v69 = vsel %vm66, %v65, %v63
      %v70 = vrot.slane %v53, 1
      %v71 = vrot.slane %v54, 1
      %v72 = vrot.slane %v55, 1
      %vm73 = vcmp.lt.s32.totalorder %v36, 7
      %v74 = vsel %vm73, %v71, %v72
      %v75 = vsel %vm73, %v70, %v71
      %v76 = vsel %vm73, %v72, %v70
      %77 = vrot.lane.b32.xlu0 %v53, 1
      %v78 = vpop.permute.xlu0 %77
      %79 = vrot.lane.b32.xlu0 %v54, 1
      %v80 = vpop.permute.xlu0 %79
      %81 = vrot.lane.b32.xlu0 %v55, 1
      %v82 = vpop.permute.xlu0 %81
      %83 = vrot.lane.b32.xlu0 %v53, 127
      %v84 = vpop.permute.xlu0 %83
      %85 = vrot.lane.b32.xlu0 %v54, 127
      %v86 = vpop.permute.xlu0 %85
      %87 = vrot.lane.b32.xlu0 %v55, 127
      %v88 = vpop.permute.xlu0 %87
      %v89 = vmin.f32 %v69, %v75
      %v90 = vmin.f32 %v68, %v74
      %v91 = vmin.f32 %v67, %v76
      %v92 = vmin.f32 %v78, %v84
      %v93 = vmin.f32 %v80, %v86
      %v94 = vmin.f32 %v82, %v88
      %v95 = vsub.f32 %v89, %v92
      %v96 = vsub.f32 %v90, %v93
      %v97 = vsub.f32 %v91, %v94
      %v98 = vmul.f32 %v95, %v95
      %v99 = vmul.f32 %v96, %v96
      %v100 = vmul.f32 %v97, %v97
      %v101 = vmin.f32 %v89, %v92
      %v102 = vmin.f32 %v90, %v93
      %v103 = vmin.f32 %v91, %v94
      %v104 = vadd.f32 %v101, %v26
      %v105 = vadd.f32 %v102, %v27
      %v106 = vadd.f32 %v103, %v28
      %v107 = vadd.f32 %v89, %v92
      %v108 = vadd.f32 %v90, %v93
      %v109 = vadd.f32 %v91, %v94
      %v110 = vsub.f32 %v32, %v98
      %v111 = vsub.f32 %v33, %v99
      %v112 = vsub.f32 %v34, %v100
      %v113 = vrsqrt.pop %v110
      %v114 = vmul.f32 %v110, %v113
      %vm115 = vcmp.eq.f32.partialorder %v110, inf
      %v116 = vsel %vm115, %v110, %v114
      %vm117 = vcmp.eq.f32.partialorder %v110, 0.0
      %v118 = vand.u32 %v110, 2147483648
      %v119 = vsel %vm117, %v118, %v116
      %v120 = vrsqrt.pop %v111
      %v121 = vmul.f32 %v111, %v120
      %vm122 = vcmp.eq.f32.partialorder %v111, inf
      %v123 = vsel %vm122, %v111, %v121
      %vm124 = vcmp.eq.f32.partialorder %v111, 0.0
      %v125 = vand.u32 %v111, 2147483648
      %v126 = vsel %vm124, %v125, %v123
      %v127 = vrsqrt.pop %v112
      %v128 = vmul.f32 %v112, %v127
      %vm129 = vcmp.eq.f32.partialorder %v112, inf
      %v130 = vsel %vm129, %v112, %v128
      %vm131 = vcmp.eq.f32.partialorder %v112, 0.0
      %v132 = vand.u32 %v112, 2147483648
      %v133 = vsel %vm131, %v132, %v130
      %v134 = vadd.f32 %v107, %v119
      %v135 = vadd.f32 %v108, %v126
      %v136 = vadd.f32 %v109, %v133
      %v137 = vmul.f32 %v134, 0.5
      %v138 = vmul.f32 %v135, 0.5
      %v139 = vmul.f32 %v136, 0.5
      %vm140 = vcmp.ge.f32.partialorder %v98, %v29
      %vm141 = vcmp.ge.f32.partialorder %v99, %v30
      %vm142 = vcmp.ge.f32.partialorder %v100, %v31
      %v143 = vsel %vm140, %v104, %v137
      %v144 = vsel %vm141, %v105, %v138
      %v145 = vsel %vm142, %v106, %v139
      %v146 = vmin.f32 %v53, %v143
      %v147 = vmin.f32 %v54, %v144
      %v148 = vmin.f32 %v55, %v145
      %v149 = vrot.slane %v146, 7
      %v150 = vrot.slane %v147, 7
      %v151 = vrot.slane %v148, 7
      %v152 = vsel %vm66, %v150, %v151
      %v153 = vsel %vm66, %v149, %v150
      %v154 = vsel %vm66, %v151, %v149
      %v155 = vrot.slane %v146, 1
      %v156 = vrot.slane %v147, 1
      %v157 = vrot.slane %v148, 1
      %v158 = vsel %vm73, %v156, %v157
      %v159 = vsel %vm73, %v155, %v156
      %v160 = vsel %vm73, %v157, %v155
      %161 = vrot.lane.b32.xlu0 %v146, 1
      %v162 = vpop.permute.xlu0 %161
      %163 = vrot.lane.b32.xlu0 %v147, 1
      %v164 = vpop.permute.xlu0 %163
      %165 = vrot.lane.b32.xlu0 %v148, 1
      %v166 = vpop.permute.xlu0 %165
      %167 = vrot.lane.b32.xlu0 %v146, 127
      %v168 = vpop.permute.xlu0 %167
      %169 = vrot.lane.b32.xlu0 %v147, 127
      %v170 = vpop.permute.xlu0 %169
      %171 = vrot.lane.b32.xlu0 %v148, 127
      %v172 = vpop.permute.xlu0 %171
      %v173 = vmin.f32 %v154, %v159
      %v174 = vmin.f32 %v153, %v158
      %v175 = vmin.f32 %v152, %v160
      %v176 = vmin.f32 %v162, %v168
      %v177 = vmin.f32 %v164, %v170
      %v178 = vmin.f32 %v166, %v172
      %v179 = vsub.f32 %v173, %v176
      %v180 = vsub.f32 %v174, %v177
      %v181 = vsub.f32 %v175, %v178
      %v182 = vmul.f32 %v179, %v179
      %v183 = vmul.f32 %v180, %v180
      %v184 = vmul.f32 %v181, %v181
      %v185 = vmin.f32 %v173, %v176
      %v186 = vmin.f32 %v174, %v177
      %v187 = vmin.f32 %v175, %v178
      %v188 = vadd.f32 %v185, %v26
      %v189 = vadd.f32 %v186, %v27
      %v190 = vadd.f32 %v187, %v28
      %v191 = vadd.f32 %v173, %v176
      %v192 = vadd.f32 %v174, %v177
      %v193 = vadd.f32 %v175, %v178
      %v194 = vsub.f32 %v32, %v182
      %v195 = vsub.f32 %v33, %v183
      %v196 = vsub.f32 %v34, %v184
      %v197 = vrsqrt.pop %v194
      %v198 = vmul.f32 %v194, %v197
      %vm199 = vcmp.eq.f32.partialorder %v194, inf
      %v200 = vsel %vm199, %v194, %v198
      %vm201 = vcmp.eq.f32.partialorder %v194, 0.0
      %v202 = vand.u32 %v194, 2147483648
      %v203 = vsel %vm201, %v202, %v200
      %v204 = vrsqrt.pop %v195
      %v205 = vmul.f32 %v195, %v204
      %vm206 = vcmp.eq.f32.partialorder %v195, inf
      %v207 = vsel %vm206, %v195, %v205
      %vm208 = vcmp.eq.f32.partialorder %v195, 0.0
      %v209 = vand.u32 %v195, 2147483648
      %v210 = vsel %vm208, %v209, %v207
      %v211 = vrsqrt.pop %v196
      %v212 = vmul.f32 %v196, %v211
      %vm213 = vcmp.eq.f32.partialorder %v196, inf
      %v214 = vsel %vm213, %v196, %v212
      %vm215 = vcmp.eq.f32.partialorder %v196, 0.0
      %v216 = vand.u32 %v196, 2147483648
      %v217 = vsel %vm215, %v216, %v214
      %v218 = vadd.f32 %v191, %v203
      %v219 = vadd.f32 %v192, %v210
      %v220 = vadd.f32 %v193, %v217
      %v221 = vmul.f32 %v218, 0.5
      %v222 = vmul.f32 %v219, 0.5
      %v223 = vmul.f32 %v220, 0.5
      %vm224 = vcmp.ge.f32.partialorder %v182, %v29
      %vm225 = vcmp.ge.f32.partialorder %v183, %v30
      %vm226 = vcmp.ge.f32.partialorder %v184, %v31
      %v227 = vsel %vm224, %v188, %v221
      %v228 = vsel %vm225, %v189, %v222
      %v229 = vsel %vm226, %v190, %v223
      %v230 = vmin.f32 %v146, %v227
      %v231 = vmin.f32 %v147, %v228
      %v232 = vmin.f32 %v148, %v229
      %v233 = vrot.slane %v230, 7
      %v234 = vrot.slane %v231, 7
      %v235 = vrot.slane %v232, 7
      %v236 = vsel %vm66, %v234, %v235
      %v237 = vsel %vm66, %v233, %v234
      %v238 = vsel %vm66, %v235, %v233
      %v239 = vrot.slane %v230, 1
      %v240 = vrot.slane %v231, 1
      %v241 = vrot.slane %v232, 1
      %v242 = vsel %vm73, %v240, %v241
      %v243 = vsel %vm73, %v239, %v240
      %v244 = vsel %vm73, %v241, %v239
      %245 = vrot.lane.b32.xlu0 %v230, 1
      %v246 = vpop.permute.xlu0 %245
      %247 = vrot.lane.b32.xlu0 %v231, 1
      %v248 = vpop.permute.xlu0 %247
      %249 = vrot.lane.b32.xlu0 %v232, 1
      %v250 = vpop.permute.xlu0 %249
      %251 = vrot.lane.b32.xlu0 %v230, 127
      %v252 = vpop.permute.xlu0 %251
      %253 = vrot.lane.b32.xlu0 %v231, 127
      %v254 = vpop.permute.xlu0 %253
      %255 = vrot.lane.b32.xlu0 %v232, 127
      %v256 = vpop.permute.xlu0 %255
      %v257 = vmin.f32 %v238, %v243
      %v258 = vmin.f32 %v237, %v242
      %v259 = vmin.f32 %v236, %v244
      %v260 = vmin.f32 %v246, %v252
      %v261 = vmin.f32 %v248, %v254
      %v262 = vmin.f32 %v250, %v256
      %v263 = vsub.f32 %v257, %v260
      %v264 = vsub.f32 %v258, %v261
      %v265 = vsub.f32 %v259, %v262
      %v266 = vmul.f32 %v263, %v263
      %v267 = vmul.f32 %v264, %v264
      %v268 = vmul.f32 %v265, %v265
      %v269 = vmin.f32 %v257, %v260
      %v270 = vmin.f32 %v258, %v261
      %v271 = vmin.f32 %v259, %v262
      %v272 = vadd.f32 %v269, %v26
      %v273 = vadd.f32 %v270, %v27
      %v274 = vadd.f32 %v271, %v28
      %v275 = vadd.f32 %v257, %v260
      %v276 = vadd.f32 %v258, %v261
      %v277 = vadd.f32 %v259, %v262
      %v278 = vsub.f32 %v32, %v266
      %v279 = vsub.f32 %v33, %v267
      %v280 = vsub.f32 %v34, %v268
      %v281 = vrsqrt.pop %v278
      %v282 = vmul.f32 %v278, %v281
      %vm283 = vcmp.eq.f32.partialorder %v278, inf
      %v284 = vsel %vm283, %v278, %v282
      %vm285 = vcmp.eq.f32.partialorder %v278, 0.0
      %v286 = vand.u32 %v278, 2147483648
      %v287 = vsel %vm285, %v286, %v284
      %v288 = vrsqrt.pop %v279
      %v289 = vmul.f32 %v279, %v288
      %vm290 = vcmp.eq.f32.partialorder %v279, inf
      %v291 = vsel %vm290, %v279, %v289
      %vm292 = vcmp.eq.f32.partialorder %v279, 0.0
      %v293 = vand.u32 %v279, 2147483648
      %v294 = vsel %vm292, %v293, %v291
      %v295 = vrsqrt.pop %v280
      %v296 = vmul.f32 %v280, %v295
      %vm297 = vcmp.eq.f32.partialorder %v280, inf
      %v298 = vsel %vm297, %v280, %v296
      %vm299 = vcmp.eq.f32.partialorder %v280, 0.0
      %v300 = vand.u32 %v280, 2147483648
      %v301 = vsel %vm299, %v300, %v298
      %v302 = vadd.f32 %v275, %v287
      %v303 = vadd.f32 %v276, %v294
      %v304 = vadd.f32 %v277, %v301
      %v305 = vmul.f32 %v302, 0.5
      %v306 = vmul.f32 %v303, 0.5
      %v307 = vmul.f32 %v304, 0.5
      %vm308 = vcmp.ge.f32.partialorder %v266, %v29
      %vm309 = vcmp.ge.f32.partialorder %v267, %v30
      %vm310 = vcmp.ge.f32.partialorder %v268, %v31
      %v311 = vsel %vm308, %v272, %v305
      %v312 = vsel %vm309, %v273, %v306
      %v313 = vsel %vm310, %v274, %v307
      %v314 = vmin.f32 %v230, %v311
      %v315 = vmin.f32 %v231, %v312
      %v316 = vmin.f32 %v232, %v313
      %v317 = vrot.slane %v314, 7
      %v318 = vrot.slane %v315, 7
      %v319 = vrot.slane %v316, 7
      %v320 = vsel %vm66, %v318, %v319
      %v321 = vsel %vm66, %v317, %v318
      %v322 = vsel %vm66, %v319, %v317
      %v323 = vrot.slane %v314, 1
      %v324 = vrot.slane %v315, 1
      %v325 = vrot.slane %v316, 1
      %v326 = vsel %vm73, %v324, %v325
      %v327 = vsel %vm73, %v323, %v324
      %v328 = vsel %vm73, %v325, %v323
      %329 = vrot.lane.b32.xlu0 %v314, 1
      %v330 = vpop.permute.xlu0 %329
      %331 = vrot.lane.b32.xlu0 %v315, 1
      %v332 = vpop.permute.xlu0 %331
      %333 = vrot.lane.b32.xlu0 %v316, 1
      %v334 = vpop.permute.xlu0 %333
      %335 = vrot.lane.b32.xlu0 %v314, 127
      %v336 = vpop.permute.xlu0 %335
      %337 = vrot.lane.b32.xlu0 %v315, 127
      %v338 = vpop.permute.xlu0 %337
      %339 = vrot.lane.b32.xlu0 %v316, 127
      %v340 = vpop.permute.xlu0 %339
      %v341 = vmin.f32 %v322, %v327
      %v342 = vmin.f32 %v321, %v326
      %v343 = vmin.f32 %v320, %v328
      %v344 = vmin.f32 %v330, %v336
      %v345 = vmin.f32 %v332, %v338
      %v346 = vmin.f32 %v334, %v340
      %v347 = vsub.f32 %v341, %v344
      %v348 = vsub.f32 %v342, %v345
      %v349 = vsub.f32 %v343, %v346
      %v350 = vmul.f32 %v347, %v347
      %v351 = vmul.f32 %v348, %v348
      %v352 = vmul.f32 %v349, %v349
      %v353 = vmin.f32 %v341, %v344
      %v354 = vmin.f32 %v342, %v345
      %v355 = vmin.f32 %v343, %v346
      %v356 = vadd.f32 %v353, %v26
      %v357 = vadd.f32 %v354, %v27
      %v358 = vadd.f32 %v355, %v28
      %v359 = vadd.f32 %v341, %v344
      %v360 = vadd.f32 %v342, %v345
      %v361 = vadd.f32 %v343, %v346
      %v362 = vsub.f32 %v32, %v350
      %v363 = vsub.f32 %v33, %v351
      %v364 = vsub.f32 %v34, %v352
      %v365 = vrsqrt.pop %v362
      %v366 = vmul.f32 %v362, %v365
      %vm367 = vcmp.eq.f32.partialorder %v362, inf
      %v368 = vsel %vm367, %v362, %v366
      %vm369 = vcmp.eq.f32.partialorder %v362, 0.0
      %v370 = vand.u32 %v362, 2147483648
      %v371 = vsel %vm369, %v370, %v368
      %v372 = vrsqrt.pop %v363
      %v373 = vmul.f32 %v363, %v372
      %vm374 = vcmp.eq.f32.partialorder %v363, inf
      %v375 = vsel %vm374, %v363, %v373
      %vm376 = vcmp.eq.f32.partialorder %v363, 0.0
      %v377 = vand.u32 %v363, 2147483648
      %v378 = vsel %vm376, %v377, %v375
      %v379 = vrsqrt.pop %v364
      %v380 = vmul.f32 %v364, %v379
      %vm381 = vcmp.eq.f32.partialorder %v364, inf
      %v382 = vsel %vm381, %v364, %v380
      %vm383 = vcmp.eq.f32.partialorder %v364, 0.0
      %v384 = vand.u32 %v364, 2147483648
      %v385 = vsel %vm383, %v384, %v382
      %v386 = vadd.f32 %v359, %v371
      %v387 = vadd.f32 %v360, %v378
      %v388 = vadd.f32 %v361, %v385
      %v389 = vmul.f32 %v386, 0.5
      %v390 = vmul.f32 %v387, 0.5
      %v391 = vmul.f32 %v388, 0.5
      %vm392 = vcmp.ge.f32.partialorder %v350, %v29
      %vm393 = vcmp.ge.f32.partialorder %v351, %v30
      %vm394 = vcmp.ge.f32.partialorder %v352, %v31
      %v395 = vsel %vm392, %v356, %v389
      %v396 = vsel %vm393, %v357, %v390
      %v397 = vsel %vm394, %v358, %v391
      %v398 = vmin.f32 %v314, %v395
      %v399 = vmin.f32 %v315, %v396
      %v400 = vmin.f32 %v316, %v397
      %v401 = vrot.slane %v398, 7
      %v402 = vrot.slane %v399, 7
      %v403 = vrot.slane %v400, 7
      %v404 = vsel %vm66, %v402, %v403
      %v405 = vsel %vm66, %v401, %v402
      %v406 = vsel %vm66, %v403, %v401
      %v407 = vrot.slane %v398, 1
      %v408 = vrot.slane %v399, 1
      %v409 = vrot.slane %v400, 1
      %v410 = vsel %vm73, %v408, %v409
      %v411 = vsel %vm73, %v407, %v408
      %v412 = vsel %vm73, %v409, %v407
      %413 = vrot.lane.b32.xlu0 %v398, 1
      %v414 = vpop.permute.xlu0 %413
      %415 = vrot.lane.b32.xlu0 %v399, 1
      %v416 = vpop.permute.xlu0 %415
      %417 = vrot.lane.b32.xlu0 %v400, 1
      %v418 = vpop.permute.xlu0 %417
      %419 = vrot.lane.b32.xlu0 %v398, 127
      %v420 = vpop.permute.xlu0 %419
      %421 = vrot.lane.b32.xlu0 %v399, 127
      %v422 = vpop.permute.xlu0 %421
      %423 = vrot.lane.b32.xlu0 %v400, 127
      %v424 = vpop.permute.xlu0 %423
      %v425 = vmin.f32 %v406, %v411
      %v426 = vmin.f32 %v405, %v410
      %v427 = vmin.f32 %v404, %v412
      %v428 = vmin.f32 %v414, %v420
      %v429 = vmin.f32 %v416, %v422
      %v430 = vmin.f32 %v418, %v424
      %v431 = vsub.f32 %v425, %v428
      %v432 = vsub.f32 %v426, %v429
      %v433 = vsub.f32 %v427, %v430
      %v434 = vmul.f32 %v431, %v431
      %v435 = vmul.f32 %v432, %v432
      %v436 = vmul.f32 %v433, %v433
      %v437 = vmin.f32 %v425, %v428
      %v438 = vmin.f32 %v426, %v429
      %v439 = vmin.f32 %v427, %v430
      %v440 = vadd.f32 %v437, %v26
      %v441 = vadd.f32 %v438, %v27
      %v442 = vadd.f32 %v439, %v28
      %v443 = vadd.f32 %v425, %v428
      %v444 = vadd.f32 %v426, %v429
      %v445 = vadd.f32 %v427, %v430
      %v446 = vsub.f32 %v32, %v434
      %v447 = vsub.f32 %v33, %v435
      %v448 = vsub.f32 %v34, %v436
      %v449 = vrsqrt.pop %v446
      %v450 = vmul.f32 %v446, %v449
      %vm451 = vcmp.eq.f32.partialorder %v446, inf
      %v452 = vsel %vm451, %v446, %v450
      %vm453 = vcmp.eq.f32.partialorder %v446, 0.0
      %v454 = vand.u32 %v446, 2147483648
      %v455 = vsel %vm453, %v454, %v452
      %v456 = vrsqrt.pop %v447
      %v457 = vmul.f32 %v447, %v456
      %vm458 = vcmp.eq.f32.partialorder %v447, inf
      %v459 = vsel %vm458, %v447, %v457
      %vm460 = vcmp.eq.f32.partialorder %v447, 0.0
      %v461 = vand.u32 %v447, 2147483648
      %v462 = vsel %vm460, %v461, %v459
      %v463 = vrsqrt.pop %v448
      %v464 = vmul.f32 %v448, %v463
      %vm465 = vcmp.eq.f32.partialorder %v448, inf
      %v466 = vsel %vm465, %v448, %v464
      %vm467 = vcmp.eq.f32.partialorder %v448, 0.0
      %v468 = vand.u32 %v448, 2147483648
      %v469 = vsel %vm467, %v468, %v466
      %v470 = vadd.f32 %v443, %v455
      %v471 = vadd.f32 %v444, %v462
      %v472 = vadd.f32 %v445, %v469
      %v473 = vmul.f32 %v470, 0.5
      %v474 = vmul.f32 %v471, 0.5
      %v475 = vmul.f32 %v472, 0.5
      %vm476 = vcmp.ge.f32.partialorder %v434, %v29
      %vm477 = vcmp.ge.f32.partialorder %v435, %v30
      %vm478 = vcmp.ge.f32.partialorder %v436, %v31
      %v479 = vsel %vm476, %v440, %v473
      %v480 = vsel %vm477, %v441, %v474
      %v481 = vsel %vm478, %v442, %v475
      %v482 = vmin.f32 %v398, %v479
      %v483 = vmin.f32 %v399, %v480
      %v484 = vmin.f32 %v400, %v481
      %v485 = vrot.slane %v482, 7
      %v486 = vrot.slane %v483, 7
      %v487 = vrot.slane %v484, 7
      %v488 = vsel %vm66, %v486, %v487
      %v489 = vsel %vm66, %v485, %v486
      %v490 = vsel %vm66, %v487, %v485
      %v491 = vrot.slane %v482, 1
      %v492 = vrot.slane %v483, 1
      %v493 = vrot.slane %v484, 1
      %v494 = vsel %vm73, %v492, %v493
      %v495 = vsel %vm73, %v491, %v492
      %v496 = vsel %vm73, %v493, %v491
      %497 = vrot.lane.b32.xlu0 %v482, 1
      %v498 = vpop.permute.xlu0 %497
      %499 = vrot.lane.b32.xlu0 %v483, 1
      %v500 = vpop.permute.xlu0 %499
      %501 = vrot.lane.b32.xlu0 %v484, 1
      %v502 = vpop.permute.xlu0 %501
      %503 = vrot.lane.b32.xlu0 %v482, 127
      %v504 = vpop.permute.xlu0 %503
      %505 = vrot.lane.b32.xlu0 %v483, 127
      %v506 = vpop.permute.xlu0 %505
      %507 = vrot.lane.b32.xlu0 %v484, 127
      %v508 = vpop.permute.xlu0 %507
      %v509 = vmin.f32 %v490, %v495
      %v510 = vmin.f32 %v489, %v494
      %v511 = vmin.f32 %v488, %v496
      %v512 = vmin.f32 %v498, %v504
      %v513 = vmin.f32 %v500, %v506
      %v514 = vmin.f32 %v502, %v508
      %v515 = vsub.f32 %v509, %v512
      %v516 = vsub.f32 %v510, %v513
      %v517 = vsub.f32 %v511, %v514
      %v518 = vmul.f32 %v515, %v515
      %v519 = vmul.f32 %v516, %v516
      %v520 = vmul.f32 %v517, %v517
      %v521 = vmin.f32 %v509, %v512
      %v522 = vmin.f32 %v510, %v513
      %v523 = vmin.f32 %v511, %v514
      %v524 = vadd.f32 %v521, %v26
      %v525 = vadd.f32 %v522, %v27
      %v526 = vadd.f32 %v523, %v28
      %v527 = vadd.f32 %v509, %v512
      %v528 = vadd.f32 %v510, %v513
      %v529 = vadd.f32 %v511, %v514
      %v530 = vsub.f32 %v32, %v518
      %v531 = vsub.f32 %v33, %v519
      %v532 = vsub.f32 %v34, %v520
      %v533 = vrsqrt.pop %v530
      %v534 = vmul.f32 %v530, %v533
      %vm535 = vcmp.eq.f32.partialorder %v530, inf
      %v536 = vsel %vm535, %v530, %v534
      %vm537 = vcmp.eq.f32.partialorder %v530, 0.0
      %v538 = vand.u32 %v530, 2147483648
      %v539 = vsel %vm537, %v538, %v536
      %v540 = vrsqrt.pop %v531
      %v541 = vmul.f32 %v531, %v540
      %vm542 = vcmp.eq.f32.partialorder %v531, inf
      %v543 = vsel %vm542, %v531, %v541
      %vm544 = vcmp.eq.f32.partialorder %v531, 0.0
      %v545 = vand.u32 %v531, 2147483648
      %v546 = vsel %vm544, %v545, %v543
      %v547 = vrsqrt.pop %v532
      %v548 = vmul.f32 %v532, %v547
      %vm549 = vcmp.eq.f32.partialorder %v532, inf
      %v550 = vsel %vm549, %v532, %v548
      %vm551 = vcmp.eq.f32.partialorder %v532, 0.0
      %v552 = vand.u32 %v532, 2147483648
      %v553 = vsel %vm551, %v552, %v550
      %v554 = vadd.f32 %v527, %v539
      %v555 = vadd.f32 %v528, %v546
      %v556 = vadd.f32 %v529, %v553
      %v557 = vmul.f32 %v554, 0.5
      %v558 = vmul.f32 %v555, 0.5
      %v559 = vmul.f32 %v556, 0.5
      %vm560 = vcmp.ge.f32.partialorder %v518, %v29
      %vm561 = vcmp.ge.f32.partialorder %v519, %v30
      %vm562 = vcmp.ge.f32.partialorder %v520, %v31
      %v563 = vsel %vm560, %v524, %v557
      %v564 = vsel %vm561, %v525, %v558
      %v565 = vsel %vm562, %v526, %v559
      %v566 = vmin.f32 %v482, %v563
      %v567 = vmin.f32 %v483, %v564
      %v568 = vmin.f32 %v484, %v565
      %v569 = vrot.slane %v566, 7
      %v570 = vrot.slane %v567, 7
      %v571 = vrot.slane %v568, 7
      %v572 = vsel %vm66, %v570, %v571
      %v573 = vsel %vm66, %v569, %v570
      %v574 = vsel %vm66, %v571, %v569
      %v575 = vrot.slane %v566, 1
      %v576 = vrot.slane %v567, 1
      %v577 = vrot.slane %v568, 1
      %v578 = vsel %vm73, %v576, %v577
      %v579 = vsel %vm73, %v575, %v576
      %v580 = vsel %vm73, %v577, %v575
      %581 = vrot.lane.b32.xlu0 %v566, 1
      %v582 = vpop.permute.xlu0 %581
      %583 = vrot.lane.b32.xlu0 %v567, 1
      %v584 = vpop.permute.xlu0 %583
      %585 = vrot.lane.b32.xlu0 %v568, 1
      %v586 = vpop.permute.xlu0 %585
      %587 = vrot.lane.b32.xlu0 %v566, 127
      %v588 = vpop.permute.xlu0 %587
      %589 = vrot.lane.b32.xlu0 %v567, 127
      %v590 = vpop.permute.xlu0 %589
      %591 = vrot.lane.b32.xlu0 %v568, 127
      %v592 = vpop.permute.xlu0 %591
      %v593 = vmin.f32 %v574, %v579
      %v594 = vmin.f32 %v573, %v578
      %v595 = vmin.f32 %v572, %v580
      %v596 = vmin.f32 %v582, %v588
      %v597 = vmin.f32 %v584, %v590
      %v598 = vmin.f32 %v586, %v592
      %v599 = vsub.f32 %v593, %v596
      %v600 = vsub.f32 %v594, %v597
      %v601 = vsub.f32 %v595, %v598
      %v602 = vmul.f32 %v599, %v599
      %v603 = vmul.f32 %v600, %v600
      %v604 = vmul.f32 %v601, %v601
      %v605 = vmin.f32 %v593, %v596
      %v606 = vmin.f32 %v594, %v597
      %v607 = vmin.f32 %v595, %v598
      %v608 = vadd.f32 %v605, %v26
      %v609 = vadd.f32 %v606, %v27
      %v610 = vadd.f32 %v607, %v28
      %v611 = vadd.f32 %v593, %v596
      %v612 = vadd.f32 %v594, %v597
      %v613 = vadd.f32 %v595, %v598
      %v614 = vsub.f32 %v32, %v602
      %v615 = vsub.f32 %v33, %v603
      %v616 = vsub.f32 %v34, %v604
      %v617 = vrsqrt.pop %v614
      %v618 = vmul.f32 %v614, %v617
      %vm619 = vcmp.eq.f32.partialorder %v614, inf
      %v620 = vsel %vm619, %v614, %v618
      %vm621 = vcmp.eq.f32.partialorder %v614, 0.0
      %v622 = vand.u32 %v614, 2147483648
      %v623 = vsel %vm621, %v622, %v620
      %v624 = vrsqrt.pop %v615
      %v625 = vmul.f32 %v615, %v624
      %vm626 = vcmp.eq.f32.partialorder %v615, inf
      %v627 = vsel %vm626, %v615, %v625
      %vm628 = vcmp.eq.f32.partialorder %v615, 0.0
      %v629 = vand.u32 %v615, 2147483648
      %v630 = vsel %vm628, %v629, %v627
      %v631 = vrsqrt.pop %v616
      %v632 = vmul.f32 %v616, %v631
      %vm633 = vcmp.eq.f32.partialorder %v616, inf
      %v634 = vsel %vm633, %v616, %v632
      %vm635 = vcmp.eq.f32.partialorder %v616, 0.0
      %v636 = vand.u32 %v616, 2147483648
      %v637 = vsel %vm635, %v636, %v634
      %v638 = vadd.f32 %v611, %v623
      %v639 = vadd.f32 %v612, %v630
      %v640 = vadd.f32 %v613, %v637
      %v641 = vmul.f32 %v638, 0.5
      %v642 = vmul.f32 %v639, 0.5
      %v643 = vmul.f32 %v640, 0.5
      %vm644 = vcmp.ge.f32.partialorder %v602, %v29
      %vm645 = vcmp.ge.f32.partialorder %v603, %v30
      %vm646 = vcmp.ge.f32.partialorder %v604, %v31
      %v647 = vsel %vm644, %v608, %v641
      %v648 = vsel %vm645, %v609, %v642
      %v649 = vsel %vm646, %v610, %v643
      %v650 = vmin.f32 %v566, %v647
      %v651 = vmin.f32 %v567, %v648
      %v652 = vmin.f32 %v568, %v649
      %v653 = vrot.slane %v650, 7
      %v654 = vrot.slane %v651, 7
      %v655 = vrot.slane %v652, 7
      %v656 = vsel %vm66, %v654, %v655
      %v657 = vsel %vm66, %v653, %v654
      %v658 = vsel %vm66, %v655, %v653
      %v659 = vrot.slane %v650, 1
      %v660 = vrot.slane %v651, 1
      %v661 = vrot.slane %v652, 1
      %v662 = vsel %vm73, %v660, %v661
      %v663 = vsel %vm73, %v659, %v660
      %v664 = vsel %vm73, %v661, %v659
      %665 = vrot.lane.b32.xlu0 %v650, 1
      %v666 = vpop.permute.xlu0 %665
      %667 = vrot.lane.b32.xlu0 %v651, 1
      %v668 = vpop.permute.xlu0 %667
      %669 = vrot.lane.b32.xlu0 %v652, 1
      %v670 = vpop.permute.xlu0 %669
      %671 = vrot.lane.b32.xlu0 %v650, 127
      %v672 = vpop.permute.xlu0 %671
      %673 = vrot.lane.b32.xlu0 %v651, 127
      %v674 = vpop.permute.xlu0 %673
      %675 = vrot.lane.b32.xlu0 %v652, 127
      %v676 = vpop.permute.xlu0 %675
      %v677 = vmin.f32 %v658, %v663
      %v678 = vmin.f32 %v657, %v662
      %v679 = vmin.f32 %v656, %v664
      %v680 = vmin.f32 %v666, %v672
      %v681 = vmin.f32 %v668, %v674
      %v682 = vmin.f32 %v670, %v676
      %v683 = vsub.f32 %v677, %v680
      %v684 = vsub.f32 %v678, %v681
      %v685 = vsub.f32 %v679, %v682
      %v686 = vmul.f32 %v683, %v683
      %v687 = vmul.f32 %v684, %v684
      %v688 = vmul.f32 %v685, %v685
      %v689 = vmin.f32 %v677, %v680
      %v690 = vmin.f32 %v678, %v681
      %v691 = vmin.f32 %v679, %v682
      %v692 = vadd.f32 %v689, %v26
      %v693 = vadd.f32 %v690, %v27
      %v694 = vadd.f32 %v691, %v28
      %v695 = vadd.f32 %v677, %v680
      %v696 = vadd.f32 %v678, %v681
      %v697 = vadd.f32 %v679, %v682
      %v698 = vsub.f32 %v32, %v686
      %v699 = vsub.f32 %v33, %v687
      %v700 = vsub.f32 %v34, %v688
      %v701 = vrsqrt.pop %v698
      %v702 = vmul.f32 %v698, %v701
      %vm703 = vcmp.eq.f32.partialorder %v698, inf
      %v704 = vsel %vm703, %v698, %v702
      %vm705 = vcmp.eq.f32.partialorder %v698, 0.0
      %v706 = vand.u32 %v698, 2147483648
      %v707 = vsel %vm705, %v706, %v704
      %v708 = vrsqrt.pop %v699
      %v709 = vmul.f32 %v699, %v708
      %vm710 = vcmp.eq.f32.partialorder %v699, inf
      %v711 = vsel %vm710, %v699, %v709
      %vm712 = vcmp.eq.f32.partialorder %v699, 0.0
      %v713 = vand.u32 %v699, 2147483648
      %v714 = vsel %vm712, %v713, %v711
      %v715 = vrsqrt.pop %v700
      %v716 = vmul.f32 %v700, %v715
      %vm717 = vcmp.eq.f32.partialorder %v700, inf
      %v718 = vsel %vm717, %v700, %v716
      %vm719 = vcmp.eq.f32.partialorder %v700, 0.0
      %v720 = vand.u32 %v700, 2147483648
      %v721 = vsel %vm719, %v720, %v718
      %v722 = vadd.f32 %v695, %v707
      %v723 = vadd.f32 %v696, %v714
      %v724 = vadd.f32 %v697, %v721
      %v725 = vmul.f32 %v722, 0.5
      %v726 = vmul.f32 %v723, 0.5
      %v727 = vmul.f32 %v724, 0.5
      %vm728 = vcmp.ge.f32.partialorder %v686, %v29
      %vm729 = vcmp.ge.f32.partialorder %v687, %v30
      %vm730 = vcmp.ge.f32.partialorder %v688, %v31
      %v731 = vsel %vm728, %v692, %v725
      %v732 = vsel %vm729, %v693, %v726
      %v733 = vsel %vm730, %v694, %v727
      %v734 = vmin.f32 %v650, %v731
      %v735 = vmin.f32 %v651, %v732
      %v736 = vmin.f32 %v652, %v733
      %v737 = vrot.slane %v734, 7
      %v738 = vrot.slane %v735, 7
      %v739 = vrot.slane %v736, 7
      %v740 = vsel %vm66, %v738, %v739
      %v741 = vsel %vm66, %v737, %v738
      %v742 = vsel %vm66, %v739, %v737
      %v743 = vrot.slane %v734, 1
      %v744 = vrot.slane %v735, 1
      %v745 = vrot.slane %v736, 1
      %v746 = vsel %vm73, %v744, %v745
      %v747 = vsel %vm73, %v743, %v744
      %v748 = vsel %vm73, %v745, %v743
      %749 = vrot.lane.b32.xlu0 %v734, 1
      %v750 = vpop.permute.xlu0 %749
      %751 = vrot.lane.b32.xlu0 %v735, 1
      %v752 = vpop.permute.xlu0 %751
      %753 = vrot.lane.b32.xlu0 %v736, 1
      %v754 = vpop.permute.xlu0 %753
      %755 = vrot.lane.b32.xlu0 %v734, 127
      %v756 = vpop.permute.xlu0 %755
      %757 = vrot.lane.b32.xlu0 %v735, 127
      %v758 = vpop.permute.xlu0 %757
      %759 = vrot.lane.b32.xlu0 %v736, 127
      %v760 = vpop.permute.xlu0 %759
      %v761 = vmin.f32 %v742, %v747
      %v762 = vmin.f32 %v741, %v746
      %v763 = vmin.f32 %v740, %v748
      %v764 = vmin.f32 %v750, %v756
      %v765 = vmin.f32 %v752, %v758
      %v766 = vmin.f32 %v754, %v760
      %v767 = vsub.f32 %v761, %v764
      %v768 = vsub.f32 %v762, %v765
      %v769 = vsub.f32 %v763, %v766
      %v770 = vmul.f32 %v767, %v767
      %v771 = vmul.f32 %v768, %v768
      %v772 = vmul.f32 %v769, %v769
      %v773 = vmin.f32 %v761, %v764
      %v774 = vmin.f32 %v762, %v765
      %v775 = vmin.f32 %v763, %v766
      %v776 = vadd.f32 %v773, %v26
      %v777 = vadd.f32 %v774, %v27
      %v778 = vadd.f32 %v775, %v28
      %v779 = vadd.f32 %v761, %v764
      %v780 = vadd.f32 %v762, %v765
      %v781 = vadd.f32 %v763, %v766
      %v782 = vsub.f32 %v32, %v770
      %v783 = vsub.f32 %v33, %v771
      %v784 = vsub.f32 %v34, %v772
      %v785 = vrsqrt.pop %v782
      %v786 = vmul.f32 %v782, %v785
      %vm787 = vcmp.eq.f32.partialorder %v782, inf
      %v788 = vsel %vm787, %v782, %v786
      %vm789 = vcmp.eq.f32.partialorder %v782, 0.0
      %v790 = vand.u32 %v782, 2147483648
      %v791 = vsel %vm789, %v790, %v788
      %v792 = vrsqrt.pop %v783
      %v793 = vmul.f32 %v783, %v792
      %vm794 = vcmp.eq.f32.partialorder %v783, inf
      %v795 = vsel %vm794, %v783, %v793
      %vm796 = vcmp.eq.f32.partialorder %v783, 0.0
      %v797 = vand.u32 %v783, 2147483648
      %v798 = vsel %vm796, %v797, %v795
      %v799 = vrsqrt.pop %v784
      %v800 = vmul.f32 %v784, %v799
      %vm801 = vcmp.eq.f32.partialorder %v784, inf
      %v802 = vsel %vm801, %v784, %v800
      %vm803 = vcmp.eq.f32.partialorder %v784, 0.0
      %v804 = vand.u32 %v784, 2147483648
      %v805 = vsel %vm803, %v804, %v802
      %v806 = vadd.f32 %v779, %v791
      %v807 = vadd.f32 %v780, %v798
      %v808 = vadd.f32 %v781, %v805
      %v809 = vmul.f32 %v806, 0.5
      %v810 = vmul.f32 %v807, 0.5
      %v811 = vmul.f32 %v808, 0.5
      %vm812 = vcmp.ge.f32.partialorder %v770, %v29
      %vm813 = vcmp.ge.f32.partialorder %v771, %v30
      %vm814 = vcmp.ge.f32.partialorder %v772, %v31
      %v815 = vsel %vm812, %v776, %v809
      %v816 = vsel %vm813, %v777, %v810
      %v817 = vsel %vm814, %v778, %v811
      %v818 = vmin.f32 %v734, %v815
      %v819 = vmin.f32 %v735, %v816
      %v820 = vmin.f32 %v736, %v817
      %v821 = vrot.slane %v818, 7
      %v822 = vrot.slane %v819, 7
      %v823 = vrot.slane %v820, 7
      %v824 = vsel %vm66, %v822, %v823
      %v825 = vsel %vm66, %v821, %v822
      %v826 = vsel %vm66, %v823, %v821
      %v827 = vrot.slane %v818, 1
      %v828 = vrot.slane %v819, 1
      %v829 = vrot.slane %v820, 1
      %v830 = vsel %vm73, %v828, %v829
      %v831 = vsel %vm73, %v827, %v828
      %v832 = vsel %vm73, %v829, %v827
      %833 = vrot.lane.b32.xlu0 %v818, 1
      %v834 = vpop.permute.xlu0 %833
      %835 = vrot.lane.b32.xlu0 %v819, 1
      %v836 = vpop.permute.xlu0 %835
      %837 = vrot.lane.b32.xlu0 %v820, 1
      %v838 = vpop.permute.xlu0 %837
      %839 = vrot.lane.b32.xlu0 %v818, 127
      %v840 = vpop.permute.xlu0 %839
      %841 = vrot.lane.b32.xlu0 %v819, 127
      %v842 = vpop.permute.xlu0 %841
      %843 = vrot.lane.b32.xlu0 %v820, 127
      %v844 = vpop.permute.xlu0 %843
      %v845 = vmin.f32 %v826, %v831
      %v846 = vmin.f32 %v825, %v830
      %v847 = vmin.f32 %v824, %v832
      %v848 = vmin.f32 %v834, %v840
      %v849 = vmin.f32 %v836, %v842
      %v850 = vmin.f32 %v838, %v844
      %v851 = vsub.f32 %v845, %v848
      %v852 = vsub.f32 %v846, %v849
      %v853 = vsub.f32 %v847, %v850
      %v854 = vmul.f32 %v851, %v851
      %v855 = vmul.f32 %v852, %v852
      %v856 = vmul.f32 %v853, %v853
      %v857 = vmin.f32 %v845, %v848
      %v858 = vmin.f32 %v846, %v849
      %v859 = vmin.f32 %v847, %v850
      %v860 = vadd.f32 %v857, %v26
      %v861 = vadd.f32 %v858, %v27
      %v862 = vadd.f32 %v859, %v28
      %v863 = vadd.f32 %v845, %v848
      %v864 = vadd.f32 %v846, %v849
      %v865 = vadd.f32 %v847, %v850
      %v866 = vsub.f32 %v32, %v854
      %v867 = vsub.f32 %v33, %v855
      %v868 = vsub.f32 %v34, %v856
      %v869 = vrsqrt.pop %v866
      %v870 = vmul.f32 %v866, %v869
      %vm871 = vcmp.eq.f32.partialorder %v866, inf
      %v872 = vsel %vm871, %v866, %v870
      %vm873 = vcmp.eq.f32.partialorder %v866, 0.0
      %v874 = vand.u32 %v866, 2147483648
      %v875 = vsel %vm873, %v874, %v872
      %v876 = vrsqrt.pop %v867
      %v877 = vmul.f32 %v867, %v876
      %vm878 = vcmp.eq.f32.partialorder %v867, inf
      %v879 = vsel %vm878, %v867, %v877
      %vm880 = vcmp.eq.f32.partialorder %v867, 0.0
      %v881 = vand.u32 %v867, 2147483648
      %v882 = vsel %vm880, %v881, %v879
      %v883 = vrsqrt.pop %v868
      %v884 = vmul.f32 %v868, %v883
      %vm885 = vcmp.eq.f32.partialorder %v868, inf
      %v886 = vsel %vm885, %v868, %v884
      %vm887 = vcmp.eq.f32.partialorder %v868, 0.0
      %v888 = vand.u32 %v868, 2147483648
      %v889 = vsel %vm887, %v888, %v886
      %v890 = vadd.f32 %v863, %v875
      %v891 = vadd.f32 %v864, %v882
      %v892 = vadd.f32 %v865, %v889
      %v893 = vmul.f32 %v890, 0.5
      %v894 = vmul.f32 %v891, 0.5
      %v895 = vmul.f32 %v892, 0.5
      %vm896 = vcmp.ge.f32.partialorder %v854, %v29
      %vm897 = vcmp.ge.f32.partialorder %v855, %v30
      %vm898 = vcmp.ge.f32.partialorder %v856, %v31
      %v899 = vsel %vm896, %v860, %v893
      %v900 = vsel %vm897, %v861, %v894
      %v901 = vsel %vm898, %v862, %v895
      %v902 = vmin.f32 %v818, %v899
      %v903 = vmin.f32 %v819, %v900
      %v904 = vmin.f32 %v820, %v901
      %v905 = vrot.slane %v902, 7
      %v906 = vrot.slane %v903, 7
      %v907 = vrot.slane %v904, 7
      %v908 = vsel %vm66, %v906, %v907
      %v909 = vsel %vm66, %v905, %v906
      %v910 = vsel %vm66, %v907, %v905
      %v911 = vrot.slane %v902, 1
      %v912 = vrot.slane %v903, 1
      %v913 = vrot.slane %v904, 1
      %v914 = vsel %vm73, %v912, %v913
      %v915 = vsel %vm73, %v911, %v912
      %v916 = vsel %vm73, %v913, %v911
      %917 = vrot.lane.b32.xlu0 %v902, 1
      %v918 = vpop.permute.xlu0 %917
      %919 = vrot.lane.b32.xlu0 %v903, 1
      %v920 = vpop.permute.xlu0 %919
      %921 = vrot.lane.b32.xlu0 %v904, 1
      %v922 = vpop.permute.xlu0 %921
      %923 = vrot.lane.b32.xlu0 %v902, 127
      %v924 = vpop.permute.xlu0 %923
      %925 = vrot.lane.b32.xlu0 %v903, 127
      %v926 = vpop.permute.xlu0 %925
      %927 = vrot.lane.b32.xlu0 %v904, 127
      %v928 = vpop.permute.xlu0 %927
      %v929 = vmin.f32 %v910, %v915
      %v930 = vmin.f32 %v909, %v914
      %v931 = vmin.f32 %v908, %v916
      %v932 = vmin.f32 %v918, %v924
      %v933 = vmin.f32 %v920, %v926
      %v934 = vmin.f32 %v922, %v928
      %v935 = vsub.f32 %v929, %v932
      %v936 = vsub.f32 %v930, %v933
      %v937 = vsub.f32 %v931, %v934
      %v938 = vmul.f32 %v935, %v935
      %v939 = vmul.f32 %v936, %v936
      %v940 = vmul.f32 %v937, %v937
      %v941 = vmin.f32 %v929, %v932
      %v942 = vmin.f32 %v930, %v933
      %v943 = vmin.f32 %v931, %v934
      %v944 = vadd.f32 %v941, %v26
      %v945 = vadd.f32 %v942, %v27
      %v946 = vadd.f32 %v943, %v28
      %v947 = vadd.f32 %v929, %v932
      %v948 = vadd.f32 %v930, %v933
      %v949 = vadd.f32 %v931, %v934
      %v950 = vsub.f32 %v32, %v938
      %v951 = vsub.f32 %v33, %v939
      %v952 = vsub.f32 %v34, %v940
      %v953 = vrsqrt.pop %v950
      %v954 = vmul.f32 %v950, %v953
      %vm955 = vcmp.eq.f32.partialorder %v950, inf
      %v956 = vsel %vm955, %v950, %v954
      %vm957 = vcmp.eq.f32.partialorder %v950, 0.0
      %v958 = vand.u32 %v950, 2147483648
      %v959 = vsel %vm957, %v958, %v956
      %v960 = vrsqrt.pop %v951
      %v961 = vmul.f32 %v951, %v960
      %vm962 = vcmp.eq.f32.partialorder %v951, inf
      %v963 = vsel %vm962, %v951, %v961
      %vm964 = vcmp.eq.f32.partialorder %v951, 0.0
      %v965 = vand.u32 %v951, 2147483648
      %v966 = vsel %vm964, %v965, %v963
      %v967 = vrsqrt.pop %v952
      %v968 = vmul.f32 %v952, %v967
      %vm969 = vcmp.eq.f32.partialorder %v952, inf
      %v970 = vsel %vm969, %v952, %v968
      %vm971 = vcmp.eq.f32.partialorder %v952, 0.0
      %v972 = vand.u32 %v952, 2147483648
      %v973 = vsel %vm971, %v972, %v970
      %v974 = vadd.f32 %v947, %v959
      %v975 = vadd.f32 %v948, %v966
      %v976 = vadd.f32 %v949, %v973
      %v977 = vmul.f32 %v974, 0.5
      %v978 = vmul.f32 %v975, 0.5
      %v979 = vmul.f32 %v976, 0.5
      %vm980 = vcmp.ge.f32.partialorder %v938, %v29
      %vm981 = vcmp.ge.f32.partialorder %v939, %v30
      %vm982 = vcmp.ge.f32.partialorder %v940, %v31
      %v983 = vsel %vm980, %v944, %v977
      %v984 = vsel %vm981, %v945, %v978
      %v985 = vsel %vm982, %v946, %v979
      %v986 = vmin.f32 %v902, %v983
      %v987 = vmin.f32 %v903, %v984
      %v988 = vmin.f32 %v904, %v985
      %v989 = vrot.slane %v986, 7
      %v990 = vrot.slane %v987, 7
      %v991 = vrot.slane %v988, 7
      %v992 = vsel %vm66, %v990, %v991
      %v993 = vsel %vm66, %v989, %v990
      %v994 = vsel %vm66, %v991, %v989
      %v995 = vrot.slane %v986, 1
      %v996 = vrot.slane %v987, 1
      %v997 = vrot.slane %v988, 1
      %v998 = vsel %vm73, %v996, %v997
      %v999 = vsel %vm73, %v995, %v996
      %v1000 = vsel %vm73, %v997, %v995
      %1001 = vrot.lane.b32.xlu0 %v986, 1
      %v1002 = vpop.permute.xlu0 %1001
      %1003 = vrot.lane.b32.xlu0 %v987, 1
      %v1004 = vpop.permute.xlu0 %1003
      %1005 = vrot.lane.b32.xlu0 %v988, 1
      %v1006 = vpop.permute.xlu0 %1005
      %1007 = vrot.lane.b32.xlu0 %v986, 127
      %v1008 = vpop.permute.xlu0 %1007
      %1009 = vrot.lane.b32.xlu0 %v987, 127
      %v1010 = vpop.permute.xlu0 %1009
      %1011 = vrot.lane.b32.xlu0 %v988, 127
      %v1012 = vpop.permute.xlu0 %1011
      %v1013 = vmin.f32 %v994, %v999
      %v1014 = vmin.f32 %v993, %v998
      %v1015 = vmin.f32 %v992, %v1000
      %v1016 = vmin.f32 %v1002, %v1008
      %v1017 = vmin.f32 %v1004, %v1010
      %v1018 = vmin.f32 %v1006, %v1012
      %v1019 = vsub.f32 %v1013, %v1016
      %v1020 = vsub.f32 %v1014, %v1017
      %v1021 = vsub.f32 %v1015, %v1018
      %v1022 = vmul.f32 %v1019, %v1019
      %v1023 = vmul.f32 %v1020, %v1020
      %v1024 = vmul.f32 %v1021, %v1021
      %v1025 = vmin.f32 %v1013, %v1016
      %v1026 = vmin.f32 %v1014, %v1017
      %v1027 = vmin.f32 %v1015, %v1018
      %v1028 = vadd.f32 %v1025, %v26
      %v1029 = vadd.f32 %v1026, %v27
      %v1030 = vadd.f32 %v1027, %v28
      %v1031 = vadd.f32 %v1013, %v1016
      %v1032 = vadd.f32 %v1014, %v1017
      %v1033 = vadd.f32 %v1015, %v1018
      %v1034 = vsub.f32 %v32, %v1022
      %v1035 = vsub.f32 %v33, %v1023
      %v1036 = vsub.f32 %v34, %v1024
      %v1037 = vrsqrt.pop %v1034
      %v1038 = vmul.f32 %v1034, %v1037
      %vm1039 = vcmp.eq.f32.partialorder %v1034, inf
      %v1040 = vsel %vm1039, %v1034, %v1038
      %vm1041 = vcmp.eq.f32.partialorder %v1034, 0.0
      %v1042 = vand.u32 %v1034, 2147483648
      %v1043 = vsel %vm1041, %v1042, %v1040
      %v1044 = vrsqrt.pop %v1035
      %v1045 = vmul.f32 %v1035, %v1044
      %vm1046 = vcmp.eq.f32.partialorder %v1035, inf
      %v1047 = vsel %vm1046, %v1035, %v1045
      %vm1048 = vcmp.eq.f32.partialorder %v1035, 0.0
      %v1049 = vand.u32 %v1035, 2147483648
      %v1050 = vsel %vm1048, %v1049, %v1047
      %v1051 = vrsqrt.pop %v1036
      %v1052 = vmul.f32 %v1036, %v1051
      %vm1053 = vcmp.eq.f32.partialorder %v1036, inf
      %v1054 = vsel %vm1053, %v1036, %v1052
      %vm1055 = vcmp.eq.f32.partialorder %v1036, 0.0
      %v1056 = vand.u32 %v1036, 2147483648
      %v1057 = vsel %vm1055, %v1056, %v1054
      %v1058 = vadd.f32 %v1031, %v1043
      %v1059 = vadd.f32 %v1032, %v1050
      %v1060 = vadd.f32 %v1033, %v1057
      %v1061 = vmul.f32 %v1058, 0.5
      %v1062 = vmul.f32 %v1059, 0.5
      %v1063 = vmul.f32 %v1060, 0.5
      %vm1064 = vcmp.ge.f32.partialorder %v1022, %v29
      %vm1065 = vcmp.ge.f32.partialorder %v1023, %v30
      %vm1066 = vcmp.ge.f32.partialorder %v1024, %v31
      %v1067 = vsel %vm1064, %v1028, %v1061
      %v1068 = vsel %vm1065, %v1029, %v1062
      %v1069 = vsel %vm1066, %v1030, %v1063
      %v1070 = vmin.f32 %v986, %v1067
      %v1071 = vmin.f32 %v987, %v1068
      %v1072 = vmin.f32 %v988, %v1069
      %v1073 = vrot.slane %v1070, 7
      %v1074 = vrot.slane %v1071, 7
      %v1075 = vrot.slane %v1072, 7
      %v1076 = vsel %vm66, %v1074, %v1075
      %v1077 = vsel %vm66, %v1073, %v1074
      %v1078 = vsel %vm66, %v1075, %v1073
      %v1079 = vrot.slane %v1070, 1
      %v1080 = vrot.slane %v1071, 1
      %v1081 = vrot.slane %v1072, 1
      %v1082 = vsel %vm73, %v1080, %v1081
      %v1083 = vsel %vm73, %v1079, %v1080
      %v1084 = vsel %vm73, %v1081, %v1079
      %1085 = vrot.lane.b32.xlu0 %v1070, 1
      %v1086 = vpop.permute.xlu0 %1085
      %1087 = vrot.lane.b32.xlu0 %v1071, 1
      %v1088 = vpop.permute.xlu0 %1087
      %1089 = vrot.lane.b32.xlu0 %v1072, 1
      %v1090 = vpop.permute.xlu0 %1089
      %1091 = vrot.lane.b32.xlu0 %v1070, 127
      %v1092 = vpop.permute.xlu0 %1091
      %1093 = vrot.lane.b32.xlu0 %v1071, 127
      %v1094 = vpop.permute.xlu0 %1093
      %1095 = vrot.lane.b32.xlu0 %v1072, 127
      %v1096 = vpop.permute.xlu0 %1095
      %v1097 = vmin.f32 %v1078, %v1083
      %v1098 = vmin.f32 %v1077, %v1082
      %v1099 = vmin.f32 %v1076, %v1084
      %v1100 = vmin.f32 %v1086, %v1092
      %v1101 = vmin.f32 %v1088, %v1094
      %v1102 = vmin.f32 %v1090, %v1096
      %v1103 = vsub.f32 %v1097, %v1100
      %v1104 = vsub.f32 %v1098, %v1101
      %v1105 = vsub.f32 %v1099, %v1102
      %v1106 = vmul.f32 %v1103, %v1103
      %v1107 = vmul.f32 %v1104, %v1104
      %v1108 = vmul.f32 %v1105, %v1105
      %v1109 = vmin.f32 %v1097, %v1100
      %v1110 = vmin.f32 %v1098, %v1101
      %v1111 = vmin.f32 %v1099, %v1102
      %v1112 = vadd.f32 %v1109, %v26
      %v1113 = vadd.f32 %v1110, %v27
      %v1114 = vadd.f32 %v1111, %v28
      %v1115 = vadd.f32 %v1097, %v1100
      %v1116 = vadd.f32 %v1098, %v1101
      %v1117 = vadd.f32 %v1099, %v1102
      %v1118 = vsub.f32 %v32, %v1106
      %v1119 = vsub.f32 %v33, %v1107
      %v1120 = vsub.f32 %v34, %v1108
      %v1121 = vrsqrt.pop %v1118
      %v1122 = vmul.f32 %v1118, %v1121
      %vm1123 = vcmp.eq.f32.partialorder %v1118, inf
      %v1124 = vsel %vm1123, %v1118, %v1122
      %vm1125 = vcmp.eq.f32.partialorder %v1118, 0.0
      %v1126 = vand.u32 %v1118, 2147483648
      %v1127 = vsel %vm1125, %v1126, %v1124
      %v1128 = vrsqrt.pop %v1119
      %v1129 = vmul.f32 %v1119, %v1128
      %vm1130 = vcmp.eq.f32.partialorder %v1119, inf
      %v1131 = vsel %vm1130, %v1119, %v1129
      %vm1132 = vcmp.eq.f32.partialorder %v1119, 0.0
      %v1133 = vand.u32 %v1119, 2147483648
      %v1134 = vsel %vm1132, %v1133, %v1131
      %v1135 = vrsqrt.pop %v1120
      %v1136 = vmul.f32 %v1120, %v1135
      %vm1137 = vcmp.eq.f32.partialorder %v1120, inf
      %v1138 = vsel %vm1137, %v1120, %v1136
      %vm1139 = vcmp.eq.f32.partialorder %v1120, 0.0
      %v1140 = vand.u32 %v1120, 2147483648
      %v1141 = vsel %vm1139, %v1140, %v1138
      %v1142 = vadd.f32 %v1115, %v1127
      %v1143 = vadd.f32 %v1116, %v1134
      %v1144 = vadd.f32 %v1117, %v1141
      %v1145 = vmul.f32 %v1142, 0.5
      %v1146 = vmul.f32 %v1143, 0.5
      %v1147 = vmul.f32 %v1144, 0.5
      %vm1148 = vcmp.ge.f32.partialorder %v1106, %v29
      %vm1149 = vcmp.ge.f32.partialorder %v1107, %v30
      %vm1150 = vcmp.ge.f32.partialorder %v1108, %v31
      %v1151 = vsel %vm1148, %v1112, %v1145
      %v1152 = vsel %vm1149, %v1113, %v1146
      %v1153 = vsel %vm1150, %v1114, %v1147
      %v1154 = vmin.f32 %v1070, %v1151
      %v1155 = vmin.f32 %v1071, %v1152
      %v1156 = vmin.f32 %v1072, %v1153
      %v1157 = vrot.slane %v1154, 7
      %v1158 = vrot.slane %v1155, 7
      %v1159 = vrot.slane %v1156, 7
      %v1160 = vsel %vm66, %v1158, %v1159
      %v1161 = vsel %vm66, %v1157, %v1158
      %v1162 = vsel %vm66, %v1159, %v1157
      %v1163 = vrot.slane %v1154, 1
      %v1164 = vrot.slane %v1155, 1
      %v1165 = vrot.slane %v1156, 1
      %v1166 = vsel %vm73, %v1164, %v1165
      %v1167 = vsel %vm73, %v1163, %v1164
      %v1168 = vsel %vm73, %v1165, %v1163
      %1169 = vrot.lane.b32.xlu0 %v1154, 1
      %v1170 = vpop.permute.xlu0 %1169
      %1171 = vrot.lane.b32.xlu0 %v1155, 1
      %v1172 = vpop.permute.xlu0 %1171
      %1173 = vrot.lane.b32.xlu0 %v1156, 1
      %v1174 = vpop.permute.xlu0 %1173
      %1175 = vrot.lane.b32.xlu0 %v1154, 127
      %v1176 = vpop.permute.xlu0 %1175
      %1177 = vrot.lane.b32.xlu0 %v1155, 127
      %v1178 = vpop.permute.xlu0 %1177
      %1179 = vrot.lane.b32.xlu0 %v1156, 127
      %v1180 = vpop.permute.xlu0 %1179
      %v1181 = vmin.f32 %v1162, %v1167
      %v1182 = vmin.f32 %v1161, %v1166
      %v1183 = vmin.f32 %v1160, %v1168
      %v1184 = vmin.f32 %v1170, %v1176
      %v1185 = vmin.f32 %v1172, %v1178
      %v1186 = vmin.f32 %v1174, %v1180
      %v1187 = vsub.f32 %v1181, %v1184
      %v1188 = vsub.f32 %v1182, %v1185
      %v1189 = vsub.f32 %v1183, %v1186
      %v1190 = vmul.f32 %v1187, %v1187
      %v1191 = vmul.f32 %v1188, %v1188
      %v1192 = vmul.f32 %v1189, %v1189
      %v1193 = vmin.f32 %v1181, %v1184
      %v1194 = vmin.f32 %v1182, %v1185
      %v1195 = vmin.f32 %v1183, %v1186
      %v1196 = vadd.f32 %v1193, %v26
      %v1197 = vadd.f32 %v1194, %v27
      %v1198 = vadd.f32 %v1195, %v28
      %v1199 = vadd.f32 %v1181, %v1184
      %v1200 = vadd.f32 %v1182, %v1185
      %v1201 = vadd.f32 %v1183, %v1186
      %v1202 = vsub.f32 %v32, %v1190
      %v1203 = vsub.f32 %v33, %v1191
      %v1204 = vsub.f32 %v34, %v1192
      %v1205 = vrsqrt.pop %v1202
      %v1206 = vmul.f32 %v1202, %v1205
      %vm1207 = vcmp.eq.f32.partialorder %v1202, inf
      %v1208 = vsel %vm1207, %v1202, %v1206
      %vm1209 = vcmp.eq.f32.partialorder %v1202, 0.0
      %v1210 = vand.u32 %v1202, 2147483648
      %v1211 = vsel %vm1209, %v1210, %v1208
      %v1212 = vrsqrt.pop %v1203
      %v1213 = vmul.f32 %v1203, %v1212
      %vm1214 = vcmp.eq.f32.partialorder %v1203, inf
      %v1215 = vsel %vm1214, %v1203, %v1213
      %vm1216 = vcmp.eq.f32.partialorder %v1203, 0.0
      %v1217 = vand.u32 %v1203, 2147483648
      %v1218 = vsel %vm1216, %v1217, %v1215
      %v1219 = vrsqrt.pop %v1204
      %v1220 = vmul.f32 %v1204, %v1219
      %vm1221 = vcmp.eq.f32.partialorder %v1204, inf
      %v1222 = vsel %vm1221, %v1204, %v1220
      %vm1223 = vcmp.eq.f32.partialorder %v1204, 0.0
      %v1224 = vand.u32 %v1204, 2147483648
      %v1225 = vsel %vm1223, %v1224, %v1222
      %v1226 = vadd.f32 %v1199, %v1211
      %v1227 = vadd.f32 %v1200, %v1218
      %v1228 = vadd.f32 %v1201, %v1225
      %v1229 = vmul.f32 %v1226, 0.5
      %v1230 = vmul.f32 %v1227, 0.5
      %v1231 = vmul.f32 %v1228, 0.5
      %vm1232 = vcmp.ge.f32.partialorder %v1190, %v29
      %vm1233 = vcmp.ge.f32.partialorder %v1191, %v30
      %vm1234 = vcmp.ge.f32.partialorder %v1192, %v31
      %v1235 = vsel %vm1232, %v1196, %v1229
      %v1236 = vsel %vm1233, %v1197, %v1230
      %v1237 = vsel %vm1234, %v1198, %v1231
      %v1238 = vmin.f32 %v1154, %v1235
      %v1239 = vmin.f32 %v1155, %v1236
      %v1240 = vmin.f32 %v1156, %v1237
      %v1241 = vrot.slane %v1238, 7
      %v1242 = vrot.slane %v1239, 7
      %v1243 = vrot.slane %v1240, 7
      %v1244 = vsel %vm66, %v1242, %v1243
      %v1245 = vsel %vm66, %v1241, %v1242
      %v1246 = vsel %vm66, %v1243, %v1241
      %v1247 = vrot.slane %v1238, 1
      %v1248 = vrot.slane %v1239, 1
      %v1249 = vrot.slane %v1240, 1
      %v1250 = vsel %vm73, %v1248, %v1249
      %v1251 = vsel %vm73, %v1247, %v1248
      %v1252 = vsel %vm73, %v1249, %v1247
      %1253 = vrot.lane.b32.xlu0 %v1238, 1
      %v1254 = vpop.permute.xlu0 %1253
      %1255 = vrot.lane.b32.xlu0 %v1239, 1
      %v1256 = vpop.permute.xlu0 %1255
      %1257 = vrot.lane.b32.xlu0 %v1240, 1
      %v1258 = vpop.permute.xlu0 %1257
      %1259 = vrot.lane.b32.xlu0 %v1238, 127
      %v1260 = vpop.permute.xlu0 %1259
      %1261 = vrot.lane.b32.xlu0 %v1239, 127
      %v1262 = vpop.permute.xlu0 %1261
      %1263 = vrot.lane.b32.xlu0 %v1240, 127
      %v1264 = vpop.permute.xlu0 %1263
      %v1265 = vmin.f32 %v1246, %v1251
      %v1266 = vmin.f32 %v1245, %v1250
      %v1267 = vmin.f32 %v1244, %v1252
      %v1268 = vmin.f32 %v1254, %v1260
      %v1269 = vmin.f32 %v1256, %v1262
      %v1270 = vmin.f32 %v1258, %v1264
      %v1271 = vsub.f32 %v1265, %v1268
      %v1272 = vsub.f32 %v1266, %v1269
      %v1273 = vsub.f32 %v1267, %v1270
      %v1274 = vmul.f32 %v1271, %v1271
      %v1275 = vmul.f32 %v1272, %v1272
      %v1276 = vmul.f32 %v1273, %v1273
      %v1277 = vmin.f32 %v1265, %v1268
      %v1278 = vmin.f32 %v1266, %v1269
      %v1279 = vmin.f32 %v1267, %v1270
      %v1280 = vadd.f32 %v1277, %v26
      %v1281 = vadd.f32 %v1278, %v27
      %v1282 = vadd.f32 %v1279, %v28
      %v1283 = vadd.f32 %v1265, %v1268
      %v1284 = vadd.f32 %v1266, %v1269
      %v1285 = vadd.f32 %v1267, %v1270
      %v1286 = vsub.f32 %v32, %v1274
      %v1287 = vsub.f32 %v33, %v1275
      %v1288 = vsub.f32 %v34, %v1276
      %v1289 = vrsqrt.pop %v1286
      %v1290 = vmul.f32 %v1286, %v1289
      %vm1291 = vcmp.eq.f32.partialorder %v1286, inf
      %v1292 = vsel %vm1291, %v1286, %v1290
      %vm1293 = vcmp.eq.f32.partialorder %v1286, 0.0
      %v1294 = vand.u32 %v1286, 2147483648
      %v1295 = vsel %vm1293, %v1294, %v1292
      %v1296 = vrsqrt.pop %v1287
      %v1297 = vmul.f32 %v1287, %v1296
      %vm1298 = vcmp.eq.f32.partialorder %v1287, inf
      %v1299 = vsel %vm1298, %v1287, %v1297
      %vm1300 = vcmp.eq.f32.partialorder %v1287, 0.0
      %v1301 = vand.u32 %v1287, 2147483648
      %v1302 = vsel %vm1300, %v1301, %v1299
      %v1303 = vrsqrt.pop %v1288
      %v1304 = vmul.f32 %v1288, %v1303
      %vm1305 = vcmp.eq.f32.partialorder %v1288, inf
      %v1306 = vsel %vm1305, %v1288, %v1304
      %vm1307 = vcmp.eq.f32.partialorder %v1288, 0.0
      %v1308 = vand.u32 %v1288, 2147483648
      %v1309 = vsel %vm1307, %v1308, %v1306
      %v1310 = vadd.f32 %v1283, %v1295
      %v1311 = vadd.f32 %v1284, %v1302
      %v1312 = vadd.f32 %v1285, %v1309
      %v1313 = vmul.f32 %v1310, 0.5
      %v1314 = vmul.f32 %v1311, 0.5
      %v1315 = vmul.f32 %v1312, 0.5
      %vm1316 = vcmp.ge.f32.partialorder %v1274, %v29
      %vm1317 = vcmp.ge.f32.partialorder %v1275, %v30
      %vm1318 = vcmp.ge.f32.partialorder %v1276, %v31
      %v1319 = vsel %vm1316, %v1280, %v1313
      %v1320 = vsel %vm1317, %v1281, %v1314
      %v1321 = vsel %vm1318, %v1282, %v1315
      %v1322 = vmin.f32 %v1238, %v1319
      %v1323 = vmin.f32 %v1239, %v1320
      %v1324 = vmin.f32 %v1240, %v1321
      %v1325 = vrot.slane %v1322, 7
      %v1326 = vrot.slane %v1323, 7
      %v1327 = vrot.slane %v1324, 7
      %v1328 = vsel %vm66, %v1326, %v1327
      %v1329 = vsel %vm66, %v1325, %v1326
      %v1330 = vsel %vm66, %v1327, %v1325
      %v1331 = vrot.slane %v1322, 1
      %v1332 = vrot.slane %v1323, 1
      %v1333 = vrot.slane %v1324, 1
      %v1334 = vsel %vm73, %v1332, %v1333
      %v1335 = vsel %vm73, %v1331, %v1332
      %v1336 = vsel %vm73, %v1333, %v1331
      %1337 = vrot.lane.b32.xlu0 %v1322, 1
      %v1338 = vpop.permute.xlu0 %1337
      %1339 = vrot.lane.b32.xlu0 %v1323, 1
      %v1340 = vpop.permute.xlu0 %1339
      %1341 = vrot.lane.b32.xlu0 %v1324, 1
      %v1342 = vpop.permute.xlu0 %1341
      %1343 = vrot.lane.b32.xlu0 %v1322, 127
      %v1344 = vpop.permute.xlu0 %1343
      %1345 = vrot.lane.b32.xlu0 %v1323, 127
      %v1346 = vpop.permute.xlu0 %1345
      %1347 = vrot.lane.b32.xlu0 %v1324, 127
      %v1348 = vpop.permute.xlu0 %1347
      %v1349 = vmin.f32 %v1330, %v1335
      %v1350 = vmin.f32 %v1329, %v1334
      %v1351 = vmin.f32 %v1328, %v1336
      %v1352 = vmin.f32 %v1338, %v1344
      %v1353 = vmin.f32 %v1340, %v1346
      %v1354 = vmin.f32 %v1342, %v1348
      %v1355 = vsub.f32 %v1349, %v1352
      %v1356 = vsub.f32 %v1350, %v1353
      %v1357 = vsub.f32 %v1351, %v1354
      %v1358 = vmul.f32 %v1355, %v1355
      %v1359 = vmul.f32 %v1356, %v1356
      %v1360 = vmul.f32 %v1357, %v1357
      %v1361 = vmin.f32 %v1349, %v1352
      %v1362 = vmin.f32 %v1350, %v1353
      %v1363 = vmin.f32 %v1351, %v1354
      %v1364 = vadd.f32 %v1361, %v26
      %v1365 = vadd.f32 %v1362, %v27
      %v1366 = vadd.f32 %v1363, %v28
      %v1367 = vadd.f32 %v1349, %v1352
      %v1368 = vadd.f32 %v1350, %v1353
      %v1369 = vadd.f32 %v1351, %v1354
      %v1370 = vsub.f32 %v32, %v1358
      %v1371 = vsub.f32 %v33, %v1359
      %v1372 = vsub.f32 %v34, %v1360
      %v1373 = vrsqrt.pop %v1370
      %v1374 = vmul.f32 %v1370, %v1373
      %vm1375 = vcmp.eq.f32.partialorder %v1370, inf
      %v1376 = vsel %vm1375, %v1370, %v1374
      %vm1377 = vcmp.eq.f32.partialorder %v1370, 0.0
      %v1378 = vand.u32 %v1370, 2147483648
      %v1379 = vsel %vm1377, %v1378, %v1376
      %v1380 = vrsqrt.pop %v1371
      %v1381 = vmul.f32 %v1371, %v1380
      %vm1382 = vcmp.eq.f32.partialorder %v1371, inf
      %v1383 = vsel %vm1382, %v1371, %v1381
      %vm1384 = vcmp.eq.f32.partialorder %v1371, 0.0
      %v1385 = vand.u32 %v1371, 2147483648
      %v1386 = vsel %vm1384, %v1385, %v1383
      %v1387 = vrsqrt.pop %v1372
      %v1388 = vmul.f32 %v1372, %v1387
      %vm1389 = vcmp.eq.f32.partialorder %v1372, inf
      %v1390 = vsel %vm1389, %v1372, %v1388
      %vm1391 = vcmp.eq.f32.partialorder %v1372, 0.0
      %v1392 = vand.u32 %v1372, 2147483648
      %v1393 = vsel %vm1391, %v1392, %v1390
      %v1394 = vadd.f32 %v1367, %v1379
      %v1395 = vadd.f32 %v1368, %v1386
      %v1396 = vadd.f32 %v1369, %v1393
      %v1397 = vmul.f32 %v1394, 0.5
      %v1398 = vmul.f32 %v1395, 0.5
      %v1399 = vmul.f32 %v1396, 0.5
      %vm1400 = vcmp.ge.f32.partialorder %v1358, %v29
      %vm1401 = vcmp.ge.f32.partialorder %v1359, %v30
      %vm1402 = vcmp.ge.f32.partialorder %v1360, %v31
      %v1403 = vsel %vm1400, %v1364, %v1397
      %v1404 = vsel %vm1401, %v1365, %v1398
      %v1405 = vsel %vm1402, %v1366, %v1399
      %v1406 = vmin.f32 %v1322, %v1403
      %v1407 = vmin.f32 %v1323, %v1404
      %v1408 = vmin.f32 %v1324, %v1405
      %v1409 = vrot.slane %v1406, 7
      %v1410 = vrot.slane %v1407, 7
      %v1411 = vrot.slane %v1408, 7
      %v1412 = vsel %vm66, %v1410, %v1411
      %v1413 = vsel %vm66, %v1409, %v1410
      %v1414 = vsel %vm66, %v1411, %v1409
      %v1415 = vrot.slane %v1406, 1
      %v1416 = vrot.slane %v1407, 1
      %v1417 = vrot.slane %v1408, 1
      %v1418 = vsel %vm73, %v1416, %v1417
      %v1419 = vsel %vm73, %v1415, %v1416
      %v1420 = vsel %vm73, %v1417, %v1415
      %1421 = vrot.lane.b32.xlu0 %v1406, 1
      %v1422 = vpop.permute.xlu0 %1421
      %1423 = vrot.lane.b32.xlu0 %v1407, 1
      %v1424 = vpop.permute.xlu0 %1423
      %1425 = vrot.lane.b32.xlu0 %v1408, 1
      %v1426 = vpop.permute.xlu0 %1425
      %1427 = vrot.lane.b32.xlu0 %v1406, 127
      %v1428 = vpop.permute.xlu0 %1427
      %1429 = vrot.lane.b32.xlu0 %v1407, 127
      %v1430 = vpop.permute.xlu0 %1429
      %1431 = vrot.lane.b32.xlu0 %v1408, 127
      %v1432 = vpop.permute.xlu0 %1431
      %v1433 = vmin.f32 %v1414, %v1419
      %v1434 = vmin.f32 %v1413, %v1418
      %v1435 = vmin.f32 %v1412, %v1420
      %v1436 = vmin.f32 %v1422, %v1428
      %v1437 = vmin.f32 %v1424, %v1430
      %v1438 = vmin.f32 %v1426, %v1432
      %v1439 = vsub.f32 %v1433, %v1436
      %v1440 = vsub.f32 %v1434, %v1437
      %v1441 = vsub.f32 %v1435, %v1438
      %v1442 = vmul.f32 %v1439, %v1439
      %v1443 = vmul.f32 %v1440, %v1440
      %v1444 = vmul.f32 %v1441, %v1441
      %v1445 = vmin.f32 %v1433, %v1436
      %v1446 = vmin.f32 %v1434, %v1437
      %v1447 = vmin.f32 %v1435, %v1438
      %v1448 = vadd.f32 %v1445, %v26
      %v1449 = vadd.f32 %v1446, %v27
      %v1450 = vadd.f32 %v1447, %v28
      %v1451 = vadd.f32 %v1433, %v1436
      %v1452 = vadd.f32 %v1434, %v1437
      %v1453 = vadd.f32 %v1435, %v1438
      %v1454 = vsub.f32 %v32, %v1442
      %v1455 = vsub.f32 %v33, %v1443
      %v1456 = vsub.f32 %v34, %v1444
      %v1457 = vrsqrt.pop %v1454
      %v1458 = vmul.f32 %v1454, %v1457
      %vm1459 = vcmp.eq.f32.partialorder %v1454, inf
      %v1460 = vsel %vm1459, %v1454, %v1458
      %vm1461 = vcmp.eq.f32.partialorder %v1454, 0.0
      %v1462 = vand.u32 %v1454, 2147483648
      %v1463 = vsel %vm1461, %v1462, %v1460
      %v1464 = vrsqrt.pop %v1455
      %v1465 = vmul.f32 %v1455, %v1464
      %vm1466 = vcmp.eq.f32.partialorder %v1455, inf
      %v1467 = vsel %vm1466, %v1455, %v1465
      %vm1468 = vcmp.eq.f32.partialorder %v1455, 0.0
      %v1469 = vand.u32 %v1455, 2147483648
      %v1470 = vsel %vm1468, %v1469, %v1467
      %v1471 = vrsqrt.pop %v1456
      %v1472 = vmul.f32 %v1456, %v1471
      %vm1473 = vcmp.eq.f32.partialorder %v1456, inf
      %v1474 = vsel %vm1473, %v1456, %v1472
      %vm1475 = vcmp.eq.f32.partialorder %v1456, 0.0
      %v1476 = vand.u32 %v1456, 2147483648
      %v1477 = vsel %vm1475, %v1476, %v1474
      %v1478 = vadd.f32 %v1451, %v1463
      %v1479 = vadd.f32 %v1452, %v1470
      %v1480 = vadd.f32 %v1453, %v1477
      %v1481 = vmul.f32 %v1478, 0.5
      %v1482 = vmul.f32 %v1479, 0.5
      %v1483 = vmul.f32 %v1480, 0.5
      %vm1484 = vcmp.ge.f32.partialorder %v1442, %v29
      %vm1485 = vcmp.ge.f32.partialorder %v1443, %v30
      %vm1486 = vcmp.ge.f32.partialorder %v1444, %v31
      %v1487 = vsel %vm1484, %v1448, %v1481
      %v1488 = vsel %vm1485, %v1449, %v1482
      %v1489 = vsel %vm1486, %v1450, %v1483
      %v1490 = vmin.f32 %v1406, %v1487
      %v1491 = vmin.f32 %v1407, %v1488
      %v1492 = vmin.f32 %v1408, %v1489
      %v1493 = vrot.slane %v1490, 7
      %v1494 = vrot.slane %v1491, 7
      %v1495 = vrot.slane %v1492, 7
      %v1496 = vsel %vm66, %v1494, %v1495
      %v1497 = vsel %vm66, %v1493, %v1494
      %v1498 = vsel %vm66, %v1495, %v1493
      %v1499 = vrot.slane %v1490, 1
      %v1500 = vrot.slane %v1491, 1
      %v1501 = vrot.slane %v1492, 1
      %v1502 = vsel %vm73, %v1500, %v1501
      %v1503 = vsel %vm73, %v1499, %v1500
      %v1504 = vsel %vm73, %v1501, %v1499
      %1505 = vrot.lane.b32.xlu0 %v1490, 1
      %v1506 = vpop.permute.xlu0 %1505
      %1507 = vrot.lane.b32.xlu0 %v1491, 1
      %v1508 = vpop.permute.xlu0 %1507
      %1509 = vrot.lane.b32.xlu0 %v1492, 1
      %v1510 = vpop.permute.xlu0 %1509
      %1511 = vrot.lane.b32.xlu0 %v1490, 127
      %v1512 = vpop.permute.xlu0 %1511
      %1513 = vrot.lane.b32.xlu0 %v1491, 127
      %v1514 = vpop.permute.xlu0 %1513
      %1515 = vrot.lane.b32.xlu0 %v1492, 127
      %v1516 = vpop.permute.xlu0 %1515
      %v1517 = vmin.f32 %v1498, %v1503
      %v1518 = vmin.f32 %v1497, %v1502
      %v1519 = vmin.f32 %v1496, %v1504
      %v1520 = vmin.f32 %v1506, %v1512
      %v1521 = vmin.f32 %v1508, %v1514
      %v1522 = vmin.f32 %v1510, %v1516
      %v1523 = vsub.f32 %v1517, %v1520
      %v1524 = vsub.f32 %v1518, %v1521
      %v1525 = vsub.f32 %v1519, %v1522
      %v1526 = vmul.f32 %v1523, %v1523
      %v1527 = vmul.f32 %v1524, %v1524
      %v1528 = vmul.f32 %v1525, %v1525
      %v1529 = vmin.f32 %v1517, %v1520
      %v1530 = vmin.f32 %v1518, %v1521
      %v1531 = vmin.f32 %v1519, %v1522
      %v1532 = vadd.f32 %v1529, %v26
      %v1533 = vadd.f32 %v1530, %v27
      %v1534 = vadd.f32 %v1531, %v28
      %v1535 = vadd.f32 %v1517, %v1520
      %v1536 = vadd.f32 %v1518, %v1521
      %v1537 = vadd.f32 %v1519, %v1522
      %v1538 = vsub.f32 %v32, %v1526
      %v1539 = vsub.f32 %v33, %v1527
      %v1540 = vsub.f32 %v34, %v1528
      %v1541 = vrsqrt.pop %v1538
      %v1542 = vmul.f32 %v1538, %v1541
      %vm1543 = vcmp.eq.f32.partialorder %v1538, inf
      %v1544 = vsel %vm1543, %v1538, %v1542
      %vm1545 = vcmp.eq.f32.partialorder %v1538, 0.0
      %v1546 = vand.u32 %v1538, 2147483648
      %v1547 = vsel %vm1545, %v1546, %v1544
      %v1548 = vrsqrt.pop %v1539
      %v1549 = vmul.f32 %v1539, %v1548
      %vm1550 = vcmp.eq.f32.partialorder %v1539, inf
      %v1551 = vsel %vm1550, %v1539, %v1549
      %vm1552 = vcmp.eq.f32.partialorder %v1539, 0.0
      %v1553 = vand.u32 %v1539, 2147483648
      %v1554 = vsel %vm1552, %v1553, %v1551
      %v1555 = vrsqrt.pop %v1540
      %v1556 = vmul.f32 %v1540, %v1555
      %vm1557 = vcmp.eq.f32.partialorder %v1540, inf
      %v1558 = vsel %vm1557, %v1540, %v1556
      %vm1559 = vcmp.eq.f32.partialorder %v1540, 0.0
      %v1560 = vand.u32 %v1540, 2147483648
      %v1561 = vsel %vm1559, %v1560, %v1558
      %v1562 = vadd.f32 %v1535, %v1547
      %v1563 = vadd.f32 %v1536, %v1554
      %v1564 = vadd.f32 %v1537, %v1561
      %v1565 = vmul.f32 %v1562, 0.5
      %v1566 = vmul.f32 %v1563, 0.5
      %v1567 = vmul.f32 %v1564, 0.5
      %vm1568 = vcmp.ge.f32.partialorder %v1526, %v29
      %vm1569 = vcmp.ge.f32.partialorder %v1527, %v30
      %vm1570 = vcmp.ge.f32.partialorder %v1528, %v31
      %v1571 = vsel %vm1568, %v1532, %v1565
      %v1572 = vsel %vm1569, %v1533, %v1566
      %v1573 = vsel %vm1570, %v1534, %v1567
      %v1574 = vmin.f32 %v1490, %v1571
      %v1575 = vmin.f32 %v1491, %v1572
      %v1576 = vmin.f32 %v1492, %v1573
      %v1577 = vrot.slane %v1574, 7
      %v1578 = vrot.slane %v1575, 7
      %v1579 = vrot.slane %v1576, 7
      %v1580 = vsel %vm66, %v1578, %v1579
      %v1581 = vsel %vm66, %v1577, %v1578
      %v1582 = vsel %vm66, %v1579, %v1577
      %v1583 = vrot.slane %v1574, 1
      %v1584 = vrot.slane %v1575, 1
      %v1585 = vrot.slane %v1576, 1
      %v1586 = vsel %vm73, %v1584, %v1585
      %v1587 = vsel %vm73, %v1583, %v1584
      %v1588 = vsel %vm73, %v1585, %v1583
      %1589 = vrot.lane.b32.xlu0 %v1574, 1
      %v1590 = vpop.permute.xlu0 %1589
      %1591 = vrot.lane.b32.xlu0 %v1575, 1
      %v1592 = vpop.permute.xlu0 %1591
      %1593 = vrot.lane.b32.xlu0 %v1576, 1
      %v1594 = vpop.permute.xlu0 %1593
      %1595 = vrot.lane.b32.xlu0 %v1574, 127
      %v1596 = vpop.permute.xlu0 %1595
      %1597 = vrot.lane.b32.xlu0 %v1575, 127
      %v1598 = vpop.permute.xlu0 %1597
      %1599 = vrot.lane.b32.xlu0 %v1576, 127
      %v1600 = vpop.permute.xlu0 %1599
      %v1601 = vmin.f32 %v1582, %v1587
      %v1602 = vmin.f32 %v1581, %v1586
      %v1603 = vmin.f32 %v1580, %v1588
      %v1604 = vmin.f32 %v1590, %v1596
      %v1605 = vmin.f32 %v1592, %v1598
      %v1606 = vmin.f32 %v1594, %v1600
      %v1607 = vsub.f32 %v1601, %v1604
      %v1608 = vsub.f32 %v1602, %v1605
      %v1609 = vsub.f32 %v1603, %v1606
      %v1610 = vmul.f32 %v1607, %v1607
      %v1611 = vmul.f32 %v1608, %v1608
      %v1612 = vmul.f32 %v1609, %v1609
      %v1613 = vmin.f32 %v1601, %v1604
      %v1614 = vmin.f32 %v1602, %v1605
      %v1615 = vmin.f32 %v1603, %v1606
      %v1616 = vadd.f32 %v1613, %v26
      %v1617 = vadd.f32 %v1614, %v27
      %v1618 = vadd.f32 %v1615, %v28
      %v1619 = vadd.f32 %v1601, %v1604
      %v1620 = vadd.f32 %v1602, %v1605
      %v1621 = vadd.f32 %v1603, %v1606
      %v1622 = vsub.f32 %v32, %v1610
      %v1623 = vsub.f32 %v33, %v1611
      %v1624 = vsub.f32 %v34, %v1612
      %v1625 = vrsqrt.pop %v1622
      %v1626 = vmul.f32 %v1622, %v1625
      %vm1627 = vcmp.eq.f32.partialorder %v1622, inf
      %v1628 = vsel %vm1627, %v1622, %v1626
      %vm1629 = vcmp.eq.f32.partialorder %v1622, 0.0
      %v1630 = vand.u32 %v1622, 2147483648
      %v1631 = vsel %vm1629, %v1630, %v1628
      %v1632 = vrsqrt.pop %v1623
      %v1633 = vmul.f32 %v1623, %v1632
      %vm1634 = vcmp.eq.f32.partialorder %v1623, inf
      %v1635 = vsel %vm1634, %v1623, %v1633
      %vm1636 = vcmp.eq.f32.partialorder %v1623, 0.0
      %v1637 = vand.u32 %v1623, 2147483648
      %v1638 = vsel %vm1636, %v1637, %v1635
      %v1639 = vrsqrt.pop %v1624
      %v1640 = vmul.f32 %v1624, %v1639
      %vm1641 = vcmp.eq.f32.partialorder %v1624, inf
      %v1642 = vsel %vm1641, %v1624, %v1640
      %vm1643 = vcmp.eq.f32.partialorder %v1624, 0.0
      %v1644 = vand.u32 %v1624, 2147483648
      %v1645 = vsel %vm1643, %v1644, %v1642
      %v1646 = vadd.f32 %v1619, %v1631
      %v1647 = vadd.f32 %v1620, %v1638
      %v1648 = vadd.f32 %v1621, %v1645
      %v1649 = vmul.f32 %v1646, 0.5
      %v1650 = vmul.f32 %v1647, 0.5
      %v1651 = vmul.f32 %v1648, 0.5
      %vm1652 = vcmp.ge.f32.partialorder %v1610, %v29
      %vm1653 = vcmp.ge.f32.partialorder %v1611, %v30
      %vm1654 = vcmp.ge.f32.partialorder %v1612, %v31
      %v1655 = vsel %vm1652, %v1616, %v1649
      %v1656 = vsel %vm1653, %v1617, %v1650
      %v1657 = vsel %vm1654, %v1618, %v1651
      %v1658 = vmin.f32 %v1574, %v1655
      %v1659 = vmin.f32 %v1575, %v1656
      %v1660 = vmin.f32 %v1576, %v1657
      %v1661 = vrot.slane %v1658, 7
      %v1662 = vrot.slane %v1659, 7
      %v1663 = vrot.slane %v1660, 7
      %v1664 = vsel %vm66, %v1662, %v1663
      %v1665 = vsel %vm66, %v1661, %v1662
      %v1666 = vsel %vm66, %v1663, %v1661
      %v1667 = vrot.slane %v1658, 1
      %v1668 = vrot.slane %v1659, 1
      %v1669 = vrot.slane %v1660, 1
      %v1670 = vsel %vm73, %v1668, %v1669
      %v1671 = vsel %vm73, %v1667, %v1668
      %v1672 = vsel %vm73, %v1669, %v1667
      %1673 = vrot.lane.b32.xlu0 %v1658, 1
      %v1674 = vpop.permute.xlu0 %1673
      %1675 = vrot.lane.b32.xlu0 %v1659, 1
      %v1676 = vpop.permute.xlu0 %1675
      %1677 = vrot.lane.b32.xlu0 %v1660, 1
      %v1678 = vpop.permute.xlu0 %1677
      %1679 = vrot.lane.b32.xlu0 %v1658, 127
      %v1680 = vpop.permute.xlu0 %1679
      %1681 = vrot.lane.b32.xlu0 %v1659, 127
      %v1682 = vpop.permute.xlu0 %1681
      %1683 = vrot.lane.b32.xlu0 %v1660, 127
      %v1684 = vpop.permute.xlu0 %1683
      %v1685 = vmin.f32 %v1666, %v1671
      %v1686 = vmin.f32 %v1665, %v1670
      %v1687 = vmin.f32 %v1664, %v1672
      %v1688 = vmin.f32 %v1674, %v1680
      %v1689 = vmin.f32 %v1676, %v1682
      %v1690 = vmin.f32 %v1678, %v1684
      %v1691 = vsub.f32 %v1685, %v1688
      %v1692 = vsub.f32 %v1686, %v1689
      %v1693 = vsub.f32 %v1687, %v1690
      %v1694 = vmul.f32 %v1691, %v1691
      %v1695 = vmul.f32 %v1692, %v1692
      %v1696 = vmul.f32 %v1693, %v1693
      %v1697 = vmin.f32 %v1685, %v1688
      %v1698 = vmin.f32 %v1686, %v1689
      %v1699 = vmin.f32 %v1687, %v1690
      %v1700 = vadd.f32 %v1697, %v26
      %v1701 = vadd.f32 %v1698, %v27
      %v1702 = vadd.f32 %v1699, %v28
      %v1703 = vadd.f32 %v1685, %v1688
      %v1704 = vadd.f32 %v1686, %v1689
      %v1705 = vadd.f32 %v1687, %v1690
      %v1706 = vsub.f32 %v32, %v1694
      %v1707 = vsub.f32 %v33, %v1695
      %v1708 = vsub.f32 %v34, %v1696
      %v1709 = vrsqrt.pop %v1706
      %v1710 = vmul.f32 %v1706, %v1709
      %vm1711 = vcmp.eq.f32.partialorder %v1706, inf
      %v1712 = vsel %vm1711, %v1706, %v1710
      %vm1713 = vcmp.eq.f32.partialorder %v1706, 0.0
      %v1714 = vand.u32 %v1706, 2147483648
      %v1715 = vsel %vm1713, %v1714, %v1712
      %v1716 = vrsqrt.pop %v1707
      %v1717 = vmul.f32 %v1707, %v1716
      %vm1718 = vcmp.eq.f32.partialorder %v1707, inf
      %v1719 = vsel %vm1718, %v1707, %v1717
      %vm1720 = vcmp.eq.f32.partialorder %v1707, 0.0
      %v1721 = vand.u32 %v1707, 2147483648
      %v1722 = vsel %vm1720, %v1721, %v1719
      %v1723 = vrsqrt.pop %v1708
      %v1724 = vmul.f32 %v1708, %v1723
      %vm1725 = vcmp.eq.f32.partialorder %v1708, inf
      %v1726 = vsel %vm1725, %v1708, %v1724
      %vm1727 = vcmp.eq.f32.partialorder %v1708, 0.0
      %v1728 = vand.u32 %v1708, 2147483648
      %v1729 = vsel %vm1727, %v1728, %v1726
      %v1730 = vadd.f32 %v1703, %v1715
      %v1731 = vadd.f32 %v1704, %v1722
      %v1732 = vadd.f32 %v1705, %v1729
      %v1733 = vmul.f32 %v1730, 0.5
      %v1734 = vmul.f32 %v1731, 0.5
      %v1735 = vmul.f32 %v1732, 0.5
      %vm1736 = vcmp.ge.f32.partialorder %v1694, %v29
      %vm1737 = vcmp.ge.f32.partialorder %v1695, %v30
      %vm1738 = vcmp.ge.f32.partialorder %v1696, %v31
      %v1739 = vsel %vm1736, %v1700, %v1733
      %v1740 = vsel %vm1737, %v1701, %v1734
      %v1741 = vsel %vm1738, %v1702, %v1735
      %v1742 = vmin.f32 %v1658, %v1739
      %v1743 = vmin.f32 %v1659, %v1740
      %v1744 = vmin.f32 %v1660, %v1741
      %v1745 = vrot.slane %v1742, 7
      %v1746 = vrot.slane %v1743, 7
      %v1747 = vrot.slane %v1744, 7
      %v1748 = vsel %vm66, %v1746, %v1747
      %v1749 = vsel %vm66, %v1745, %v1746
      %v1750 = vsel %vm66, %v1747, %v1745
      %v1751 = vrot.slane %v1742, 1
      %v1752 = vrot.slane %v1743, 1
      %v1753 = vrot.slane %v1744, 1
      %v1754 = vsel %vm73, %v1752, %v1753
      %v1755 = vsel %vm73, %v1751, %v1752
      %v1756 = vsel %vm73, %v1753, %v1751
      %1757 = vrot.lane.b32.xlu0 %v1742, 1
      %v1758 = vpop.permute.xlu0 %1757
      %1759 = vrot.lane.b32.xlu0 %v1743, 1
      %v1760 = vpop.permute.xlu0 %1759
      %1761 = vrot.lane.b32.xlu0 %v1744, 1
      %v1762 = vpop.permute.xlu0 %1761
      %1763 = vrot.lane.b32.xlu0 %v1742, 127
      %v1764 = vpop.permute.xlu0 %1763
      %1765 = vrot.lane.b32.xlu0 %v1743, 127
      %v1766 = vpop.permute.xlu0 %1765
      %1767 = vrot.lane.b32.xlu0 %v1744, 127
      %v1768 = vpop.permute.xlu0 %1767
      %v1769 = vmin.f32 %v1750, %v1755
      %v1770 = vmin.f32 %v1749, %v1754
      %v1771 = vmin.f32 %v1748, %v1756
      %v1772 = vmin.f32 %v1758, %v1764
      %v1773 = vmin.f32 %v1760, %v1766
      %v1774 = vmin.f32 %v1762, %v1768
      %v1775 = vsub.f32 %v1769, %v1772
      %v1776 = vsub.f32 %v1770, %v1773
      %v1777 = vsub.f32 %v1771, %v1774
      %v1778 = vmul.f32 %v1775, %v1775
      %v1779 = vmul.f32 %v1776, %v1776
      %v1780 = vmul.f32 %v1777, %v1777
      %v1781 = vmin.f32 %v1769, %v1772
      %v1782 = vmin.f32 %v1770, %v1773
      %v1783 = vmin.f32 %v1771, %v1774
      %v1784 = vadd.f32 %v1781, %v26
      %v1785 = vadd.f32 %v1782, %v27
      %v1786 = vadd.f32 %v1783, %v28
      %v1787 = vadd.f32 %v1769, %v1772
      %v1788 = vadd.f32 %v1770, %v1773
      %v1789 = vadd.f32 %v1771, %v1774
      %v1790 = vsub.f32 %v32, %v1778
      %v1791 = vsub.f32 %v33, %v1779
      %v1792 = vsub.f32 %v34, %v1780
      %v1793 = vrsqrt.pop %v1790
      %v1794 = vmul.f32 %v1790, %v1793
      %vm1795 = vcmp.eq.f32.partialorder %v1790, inf
      %v1796 = vsel %vm1795, %v1790, %v1794
      %vm1797 = vcmp.eq.f32.partialorder %v1790, 0.0
      %v1798 = vand.u32 %v1790, 2147483648
      %v1799 = vsel %vm1797, %v1798, %v1796
      %v1800 = vrsqrt.pop %v1791
      %v1801 = vmul.f32 %v1791, %v1800
      %vm1802 = vcmp.eq.f32.partialorder %v1791, inf
      %v1803 = vsel %vm1802, %v1791, %v1801
      %vm1804 = vcmp.eq.f32.partialorder %v1791, 0.0
      %v1805 = vand.u32 %v1791, 2147483648
      %v1806 = vsel %vm1804, %v1805, %v1803
      %v1807 = vrsqrt.pop %v1792
      %v1808 = vmul.f32 %v1792, %v1807
      %vm1809 = vcmp.eq.f32.partialorder %v1792, inf
      %v1810 = vsel %vm1809, %v1792, %v1808
      %vm1811 = vcmp.eq.f32.partialorder %v1792, 0.0
      %v1812 = vand.u32 %v1792, 2147483648
      %v1813 = vsel %vm1811, %v1812, %v1810
      %v1814 = vadd.f32 %v1787, %v1799
      %v1815 = vadd.f32 %v1788, %v1806
      %v1816 = vadd.f32 %v1789, %v1813
      %v1817 = vmul.f32 %v1814, 0.5
      %v1818 = vmul.f32 %v1815, 0.5
      %v1819 = vmul.f32 %v1816, 0.5
      %vm1820 = vcmp.ge.f32.partialorder %v1778, %v29
      %vm1821 = vcmp.ge.f32.partialorder %v1779, %v30
      %vm1822 = vcmp.ge.f32.partialorder %v1780, %v31
      %v1823 = vsel %vm1820, %v1784, %v1817
      %v1824 = vsel %vm1821, %v1785, %v1818
      %v1825 = vsel %vm1822, %v1786, %v1819
      %v1826 = vmin.f32 %v1742, %v1823
      %v1827 = vmin.f32 %v1743, %v1824
      %v1828 = vmin.f32 %v1744, %v1825
      %v1829 = vrot.slane %v1826, 7
      %v1830 = vrot.slane %v1827, 7
      %v1831 = vrot.slane %v1828, 7
      %v1832 = vsel %vm66, %v1830, %v1831
      %v1833 = vsel %vm66, %v1829, %v1830
      %v1834 = vsel %vm66, %v1831, %v1829
      %v1835 = vrot.slane %v1826, 1
      %v1836 = vrot.slane %v1827, 1
      %v1837 = vrot.slane %v1828, 1
      %v1838 = vsel %vm73, %v1836, %v1837
      %v1839 = vsel %vm73, %v1835, %v1836
      %v1840 = vsel %vm73, %v1837, %v1835
      %1841 = vrot.lane.b32.xlu0 %v1826, 1
      %v1842 = vpop.permute.xlu0 %1841
      %1843 = vrot.lane.b32.xlu0 %v1827, 1
      %v1844 = vpop.permute.xlu0 %1843
      %1845 = vrot.lane.b32.xlu0 %v1828, 1
      %v1846 = vpop.permute.xlu0 %1845
      %1847 = vrot.lane.b32.xlu0 %v1826, 127
      %v1848 = vpop.permute.xlu0 %1847
      %1849 = vrot.lane.b32.xlu0 %v1827, 127
      %v1850 = vpop.permute.xlu0 %1849
      %1851 = vrot.lane.b32.xlu0 %v1828, 127
      %v1852 = vpop.permute.xlu0 %1851
      %v1853 = vmin.f32 %v1834, %v1839
      %v1854 = vmin.f32 %v1833, %v1838
      %v1855 = vmin.f32 %v1832, %v1840
      %v1856 = vmin.f32 %v1842, %v1848
      %v1857 = vmin.f32 %v1844, %v1850
      %v1858 = vmin.f32 %v1846, %v1852
      %v1859 = vsub.f32 %v1853, %v1856
      %v1860 = vsub.f32 %v1854, %v1857
      %v1861 = vsub.f32 %v1855, %v1858
      %v1862 = vmul.f32 %v1859, %v1859
      %v1863 = vmul.f32 %v1860, %v1860
      %v1864 = vmul.f32 %v1861, %v1861
      %v1865 = vmin.f32 %v1853, %v1856
      %v1866 = vmin.f32 %v1854, %v1857
      %v1867 = vmin.f32 %v1855, %v1858
      %v1868 = vadd.f32 %v1865, %v26
      %v1869 = vadd.f32 %v1866, %v27
      %v1870 = vadd.f32 %v1867, %v28
      %v1871 = vadd.f32 %v1853, %v1856
      %v1872 = vadd.f32 %v1854, %v1857
      %v1873 = vadd.f32 %v1855, %v1858
      %v1874 = vsub.f32 %v32, %v1862
      %v1875 = vsub.f32 %v33, %v1863
      %v1876 = vsub.f32 %v34, %v1864
      %v1877 = vrsqrt.pop %v1874
      %v1878 = vmul.f32 %v1874, %v1877
      %vm1879 = vcmp.eq.f32.partialorder %v1874, inf
      %v1880 = vsel %vm1879, %v1874, %v1878
      %vm1881 = vcmp.eq.f32.partialorder %v1874, 0.0
      %v1882 = vand.u32 %v1874, 2147483648
      %v1883 = vsel %vm1881, %v1882, %v1880
      %v1884 = vrsqrt.pop %v1875
      %v1885 = vmul.f32 %v1875, %v1884
      %vm1886 = vcmp.eq.f32.partialorder %v1875, inf
      %v1887 = vsel %vm1886, %v1875, %v1885
      %vm1888 = vcmp.eq.f32.partialorder %v1875, 0.0
      %v1889 = vand.u32 %v1875, 2147483648
      %v1890 = vsel %vm1888, %v1889, %v1887
      %v1891 = vrsqrt.pop %v1876
      %v1892 = vmul.f32 %v1876, %v1891
      %vm1893 = vcmp.eq.f32.partialorder %v1876, inf
      %v1894 = vsel %vm1893, %v1876, %v1892
      %vm1895 = vcmp.eq.f32.partialorder %v1876, 0.0
      %v1896 = vand.u32 %v1876, 2147483648
      %v1897 = vsel %vm1895, %v1896, %v1894
      %v1898 = vadd.f32 %v1871, %v1883
      %v1899 = vadd.f32 %v1872, %v1890
      %v1900 = vadd.f32 %v1873, %v1897
      %v1901 = vmul.f32 %v1898, 0.5
      %v1902 = vmul.f32 %v1899, 0.5
      %v1903 = vmul.f32 %v1900, 0.5
      %vm1904 = vcmp.ge.f32.partialorder %v1862, %v29
      %vm1905 = vcmp.ge.f32.partialorder %v1863, %v30
      %vm1906 = vcmp.ge.f32.partialorder %v1864, %v31
      %v1907 = vsel %vm1904, %v1868, %v1901
      %v1908 = vsel %vm1905, %v1869, %v1902
      %v1909 = vsel %vm1906, %v1870, %v1903
      %v1910 = vmin.f32 %v1826, %v1907
      %v1911 = vmin.f32 %v1827, %v1908
      %v1912 = vmin.f32 %v1828, %v1909
      %v1913 = vrot.slane %v1910, 7
      %v1914 = vrot.slane %v1911, 7
      %v1915 = vrot.slane %v1912, 7
      %v1916 = vsel %vm66, %v1914, %v1915
      %v1917 = vsel %vm66, %v1913, %v1914
      %v1918 = vsel %vm66, %v1915, %v1913
      %v1919 = vrot.slane %v1910, 1
      %v1920 = vrot.slane %v1911, 1
      %v1921 = vrot.slane %v1912, 1
      %v1922 = vsel %vm73, %v1920, %v1921
      %v1923 = vsel %vm73, %v1919, %v1920
      %v1924 = vsel %vm73, %v1921, %v1919
      %1925 = vrot.lane.b32.xlu0 %v1910, 1
      %v1926 = vpop.permute.xlu0 %1925
      %1927 = vrot.lane.b32.xlu0 %v1911, 1
      %v1928 = vpop.permute.xlu0 %1927
      %1929 = vrot.lane.b32.xlu0 %v1912, 1
      %v1930 = vpop.permute.xlu0 %1929
      %1931 = vrot.lane.b32.xlu0 %v1910, 127
      %v1932 = vpop.permute.xlu0 %1931
      %1933 = vrot.lane.b32.xlu0 %v1911, 127
      %v1934 = vpop.permute.xlu0 %1933
      %1935 = vrot.lane.b32.xlu0 %v1912, 127
      %v1936 = vpop.permute.xlu0 %1935
      %v1937 = vmin.f32 %v1918, %v1923
      %v1938 = vmin.f32 %v1917, %v1922
      %v1939 = vmin.f32 %v1916, %v1924
      %v1940 = vmin.f32 %v1926, %v1932
      %v1941 = vmin.f32 %v1928, %v1934
      %v1942 = vmin.f32 %v1930, %v1936
      %v1943 = vsub.f32 %v1937, %v1940
      %v1944 = vsub.f32 %v1938, %v1941
      %v1945 = vsub.f32 %v1939, %v1942
      %v1946 = vmul.f32 %v1943, %v1943
      %v1947 = vmul.f32 %v1944, %v1944
      %v1948 = vmul.f32 %v1945, %v1945
      %v1949 = vmin.f32 %v1937, %v1940
      %v1950 = vmin.f32 %v1938, %v1941
      %v1951 = vmin.f32 %v1939, %v1942
      %v1952 = vadd.f32 %v1949, %v26
      %v1953 = vadd.f32 %v1950, %v27
      %v1954 = vadd.f32 %v1951, %v28
      %v1955 = vadd.f32 %v1937, %v1940
      %v1956 = vadd.f32 %v1938, %v1941
      %v1957 = vadd.f32 %v1939, %v1942
      %v1958 = vsub.f32 %v32, %v1946
      %v1959 = vsub.f32 %v33, %v1947
      %v1960 = vsub.f32 %v34, %v1948
      %v1961 = vrsqrt.pop %v1958
      %v1962 = vmul.f32 %v1958, %v1961
      %vm1963 = vcmp.eq.f32.partialorder %v1958, inf
      %v1964 = vsel %vm1963, %v1958, %v1962
      %vm1965 = vcmp.eq.f32.partialorder %v1958, 0.0
      %v1966 = vand.u32 %v1958, 2147483648
      %v1967 = vsel %vm1965, %v1966, %v1964
      %v1968 = vrsqrt.pop %v1959
      %v1969 = vmul.f32 %v1959, %v1968
      %vm1970 = vcmp.eq.f32.partialorder %v1959, inf
      %v1971 = vsel %vm1970, %v1959, %v1969
      %vm1972 = vcmp.eq.f32.partialorder %v1959, 0.0
      %v1973 = vand.u32 %v1959, 2147483648
      %v1974 = vsel %vm1972, %v1973, %v1971
      %v1975 = vrsqrt.pop %v1960
      %v1976 = vmul.f32 %v1960, %v1975
      %vm1977 = vcmp.eq.f32.partialorder %v1960, inf
      %v1978 = vsel %vm1977, %v1960, %v1976
      %vm1979 = vcmp.eq.f32.partialorder %v1960, 0.0
      %v1980 = vand.u32 %v1960, 2147483648
      %v1981 = vsel %vm1979, %v1980, %v1978
      %v1982 = vadd.f32 %v1955, %v1967
      %v1983 = vadd.f32 %v1956, %v1974
      %v1984 = vadd.f32 %v1957, %v1981
      %v1985 = vmul.f32 %v1982, 0.5
      %v1986 = vmul.f32 %v1983, 0.5
      %v1987 = vmul.f32 %v1984, 0.5
      %vm1988 = vcmp.ge.f32.partialorder %v1946, %v29
      %vm1989 = vcmp.ge.f32.partialorder %v1947, %v30
      %vm1990 = vcmp.ge.f32.partialorder %v1948, %v31
      %v1991 = vsel %vm1988, %v1952, %v1985
      %v1992 = vsel %vm1989, %v1953, %v1986
      %v1993 = vsel %vm1990, %v1954, %v1987
      %v1994 = vmin.f32 %v1910, %v1991
      %v1995 = vmin.f32 %v1911, %v1992
      %v1996 = vmin.f32 %v1912, %v1993
      %v1997 = vrot.slane %v1994, 7
      %v1998 = vrot.slane %v1995, 7
      %v1999 = vrot.slane %v1996, 7
      %v2000 = vsel %vm66, %v1998, %v1999
      %v2001 = vsel %vm66, %v1997, %v1998
      %v2002 = vsel %vm66, %v1999, %v1997
      %v2003 = vrot.slane %v1994, 1
      %v2004 = vrot.slane %v1995, 1
      %v2005 = vrot.slane %v1996, 1
      %v2006 = vsel %vm73, %v2004, %v2005
      %v2007 = vsel %vm73, %v2003, %v2004
      %v2008 = vsel %vm73, %v2005, %v2003
      %2009 = vrot.lane.b32.xlu0 %v1994, 1
      %v2010 = vpop.permute.xlu0 %2009
      %2011 = vrot.lane.b32.xlu0 %v1995, 1
      %v2012 = vpop.permute.xlu0 %2011
      %2013 = vrot.lane.b32.xlu0 %v1996, 1
      %v2014 = vpop.permute.xlu0 %2013
      %2015 = vrot.lane.b32.xlu0 %v1994, 127
      %v2016 = vpop.permute.xlu0 %2015
      %2017 = vrot.lane.b32.xlu0 %v1995, 127
      %v2018 = vpop.permute.xlu0 %2017
      %2019 = vrot.lane.b32.xlu0 %v1996, 127
      %v2020 = vpop.permute.xlu0 %2019
      %v2021 = vmin.f32 %v2002, %v2007
      %v2022 = vmin.f32 %v2001, %v2006
      %v2023 = vmin.f32 %v2000, %v2008
      %v2024 = vmin.f32 %v2010, %v2016
      %v2025 = vmin.f32 %v2012, %v2018
      %v2026 = vmin.f32 %v2014, %v2020
      %v2027 = vsub.f32 %v2021, %v2024
      %v2028 = vsub.f32 %v2022, %v2025
      %v2029 = vsub.f32 %v2023, %v2026
      %v2030 = vmul.f32 %v2027, %v2027
      %v2031 = vmul.f32 %v2028, %v2028
      %v2032 = vmul.f32 %v2029, %v2029
      %v2033 = vmin.f32 %v2021, %v2024
      %v2034 = vmin.f32 %v2022, %v2025
      %v2035 = vmin.f32 %v2023, %v2026
      %v2036 = vadd.f32 %v2033, %v26
      %v2037 = vadd.f32 %v2034, %v27
      %v2038 = vadd.f32 %v2035, %v28
      %v2039 = vadd.f32 %v2021, %v2024
      %v2040 = vadd.f32 %v2022, %v2025
      %v2041 = vadd.f32 %v2023, %v2026
      %v2042 = vsub.f32 %v32, %v2030
      %v2043 = vsub.f32 %v33, %v2031
      %v2044 = vsub.f32 %v34, %v2032
      %v2045 = vrsqrt.pop %v2042
      %v2046 = vmul.f32 %v2042, %v2045
      %vm2047 = vcmp.eq.f32.partialorder %v2042, inf
      %v2048 = vsel %vm2047, %v2042, %v2046
      %vm2049 = vcmp.eq.f32.partialorder %v2042, 0.0
      %v2050 = vand.u32 %v2042, 2147483648
      %v2051 = vsel %vm2049, %v2050, %v2048
      %v2052 = vrsqrt.pop %v2043
      %v2053 = vmul.f32 %v2043, %v2052
      %vm2054 = vcmp.eq.f32.partialorder %v2043, inf
      %v2055 = vsel %vm2054, %v2043, %v2053
      %vm2056 = vcmp.eq.f32.partialorder %v2043, 0.0
      %v2057 = vand.u32 %v2043, 2147483648
      %v2058 = vsel %vm2056, %v2057, %v2055
      %v2059 = vrsqrt.pop %v2044
      %v2060 = vmul.f32 %v2044, %v2059
      %vm2061 = vcmp.eq.f32.partialorder %v2044, inf
      %v2062 = vsel %vm2061, %v2044, %v2060
      %vm2063 = vcmp.eq.f32.partialorder %v2044, 0.0
      %v2064 = vand.u32 %v2044, 2147483648
      %v2065 = vsel %vm2063, %v2064, %v2062
      %v2066 = vadd.f32 %v2039, %v2051
      %v2067 = vadd.f32 %v2040, %v2058
      %v2068 = vadd.f32 %v2041, %v2065
      %v2069 = vmul.f32 %v2066, 0.5
      %v2070 = vmul.f32 %v2067, 0.5
      %v2071 = vmul.f32 %v2068, 0.5
      %vm2072 = vcmp.ge.f32.partialorder %v2030, %v29
      %vm2073 = vcmp.ge.f32.partialorder %v2031, %v30
      %vm2074 = vcmp.ge.f32.partialorder %v2032, %v31
      %v2075 = vsel %vm2072, %v2036, %v2069
      %v2076 = vsel %vm2073, %v2037, %v2070
      %v2077 = vsel %vm2074, %v2038, %v2071
      %v2078 = vmin.f32 %v1994, %v2075
      %v2079 = vmin.f32 %v1995, %v2076
      %v2080 = vmin.f32 %v1996, %v2077
      %v2081 = vrot.slane %v2078, 7
      %v2082 = vrot.slane %v2079, 7
      %v2083 = vrot.slane %v2080, 7
      %v2084 = vsel %vm66, %v2082, %v2083
      %v2085 = vsel %vm66, %v2081, %v2082
      %v2086 = vsel %vm66, %v2083, %v2081
      %v2087 = vrot.slane %v2078, 1
      %v2088 = vrot.slane %v2079, 1
      %v2089 = vrot.slane %v2080, 1
      %v2090 = vsel %vm73, %v2088, %v2089
      %v2091 = vsel %vm73, %v2087, %v2088
      %v2092 = vsel %vm73, %v2089, %v2087
      %2093 = vrot.lane.b32.xlu0 %v2078, 1
      %v2094 = vpop.permute.xlu0 %2093
      %2095 = vrot.lane.b32.xlu0 %v2079, 1
      %v2096 = vpop.permute.xlu0 %2095
      %2097 = vrot.lane.b32.xlu0 %v2080, 1
      %v2098 = vpop.permute.xlu0 %2097
      %2099 = vrot.lane.b32.xlu0 %v2078, 127
      %v2100 = vpop.permute.xlu0 %2099
      %2101 = vrot.lane.b32.xlu0 %v2079, 127
      %v2102 = vpop.permute.xlu0 %2101
      %2103 = vrot.lane.b32.xlu0 %v2080, 127
      %v2104 = vpop.permute.xlu0 %2103
      %v2105 = vmin.f32 %v2086, %v2091
      %v2106 = vmin.f32 %v2085, %v2090
      %v2107 = vmin.f32 %v2084, %v2092
      %v2108 = vmin.f32 %v2094, %v2100
      %v2109 = vmin.f32 %v2096, %v2102
      %v2110 = vmin.f32 %v2098, %v2104
      %v2111 = vsub.f32 %v2105, %v2108
      %v2112 = vsub.f32 %v2106, %v2109
      %v2113 = vsub.f32 %v2107, %v2110
      %v2114 = vmul.f32 %v2111, %v2111
      %v2115 = vmul.f32 %v2112, %v2112
      %v2116 = vmul.f32 %v2113, %v2113
      %v2117 = vmin.f32 %v2105, %v2108
      %v2118 = vmin.f32 %v2106, %v2109
      %v2119 = vmin.f32 %v2107, %v2110
      %v2120 = vadd.f32 %v2117, %v26
      %v2121 = vadd.f32 %v2118, %v27
      %v2122 = vadd.f32 %v2119, %v28
      %v2123 = vadd.f32 %v2105, %v2108
      %v2124 = vadd.f32 %v2106, %v2109
      %v2125 = vadd.f32 %v2107, %v2110
      %v2126 = vsub.f32 %v32, %v2114
      %v2127 = vsub.f32 %v33, %v2115
      %v2128 = vsub.f32 %v34, %v2116
      %v2129 = vrsqrt.pop %v2126
      %v2130 = vmul.f32 %v2126, %v2129
      %vm2131 = vcmp.eq.f32.partialorder %v2126, inf
      %v2132 = vsel %vm2131, %v2126, %v2130
      %vm2133 = vcmp.eq.f32.partialorder %v2126, 0.0
      %v2134 = vand.u32 %v2126, 2147483648
      %v2135 = vsel %vm2133, %v2134, %v2132
      %v2136 = vrsqrt.pop %v2127
      %v2137 = vmul.f32 %v2127, %v2136
      %vm2138 = vcmp.eq.f32.partialorder %v2127, inf
      %v2139 = vsel %vm2138, %v2127, %v2137
      %vm2140 = vcmp.eq.f32.partialorder %v2127, 0.0
      %v2141 = vand.u32 %v2127, 2147483648
      %v2142 = vsel %vm2140, %v2141, %v2139
      %v2143 = vrsqrt.pop %v2128
      %v2144 = vmul.f32 %v2128, %v2143
      %vm2145 = vcmp.eq.f32.partialorder %v2128, inf
      %v2146 = vsel %vm2145, %v2128, %v2144
      %vm2147 = vcmp.eq.f32.partialorder %v2128, 0.0
      %v2148 = vand.u32 %v2128, 2147483648
      %v2149 = vsel %vm2147, %v2148, %v2146
      %v2150 = vadd.f32 %v2123, %v2135
      %v2151 = vadd.f32 %v2124, %v2142
      %v2152 = vadd.f32 %v2125, %v2149
      %v2153 = vmul.f32 %v2150, 0.5
      %v2154 = vmul.f32 %v2151, 0.5
      %v2155 = vmul.f32 %v2152, 0.5
      %vm2156 = vcmp.ge.f32.partialorder %v2114, %v29
      %vm2157 = vcmp.ge.f32.partialorder %v2115, %v30
      %vm2158 = vcmp.ge.f32.partialorder %v2116, %v31
      %v2159 = vsel %vm2156, %v2120, %v2153
      %v2160 = vsel %vm2157, %v2121, %v2154
      %v2161 = vsel %vm2158, %v2122, %v2155
      %v2162 = vmin.f32 %v2078, %v2159
      %v2163 = vmin.f32 %v2079, %v2160
      %v2164 = vmin.f32 %v2080, %v2161
      %v2165 = vrot.slane %v2162, 7
      %v2166 = vrot.slane %v2163, 7
      %v2167 = vrot.slane %v2164, 7
      %v2168 = vsel %vm66, %v2166, %v2167
      %v2169 = vsel %vm66, %v2165, %v2166
      %v2170 = vsel %vm66, %v2167, %v2165
      %v2171 = vrot.slane %v2162, 1
      %v2172 = vrot.slane %v2163, 1
      %v2173 = vrot.slane %v2164, 1
      %v2174 = vsel %vm73, %v2172, %v2173
      %v2175 = vsel %vm73, %v2171, %v2172
      %v2176 = vsel %vm73, %v2173, %v2171
      %2177 = vrot.lane.b32.xlu0 %v2162, 1
      %v2178 = vpop.permute.xlu0 %2177
      %2179 = vrot.lane.b32.xlu0 %v2163, 1
      %v2180 = vpop.permute.xlu0 %2179
      %2181 = vrot.lane.b32.xlu0 %v2164, 1
      %v2182 = vpop.permute.xlu0 %2181
      %2183 = vrot.lane.b32.xlu0 %v2162, 127
      %v2184 = vpop.permute.xlu0 %2183
      %2185 = vrot.lane.b32.xlu0 %v2163, 127
      %v2186 = vpop.permute.xlu0 %2185
      %2187 = vrot.lane.b32.xlu0 %v2164, 127
      %v2188 = vpop.permute.xlu0 %2187
      %v2189 = vmin.f32 %v2170, %v2175
      %v2190 = vmin.f32 %v2169, %v2174
      %v2191 = vmin.f32 %v2168, %v2176
      %v2192 = vmin.f32 %v2178, %v2184
      %v2193 = vmin.f32 %v2180, %v2186
      %v2194 = vmin.f32 %v2182, %v2188
      %v2195 = vsub.f32 %v2189, %v2192
      %v2196 = vsub.f32 %v2190, %v2193
      %v2197 = vsub.f32 %v2191, %v2194
      %v2198 = vmul.f32 %v2195, %v2195
      %v2199 = vmul.f32 %v2196, %v2196
      %v2200 = vmul.f32 %v2197, %v2197
      %v2201 = vmin.f32 %v2189, %v2192
      %v2202 = vmin.f32 %v2190, %v2193
      %v2203 = vmin.f32 %v2191, %v2194
      %v2204 = vadd.f32 %v2201, %v26
      %v2205 = vadd.f32 %v2202, %v27
      %v2206 = vadd.f32 %v2203, %v28
      %v2207 = vadd.f32 %v2189, %v2192
      %v2208 = vadd.f32 %v2190, %v2193
      %v2209 = vadd.f32 %v2191, %v2194
      %v2210 = vsub.f32 %v32, %v2198
      %v2211 = vsub.f32 %v33, %v2199
      %v2212 = vsub.f32 %v34, %v2200
      %v2213 = vrsqrt.pop %v2210
      %v2214 = vmul.f32 %v2210, %v2213
      %vm2215 = vcmp.eq.f32.partialorder %v2210, inf
      %v2216 = vsel %vm2215, %v2210, %v2214
      %vm2217 = vcmp.eq.f32.partialorder %v2210, 0.0
      %v2218 = vand.u32 %v2210, 2147483648
      %v2219 = vsel %vm2217, %v2218, %v2216
      %v2220 = vrsqrt.pop %v2211
      %v2221 = vmul.f32 %v2211, %v2220
      %vm2222 = vcmp.eq.f32.partialorder %v2211, inf
      %v2223 = vsel %vm2222, %v2211, %v2221
      %vm2224 = vcmp.eq.f32.partialorder %v2211, 0.0
      %v2225 = vand.u32 %v2211, 2147483648
      %v2226 = vsel %vm2224, %v2225, %v2223
      %v2227 = vrsqrt.pop %v2212
      %v2228 = vmul.f32 %v2212, %v2227
      %vm2229 = vcmp.eq.f32.partialorder %v2212, inf
      %v2230 = vsel %vm2229, %v2212, %v2228
      %vm2231 = vcmp.eq.f32.partialorder %v2212, 0.0
      %v2232 = vand.u32 %v2212, 2147483648
      %v2233 = vsel %vm2231, %v2232, %v2230
      %v2234 = vadd.f32 %v2207, %v2219
      %v2235 = vadd.f32 %v2208, %v2226
      %v2236 = vadd.f32 %v2209, %v2233
      %v2237 = vmul.f32 %v2234, 0.5
      %v2238 = vmul.f32 %v2235, 0.5
      %v2239 = vmul.f32 %v2236, 0.5
      %vm2240 = vcmp.ge.f32.partialorder %v2198, %v29
      %vm2241 = vcmp.ge.f32.partialorder %v2199, %v30
      %vm2242 = vcmp.ge.f32.partialorder %v2200, %v31
      %v2243 = vsel %vm2240, %v2204, %v2237
      %v2244 = vsel %vm2241, %v2205, %v2238
      %v2245 = vsel %vm2242, %v2206, %v2239
      %v2246 = vmin.f32 %v2162, %v2243
      %v2247 = vmin.f32 %v2163, %v2244
      %v2248 = vmin.f32 %v2164, %v2245
      %v2249 = vrot.slane %v2246, 7
      %v2250 = vrot.slane %v2247, 7
      %v2251 = vrot.slane %v2248, 7
      %v2252 = vsel %vm66, %v2250, %v2251
      %v2253 = vsel %vm66, %v2249, %v2250
      %v2254 = vsel %vm66, %v2251, %v2249
      %v2255 = vrot.slane %v2246, 1
      %v2256 = vrot.slane %v2247, 1
      %v2257 = vrot.slane %v2248, 1
      %v2258 = vsel %vm73, %v2256, %v2257
      %v2259 = vsel %vm73, %v2255, %v2256
      %v2260 = vsel %vm73, %v2257, %v2255
      %2261 = vrot.lane.b32.xlu0 %v2246, 1
      %v2262 = vpop.permute.xlu0 %2261
      %2263 = vrot.lane.b32.xlu0 %v2247, 1
      %v2264 = vpop.permute.xlu0 %2263
      %2265 = vrot.lane.b32.xlu0 %v2248, 1
      %v2266 = vpop.permute.xlu0 %2265
      %2267 = vrot.lane.b32.xlu0 %v2246, 127
      %v2268 = vpop.permute.xlu0 %2267
      %2269 = vrot.lane.b32.xlu0 %v2247, 127
      %v2270 = vpop.permute.xlu0 %2269
      %2271 = vrot.lane.b32.xlu0 %v2248, 127
      %v2272 = vpop.permute.xlu0 %2271
      %v2273 = vmin.f32 %v2254, %v2259
      %v2274 = vmin.f32 %v2253, %v2258
      %v2275 = vmin.f32 %v2252, %v2260
      %v2276 = vmin.f32 %v2262, %v2268
      %v2277 = vmin.f32 %v2264, %v2270
      %v2278 = vmin.f32 %v2266, %v2272
      %v2279 = vsub.f32 %v2273, %v2276
      %v2280 = vsub.f32 %v2274, %v2277
      %v2281 = vsub.f32 %v2275, %v2278
      %v2282 = vmul.f32 %v2279, %v2279
      %v2283 = vmul.f32 %v2280, %v2280
      %v2284 = vmul.f32 %v2281, %v2281
      %v2285 = vmin.f32 %v2273, %v2276
      %v2286 = vmin.f32 %v2274, %v2277
      %v2287 = vmin.f32 %v2275, %v2278
      %v2288 = vadd.f32 %v2285, %v26
      %v2289 = vadd.f32 %v2286, %v27
      %v2290 = vadd.f32 %v2287, %v28
      %v2291 = vadd.f32 %v2273, %v2276
      %v2292 = vadd.f32 %v2274, %v2277
      %v2293 = vadd.f32 %v2275, %v2278
      %v2294 = vsub.f32 %v32, %v2282
      %v2295 = vsub.f32 %v33, %v2283
      %v2296 = vsub.f32 %v34, %v2284
      %v2297 = vrsqrt.pop %v2294
      %v2298 = vmul.f32 %v2294, %v2297
      %vm2299 = vcmp.eq.f32.partialorder %v2294, inf
      %v2300 = vsel %vm2299, %v2294, %v2298
      %vm2301 = vcmp.eq.f32.partialorder %v2294, 0.0
      %v2302 = vand.u32 %v2294, 2147483648
      %v2303 = vsel %vm2301, %v2302, %v2300
      %v2304 = vrsqrt.pop %v2295
      %v2305 = vmul.f32 %v2295, %v2304
      %vm2306 = vcmp.eq.f32.partialorder %v2295, inf
      %v2307 = vsel %vm2306, %v2295, %v2305
      %vm2308 = vcmp.eq.f32.partialorder %v2295, 0.0
      %v2309 = vand.u32 %v2295, 2147483648
      %v2310 = vsel %vm2308, %v2309, %v2307
      %v2311 = vrsqrt.pop %v2296
      %v2312 = vmul.f32 %v2296, %v2311
      %vm2313 = vcmp.eq.f32.partialorder %v2296, inf
      %v2314 = vsel %vm2313, %v2296, %v2312
      %vm2315 = vcmp.eq.f32.partialorder %v2296, 0.0
      %v2316 = vand.u32 %v2296, 2147483648
      %v2317 = vsel %vm2315, %v2316, %v2314
      %v2318 = vadd.f32 %v2291, %v2303
      %v2319 = vadd.f32 %v2292, %v2310
      %v2320 = vadd.f32 %v2293, %v2317
      %v2321 = vmul.f32 %v2318, 0.5
      %v2322 = vmul.f32 %v2319, 0.5
      %v2323 = vmul.f32 %v2320, 0.5
      %vm2324 = vcmp.ge.f32.partialorder %v2282, %v29
      %vm2325 = vcmp.ge.f32.partialorder %v2283, %v30
      %vm2326 = vcmp.ge.f32.partialorder %v2284, %v31
      %v2327 = vsel %vm2324, %v2288, %v2321
      %v2328 = vsel %vm2325, %v2289, %v2322
      %v2329 = vsel %vm2326, %v2290, %v2323
      %v2330 = vmin.f32 %v2246, %v2327
      %v2331 = vmin.f32 %v2247, %v2328
      %v2332 = vmin.f32 %v2248, %v2329
      %v2333 = vrot.slane %v2330, 7
      %v2334 = vrot.slane %v2331, 7
      %v2335 = vrot.slane %v2332, 7
      %v2336 = vsel %vm66, %v2334, %v2335
      %v2337 = vsel %vm66, %v2333, %v2334
      %v2338 = vsel %vm66, %v2335, %v2333
      %v2339 = vrot.slane %v2330, 1
      %v2340 = vrot.slane %v2331, 1
      %v2341 = vrot.slane %v2332, 1
      %v2342 = vsel %vm73, %v2340, %v2341
      %v2343 = vsel %vm73, %v2339, %v2340
      %v2344 = vsel %vm73, %v2341, %v2339
      %2345 = vrot.lane.b32.xlu0 %v2330, 1
      %v2346 = vpop.permute.xlu0 %2345
      %2347 = vrot.lane.b32.xlu0 %v2331, 1
      %v2348 = vpop.permute.xlu0 %2347
      %2349 = vrot.lane.b32.xlu0 %v2332, 1
      %v2350 = vpop.permute.xlu0 %2349
      %2351 = vrot.lane.b32.xlu0 %v2330, 127
      %v2352 = vpop.permute.xlu0 %2351
      %2353 = vrot.lane.b32.xlu0 %v2331, 127
      %v2354 = vpop.permute.xlu0 %2353
      %2355 = vrot.lane.b32.xlu0 %v2332, 127
      %v2356 = vpop.permute.xlu0 %2355
      %v2357 = vmin.f32 %v2338, %v2343
      %v2358 = vmin.f32 %v2337, %v2342
      %v2359 = vmin.f32 %v2336, %v2344
      %v2360 = vmin.f32 %v2346, %v2352
      %v2361 = vmin.f32 %v2348, %v2354
      %v2362 = vmin.f32 %v2350, %v2356
      %v2363 = vsub.f32 %v2357, %v2360
      %v2364 = vsub.f32 %v2358, %v2361
      %v2365 = vsub.f32 %v2359, %v2362
      %v2366 = vmul.f32 %v2363, %v2363
      %v2367 = vmul.f32 %v2364, %v2364
      %v2368 = vmul.f32 %v2365, %v2365
      %v2369 = vmin.f32 %v2357, %v2360
      %v2370 = vmin.f32 %v2358, %v2361
      %v2371 = vmin.f32 %v2359, %v2362
      %v2372 = vadd.f32 %v2369, %v26
      %v2373 = vadd.f32 %v2370, %v27
      %v2374 = vadd.f32 %v2371, %v28
      %v2375 = vadd.f32 %v2357, %v2360
      %v2376 = vadd.f32 %v2358, %v2361
      %v2377 = vadd.f32 %v2359, %v2362
      %v2378 = vsub.f32 %v32, %v2366
      %v2379 = vsub.f32 %v33, %v2367
      %v2380 = vsub.f32 %v34, %v2368
      %v2381 = vrsqrt.pop %v2378
      %v2382 = vmul.f32 %v2378, %v2381
      %vm2383 = vcmp.eq.f32.partialorder %v2378, inf
      %v2384 = vsel %vm2383, %v2378, %v2382
      %vm2385 = vcmp.eq.f32.partialorder %v2378, 0.0
      %v2386 = vand.u32 %v2378, 2147483648
      %v2387 = vsel %vm2385, %v2386, %v2384
      %v2388 = vrsqrt.pop %v2379
      %v2389 = vmul.f32 %v2379, %v2388
      %vm2390 = vcmp.eq.f32.partialorder %v2379, inf
      %v2391 = vsel %vm2390, %v2379, %v2389
      %vm2392 = vcmp.eq.f32.partialorder %v2379, 0.0
      %v2393 = vand.u32 %v2379, 2147483648
      %v2394 = vsel %vm2392, %v2393, %v2391
      %v2395 = vrsqrt.pop %v2380
      %v2396 = vmul.f32 %v2380, %v2395
      %vm2397 = vcmp.eq.f32.partialorder %v2380, inf
      %v2398 = vsel %vm2397, %v2380, %v2396
      %vm2399 = vcmp.eq.f32.partialorder %v2380, 0.0
      %v2400 = vand.u32 %v2380, 2147483648
      %v2401 = vsel %vm2399, %v2400, %v2398
      %v2402 = vadd.f32 %v2375, %v2387
      %v2403 = vadd.f32 %v2376, %v2394
      %v2404 = vadd.f32 %v2377, %v2401
      %v2405 = vmul.f32 %v2402, 0.5
      %v2406 = vmul.f32 %v2403, 0.5
      %v2407 = vmul.f32 %v2404, 0.5
      %vm2408 = vcmp.ge.f32.partialorder %v2366, %v29
      %vm2409 = vcmp.ge.f32.partialorder %v2367, %v30
      %vm2410 = vcmp.ge.f32.partialorder %v2368, %v31
      %v2411 = vsel %vm2408, %v2372, %v2405
      %v2412 = vsel %vm2409, %v2373, %v2406
      %v2413 = vsel %vm2410, %v2374, %v2407
      %v2414 = vmin.f32 %v2330, %v2411
      %v2415 = vmin.f32 %v2331, %v2412
      %v2416 = vmin.f32 %v2332, %v2413
      %v2417 = vrot.slane %v2414, 7
      %v2418 = vrot.slane %v2415, 7
      %v2419 = vrot.slane %v2416, 7
      %v2420 = vsel %vm66, %v2418, %v2419
      %v2421 = vsel %vm66, %v2417, %v2418
      %v2422 = vsel %vm66, %v2419, %v2417
      %v2423 = vrot.slane %v2414, 1
      %v2424 = vrot.slane %v2415, 1
      %v2425 = vrot.slane %v2416, 1
      %v2426 = vsel %vm73, %v2424, %v2425
      %v2427 = vsel %vm73, %v2423, %v2424
      %v2428 = vsel %vm73, %v2425, %v2423
      %2429 = vrot.lane.b32.xlu0 %v2414, 1
      %v2430 = vpop.permute.xlu0 %2429
      %2431 = vrot.lane.b32.xlu0 %v2415, 1
      %v2432 = vpop.permute.xlu0 %2431
      %2433 = vrot.lane.b32.xlu0 %v2416, 1
      %v2434 = vpop.permute.xlu0 %2433
      %2435 = vrot.lane.b32.xlu0 %v2414, 127
      %v2436 = vpop.permute.xlu0 %2435
      %2437 = vrot.lane.b32.xlu0 %v2415, 127
      %v2438 = vpop.permute.xlu0 %2437
      %2439 = vrot.lane.b32.xlu0 %v2416, 127
      %v2440 = vpop.permute.xlu0 %2439
      %v2441 = vmin.f32 %v2422, %v2427
      %v2442 = vmin.f32 %v2421, %v2426
      %v2443 = vmin.f32 %v2420, %v2428
      %v2444 = vmin.f32 %v2430, %v2436
      %v2445 = vmin.f32 %v2432, %v2438
      %v2446 = vmin.f32 %v2434, %v2440
      %v2447 = vsub.f32 %v2441, %v2444
      %v2448 = vsub.f32 %v2442, %v2445
      %v2449 = vsub.f32 %v2443, %v2446
      %v2450 = vmul.f32 %v2447, %v2447
      %v2451 = vmul.f32 %v2448, %v2448
      %v2452 = vmul.f32 %v2449, %v2449
      %v2453 = vmin.f32 %v2441, %v2444
      %v2454 = vmin.f32 %v2442, %v2445
      %v2455 = vmin.f32 %v2443, %v2446
      %v2456 = vadd.f32 %v2453, %v26
      %v2457 = vadd.f32 %v2454, %v27
      %v2458 = vadd.f32 %v2455, %v28
      %v2459 = vadd.f32 %v2441, %v2444
      %v2460 = vadd.f32 %v2442, %v2445
      %v2461 = vadd.f32 %v2443, %v2446
      %v2462 = vsub.f32 %v32, %v2450
      %v2463 = vsub.f32 %v33, %v2451
      %v2464 = vsub.f32 %v34, %v2452
      %v2465 = vrsqrt.pop %v2462
      %v2466 = vmul.f32 %v2462, %v2465
      %vm2467 = vcmp.eq.f32.partialorder %v2462, inf
      %v2468 = vsel %vm2467, %v2462, %v2466
      %vm2469 = vcmp.eq.f32.partialorder %v2462, 0.0
      %v2470 = vand.u32 %v2462, 2147483648
      %v2471 = vsel %vm2469, %v2470, %v2468
      %v2472 = vrsqrt.pop %v2463
      %v2473 = vmul.f32 %v2463, %v2472
      %vm2474 = vcmp.eq.f32.partialorder %v2463, inf
      %v2475 = vsel %vm2474, %v2463, %v2473
      %vm2476 = vcmp.eq.f32.partialorder %v2463, 0.0
      %v2477 = vand.u32 %v2463, 2147483648
      %v2478 = vsel %vm2476, %v2477, %v2475
      %v2479 = vrsqrt.pop %v2464
      %v2480 = vmul.f32 %v2464, %v2479
      %vm2481 = vcmp.eq.f32.partialorder %v2464, inf
      %v2482 = vsel %vm2481, %v2464, %v2480
      %vm2483 = vcmp.eq.f32.partialorder %v2464, 0.0
      %v2484 = vand.u32 %v2464, 2147483648
      %v2485 = vsel %vm2483, %v2484, %v2482
      %v2486 = vadd.f32 %v2459, %v2471
      %v2487 = vadd.f32 %v2460, %v2478
      %v2488 = vadd.f32 %v2461, %v2485
      %v2489 = vmul.f32 %v2486, 0.5
      %v2490 = vmul.f32 %v2487, 0.5
      %v2491 = vmul.f32 %v2488, 0.5
      %vm2492 = vcmp.ge.f32.partialorder %v2450, %v29
      %vm2493 = vcmp.ge.f32.partialorder %v2451, %v30
      %vm2494 = vcmp.ge.f32.partialorder %v2452, %v31
      %v2495 = vsel %vm2492, %v2456, %v2489
      %v2496 = vsel %vm2493, %v2457, %v2490
      %v2497 = vsel %vm2494, %v2458, %v2491
      %v2498 = vmin.f32 %v2414, %v2495
      %v2499 = vmin.f32 %v2415, %v2496
      %v2500 = vmin.f32 %v2416, %v2497
      %v2501 = vrot.slane %v2498, 7
      %v2502 = vrot.slane %v2499, 7
      %v2503 = vrot.slane %v2500, 7
      %v2504 = vsel %vm66, %v2502, %v2503
      %v2505 = vsel %vm66, %v2501, %v2502
      %v2506 = vsel %vm66, %v2503, %v2501
      %v2507 = vrot.slane %v2498, 1
      %v2508 = vrot.slane %v2499, 1
      %v2509 = vrot.slane %v2500, 1
      %v2510 = vsel %vm73, %v2508, %v2509
      %v2511 = vsel %vm73, %v2507, %v2508
      %v2512 = vsel %vm73, %v2509, %v2507
      %2513 = vrot.lane.b32.xlu0 %v2498, 1
      %v2514 = vpop.permute.xlu0 %2513
      %2515 = vrot.lane.b32.xlu0 %v2499, 1
      %v2516 = vpop.permute.xlu0 %2515
      %2517 = vrot.lane.b32.xlu0 %v2500, 1
      %v2518 = vpop.permute.xlu0 %2517
      %2519 = vrot.lane.b32.xlu0 %v2498, 127
      %v2520 = vpop.permute.xlu0 %2519
      %2521 = vrot.lane.b32.xlu0 %v2499, 127
      %v2522 = vpop.permute.xlu0 %2521
      %2523 = vrot.lane.b32.xlu0 %v2500, 127
      %v2524 = vpop.permute.xlu0 %2523
      %v2525 = vmin.f32 %v2506, %v2511
      %v2526 = vmin.f32 %v2505, %v2510
      %v2527 = vmin.f32 %v2504, %v2512
      %v2528 = vmin.f32 %v2514, %v2520
      %v2529 = vmin.f32 %v2516, %v2522
      %v2530 = vmin.f32 %v2518, %v2524
      %v2531 = vsub.f32 %v2525, %v2528
      %v2532 = vsub.f32 %v2526, %v2529
      %v2533 = vsub.f32 %v2527, %v2530
      %v2534 = vmul.f32 %v2531, %v2531
      %v2535 = vmul.f32 %v2532, %v2532
      %v2536 = vmul.f32 %v2533, %v2533
      %v2537 = vmin.f32 %v2525, %v2528
      %v2538 = vmin.f32 %v2526, %v2529
      %v2539 = vmin.f32 %v2527, %v2530
      %v2540 = vadd.f32 %v2537, %v26
      %v2541 = vadd.f32 %v2538, %v27
      %v2542 = vadd.f32 %v2539, %v28
      %v2543 = vadd.f32 %v2525, %v2528
      %v2544 = vadd.f32 %v2526, %v2529
      %v2545 = vadd.f32 %v2527, %v2530
      %v2546 = vsub.f32 %v32, %v2534
      %v2547 = vsub.f32 %v33, %v2535
      %v2548 = vsub.f32 %v34, %v2536
      %v2549 = vrsqrt.pop %v2546
      %v2550 = vmul.f32 %v2546, %v2549
      %vm2551 = vcmp.eq.f32.partialorder %v2546, inf
      %v2552 = vsel %vm2551, %v2546, %v2550
      %vm2553 = vcmp.eq.f32.partialorder %v2546, 0.0
      %v2554 = vand.u32 %v2546, 2147483648
      %v2555 = vsel %vm2553, %v2554, %v2552
      %v2556 = vrsqrt.pop %v2547
      %v2557 = vmul.f32 %v2547, %v2556
      %vm2558 = vcmp.eq.f32.partialorder %v2547, inf
      %v2559 = vsel %vm2558, %v2547, %v2557
      %vm2560 = vcmp.eq.f32.partialorder %v2547, 0.0
      %v2561 = vand.u32 %v2547, 2147483648
      %v2562 = vsel %vm2560, %v2561, %v2559
      %v2563 = vrsqrt.pop %v2548
      %v2564 = vmul.f32 %v2548, %v2563
      %vm2565 = vcmp.eq.f32.partialorder %v2548, inf
      %v2566 = vsel %vm2565, %v2548, %v2564
      %vm2567 = vcmp.eq.f32.partialorder %v2548, 0.0
      %v2568 = vand.u32 %v2548, 2147483648
      %v2569 = vsel %vm2567, %v2568, %v2566
      %v2570 = vadd.f32 %v2543, %v2555
      %v2571 = vadd.f32 %v2544, %v2562
      %v2572 = vadd.f32 %v2545, %v2569
      %v2573 = vmul.f32 %v2570, 0.5
      %v2574 = vmul.f32 %v2571, 0.5
      %v2575 = vmul.f32 %v2572, 0.5
      %vm2576 = vcmp.ge.f32.partialorder %v2534, %v29
      %vm2577 = vcmp.ge.f32.partialorder %v2535, %v30
      %vm2578 = vcmp.ge.f32.partialorder %v2536, %v31
      %v2579 = vsel %vm2576, %v2540, %v2573
      %v2580 = vsel %vm2577, %v2541, %v2574
      %v2581 = vsel %vm2578, %v2542, %v2575
      %v2582 = vmin.f32 %v2498, %v2579
      %v2583 = vmin.f32 %v2499, %v2580
      %v2584 = vmin.f32 %v2500, %v2581
      %v2585 = vrot.slane %v2582, 7
      %v2586 = vrot.slane %v2583, 7
      %v2587 = vrot.slane %v2584, 7
      %v2588 = vsel %vm66, %v2586, %v2587
      %v2589 = vsel %vm66, %v2585, %v2586
      %v2590 = vsel %vm66, %v2587, %v2585
      %v2591 = vrot.slane %v2582, 1
      %v2592 = vrot.slane %v2583, 1
      %v2593 = vrot.slane %v2584, 1
      %v2594 = vsel %vm73, %v2592, %v2593
      %v2595 = vsel %vm73, %v2591, %v2592
      %v2596 = vsel %vm73, %v2593, %v2591
      %2597 = vrot.lane.b32.xlu0 %v2582, 1
      %v2598 = vpop.permute.xlu0 %2597
      %2599 = vrot.lane.b32.xlu0 %v2583, 1
      %v2600 = vpop.permute.xlu0 %2599
      %2601 = vrot.lane.b32.xlu0 %v2584, 1
      %v2602 = vpop.permute.xlu0 %2601
      %2603 = vrot.lane.b32.xlu0 %v2582, 127
      %v2604 = vpop.permute.xlu0 %2603
      %2605 = vrot.lane.b32.xlu0 %v2583, 127
      %v2606 = vpop.permute.xlu0 %2605
      %2607 = vrot.lane.b32.xlu0 %v2584, 127
      %v2608 = vpop.permute.xlu0 %2607
      %v2609 = vmin.f32 %v2590, %v2595
      %v2610 = vmin.f32 %v2589, %v2594
      %v2611 = vmin.f32 %v2588, %v2596
      %v2612 = vmin.f32 %v2598, %v2604
      %v2613 = vmin.f32 %v2600, %v2606
      %v2614 = vmin.f32 %v2602, %v2608
      %v2615 = vsub.f32 %v2609, %v2612
      %v2616 = vsub.f32 %v2610, %v2613
      %v2617 = vsub.f32 %v2611, %v2614
      %v2618 = vmul.f32 %v2615, %v2615
      %v2619 = vmul.f32 %v2616, %v2616
      %v2620 = vmul.f32 %v2617, %v2617
      %v2621 = vmin.f32 %v2609, %v2612
      %v2622 = vmin.f32 %v2610, %v2613
      %v2623 = vmin.f32 %v2611, %v2614
      %v2624 = vadd.f32 %v2621, %v26
      %v2625 = vadd.f32 %v2622, %v27
      %v2626 = vadd.f32 %v2623, %v28
      %v2627 = vadd.f32 %v2609, %v2612
      %v2628 = vadd.f32 %v2610, %v2613
      %v2629 = vadd.f32 %v2611, %v2614
      %v2630 = vsub.f32 %v32, %v2618
      %v2631 = vsub.f32 %v33, %v2619
      %v2632 = vsub.f32 %v34, %v2620
      %v2633 = vrsqrt.pop %v2630
      %v2634 = vmul.f32 %v2630, %v2633
      %vm2635 = vcmp.eq.f32.partialorder %v2630, inf
      %v2636 = vsel %vm2635, %v2630, %v2634
      %vm2637 = vcmp.eq.f32.partialorder %v2630, 0.0
      %v2638 = vand.u32 %v2630, 2147483648
      %v2639 = vsel %vm2637, %v2638, %v2636
      %v2640 = vrsqrt.pop %v2631
      %v2641 = vmul.f32 %v2631, %v2640
      %vm2642 = vcmp.eq.f32.partialorder %v2631, inf
      %v2643 = vsel %vm2642, %v2631, %v2641
      %vm2644 = vcmp.eq.f32.partialorder %v2631, 0.0
      %v2645 = vand.u32 %v2631, 2147483648
      %v2646 = vsel %vm2644, %v2645, %v2643
      %v2647 = vrsqrt.pop %v2632
      %v2648 = vmul.f32 %v2632, %v2647
      %vm2649 = vcmp.eq.f32.partialorder %v2632, inf
      %v2650 = vsel %vm2649, %v2632, %v2648
      %vm2651 = vcmp.eq.f32.partialorder %v2632, 0.0
      %v2652 = vand.u32 %v2632, 2147483648
      %v2653 = vsel %vm2651, %v2652, %v2650
      %v2654 = vadd.f32 %v2627, %v2639
      %v2655 = vadd.f32 %v2628, %v2646
      %v2656 = vadd.f32 %v2629, %v2653
      %v2657 = vmul.f32 %v2654, 0.5
      %v2658 = vmul.f32 %v2655, 0.5
      %v2659 = vmul.f32 %v2656, 0.5
      %vm2660 = vcmp.ge.f32.partialorder %v2618, %v29
      %vm2661 = vcmp.ge.f32.partialorder %v2619, %v30
      %vm2662 = vcmp.ge.f32.partialorder %v2620, %v31
      %v2663 = vsel %vm2660, %v2624, %v2657
      %v2664 = vsel %vm2661, %v2625, %v2658
      %v2665 = vsel %vm2662, %v2626, %v2659
      %v2666 = vmin.f32 %v2582, %v2663
      %v2667 = vmin.f32 %v2583, %v2664
      %v2668 = vmin.f32 %v2584, %v2665
      %v2669 = vrot.slane %v2666, 7
      %v2670 = vrot.slane %v2667, 7
      %v2671 = vrot.slane %v2668, 7
      %v2672 = vsel %vm66, %v2670, %v2671
      %v2673 = vsel %vm66, %v2669, %v2670
      %v2674 = vsel %vm66, %v2671, %v2669
      %v2675 = vrot.slane %v2666, 1
      %v2676 = vrot.slane %v2667, 1
      %v2677 = vrot.slane %v2668, 1
      %v2678 = vsel %vm73, %v2676, %v2677
      %v2679 = vsel %vm73, %v2675, %v2676
      %v2680 = vsel %vm73, %v2677, %v2675
      %2681 = vrot.lane.b32.xlu0 %v2666, 1
      %v2682 = vpop.permute.xlu0 %2681
      %2683 = vrot.lane.b32.xlu0 %v2667, 1
      %v2684 = vpop.permute.xlu0 %2683
      %2685 = vrot.lane.b32.xlu0 %v2668, 1
      %v2686 = vpop.permute.xlu0 %2685
      %2687 = vrot.lane.b32.xlu0 %v2666, 127
      %v2688 = vpop.permute.xlu0 %2687
      %2689 = vrot.lane.b32.xlu0 %v2667, 127
      %v2690 = vpop.permute.xlu0 %2689
      %2691 = vrot.lane.b32.xlu0 %v2668, 127
      %v2692 = vpop.permute.xlu0 %2691
      %v2693 = vmin.f32 %v2674, %v2679
      %v2694 = vmin.f32 %v2673, %v2678
      %v2695 = vmin.f32 %v2672, %v2680
      %v2696 = vmin.f32 %v2682, %v2688
      %v2697 = vmin.f32 %v2684, %v2690
      %v2698 = vmin.f32 %v2686, %v2692
      %v2699 = vsub.f32 %v2693, %v2696
      %v2700 = vsub.f32 %v2694, %v2697
      %v2701 = vsub.f32 %v2695, %v2698
      %v2702 = vmul.f32 %v2699, %v2699
      %v2703 = vmul.f32 %v2700, %v2700
      %v2704 = vmul.f32 %v2701, %v2701
      %v2705 = vmin.f32 %v2693, %v2696
      %v2706 = vmin.f32 %v2694, %v2697
      %v2707 = vmin.f32 %v2695, %v2698
      %v2708 = vadd.f32 %v2705, %v26
      %v2709 = vadd.f32 %v2706, %v27
      %v2710 = vadd.f32 %v2707, %v28
      %v2711 = vadd.f32 %v2693, %v2696
      %v2712 = vadd.f32 %v2694, %v2697
      %v2713 = vadd.f32 %v2695, %v2698
      %v2714 = vsub.f32 %v32, %v2702
      %v2715 = vsub.f32 %v33, %v2703
      %v2716 = vsub.f32 %v34, %v2704
      %v2717 = vrsqrt.pop %v2714
      %v2718 = vmul.f32 %v2714, %v2717
      %vm2719 = vcmp.eq.f32.partialorder %v2714, inf
      %v2720 = vsel %vm2719, %v2714, %v2718
      %vm2721 = vcmp.eq.f32.partialorder %v2714, 0.0
      %v2722 = vand.u32 %v2714, 2147483648
      %v2723 = vsel %vm2721, %v2722, %v2720
      %v2724 = vrsqrt.pop %v2715
      %v2725 = vmul.f32 %v2715, %v2724
      %vm2726 = vcmp.eq.f32.partialorder %v2715, inf
      %v2727 = vsel %vm2726, %v2715, %v2725
      %vm2728 = vcmp.eq.f32.partialorder %v2715, 0.0
      %v2729 = vand.u32 %v2715, 2147483648
      %v2730 = vsel %vm2728, %v2729, %v2727
      %v2731 = vrsqrt.pop %v2716
      %v2732 = vmul.f32 %v2716, %v2731
      %vm2733 = vcmp.eq.f32.partialorder %v2716, inf
      %v2734 = vsel %vm2733, %v2716, %v2732
      %vm2735 = vcmp.eq.f32.partialorder %v2716, 0.0
      %v2736 = vand.u32 %v2716, 2147483648
      %v2737 = vsel %vm2735, %v2736, %v2734
      %v2738 = vadd.f32 %v2711, %v2723
      %v2739 = vadd.f32 %v2712, %v2730
      %v2740 = vadd.f32 %v2713, %v2737
      %v2741 = vmul.f32 %v2738, 0.5
      %v2742 = vmul.f32 %v2739, 0.5
      %v2743 = vmul.f32 %v2740, 0.5
      %vm2744 = vcmp.ge.f32.partialorder %v2702, %v29
      %vm2745 = vcmp.ge.f32.partialorder %v2703, %v30
      %vm2746 = vcmp.ge.f32.partialorder %v2704, %v31
      %v2747 = vsel %vm2744, %v2708, %v2741
      %v2748 = vsel %vm2745, %v2709, %v2742
      %v2749 = vsel %vm2746, %v2710, %v2743
      %v2750 = vmin.f32 %v2666, %v2747
      %v2751 = vmin.f32 %v2667, %v2748
      %v2752 = vmin.f32 %v2668, %v2749
      %v2753 = vsub.f32 %v53, %v2750
      %v2754 = vsub.f32 %v54, %v2751
      %v2755 = vsub.f32 %v55, %v2752
      %v2756 = vmax.f32 %v2753, %v2754
      %v2757 = vmax.f32 %v2756, %v2755
      %2758 = vmax.xlane.f32.xlu0 %v2757
      %v2759 = vpop.xlane.xlu0 %2758
      %v2760 = vrot.slane %v2759, 4
      %v2761 = vmax.f32 %v2759, %v2760
      %v2762 = vrot.slane %v2761, 2
      %v2763 = vmax.f32 %v2761, %v2762
      %v2764 = vrot.slane %v2763, 1
      %v2765 = vmax.f32 %v2763, %v2764
      %s2766 = vtos %v2765
      %s2767 = sadd.s32 %s52, 1
    $region14: #{tpu_custom_call.1} parent=1 // loop_footer
      _
    $region15: #{tpu_custom_call.1} parent=1 // loop_footer_branch
      %51 = sbr.rel target = $region11
    $region16: #{tpu_custom_call.1} parent=1 // loop_exit
      _
    %2768 = vst [vmem:[#allocation5] sm:$0xff] %v53
    %2769 = vst [vmem:[#allocation5 + $0x8] sm:$0xff] %v54
    %2770 = vst [vmem:[#allocation5 + $0x10] sm:$0xff] %v55
    // Predicated region
    $region17: #{tpu_custom_call.1} parent=1 // pred_check
      _
    $region18: #{tpu_custom_call.1} parent=1 // pred_check_branch
      %2772 = sbr.rel (0) target = $region20
    $region19: #{tpu_custom_call.1} parent=1 // pred_region
      %s2774 = ssub.s32 384, 384
      %2775 = vsyncadd [#allocation4], %s2774
      %s2776 = sshll.u32 [#allocation5], 4
      %s2777 = int_to_ptr.vmem [resolvable:$true] %s2776
      %2782 = dma.vmem_to_hbm [thread:$0]  %s2777, 384, %s1, [#allocation4], 128, 128, 8
    $region20: #{tpu_custom_call.1} parent=1 // pred_fallthru
      _
    // Predicated region
    $region21: #{tpu_custom_call.1} parent=1 // pred_check
      _
    $region22: #{tpu_custom_call.1} parent=1 // pred_check_branch
      %2784 = sbr.rel (0) target = $region24
    $region23: #{tpu_custom_call.1} parent=1 // pred_region
      %2785 = dma.done [#allocation4], 384
    $region24: #{tpu_custom_call.1} parent=1 // pred_fallthru
      _
    %2786 = vsyncpa [#allocation3], 1
    %2787 = vsyncpa [#allocation4], 1

</llo_original>
